<compile_context>
chip_gen: v7x
topology: tpu7x:2x2x1
jax: 0.10.0
libtpu: 0.0.40
codegen_flags: <defaults>
</compile_context>

<pallas_src>
import math

import jax
import jax.numpy as jnp
from jax.experimental import pallas as pl
from jax.experimental.pallas import tpu as pltpu

# ---- ModelArgs (synthetic, small) --------------------------------------
D_MODEL = 32
N_LAYER = 2
VOCAB = 16                                     # multiple of 8 -> no padding
EXPAND = 2
D_STATE = 16
D_CONV = 4
D_INNER = EXPAND * D_MODEL                     # 64
DT_RANK = math.ceil(D_MODEL / 16)              # 2
RMS_EPS = 1e-5
HEAD_SPLIT = 23

HEAD_N = HEAD_SPLIT * VOCAB                    # 368
HEAD_N_PAD = ((HEAD_N + 127) // 128) * 128     # 384 (lane-dense store)
XDT_N = D_INNER + 2 * D_STATE                  # 96
XDT_N_PAD = 128                                # lane-dense matmul output

BATCH = 2
SEQ_LEN = 8


# ---- numerically-stable elementwise helpers (kernel-side) ---------------
def _silu(x):
    # x * sigmoid(x); exp only sees non-positive args, reciprocal -> EUP slot.
    ex = jnp.exp(-jnp.abs(x))                          # in (0, 1]
    inv = pl.reciprocal(1.0 + ex, approx=True)
    sig = jnp.where(x >= 0, inv, ex * inv)
    return x * sig


def _softplus(x):
    # stable: max(x, 0) + log1p(exp(-|x|))
    return jnp.maximum(x, 0.0) + jnp.log1p(jnp.exp(-jnp.abs(x)))


# ------------------------------------------------------------------------
# Single fused kernel: all residual blocks + final RMSNorm + head, one batch
# element per grid step (grid axis "parallel" -> both v7x TensorCores used).
# ------------------------------------------------------------------------
def mamba_fused_kernel(x_ref, vecs_ref, w_in_ref, conv_w_ref, w_xdt_ref,
                       neg_a_ref, w_out_ref, normf_ref, w_head_ref, out_ref):
    l = x_ref.shape[1]
    h = x_ref[0]                                       # (l, d_model)

    # sublane row ids, reused by the conv masks of every layer
    row_ids = jax.lax.broadcasted_iota(jnp.int32, (l, D_INNER), 0)

    for li in range(N_LAYER):                          # static, unrolled
        # packed row params: [rms_w | conv_b | dt_bias | D]
        vecs = vecs_ref[li]                            # (4, d_inner)
        rms_w = vecs[0:1, :D_MODEL]                    # (1, d_model)
        conv_b = vecs[1:2, :]                          # (1, d_inner)
        b_dt = vecs[2:3, :]                            # (1, d_inner)
        d_par = vecs[3:4, :]                           # (1, d_inner)

        # ---- RMSNorm ----
        ms = jnp.mean(h * h, axis=-1, keepdims=True)
        hn = h * jax.lax.rsqrt(ms + RMS_EPS) * rms_w   # (l, d_model)

        # ---- in_proj: (l, d_model) @ (d_model, 2*d_inner) ----
        xr = jnp.dot(hn, w_in_ref[li], preferred_element_type=jnp.float32)
        xz = xr[:, :D_INNER]                           # (l, d_inner)
        res = xr[:, D_INNER:]                          # (l, d_inner)

        # ---- depthwise causal conv1d via sublane rolls (XLU) + masks ----
        # conv[t] = sum_k conv_w[d_conv-1-k] * xz[t-k], zeros for t-k < 0.
        conv_w = conv_w_ref[li]                        # (d_conv, d_inner)
        conv = xz * conv_w[D_CONV - 1:D_CONV, :]       # k = 0 tap
        for k in range(1, D_CONV):
            shifted = pltpu.roll(xz, shift=k, axis=0)  # row t -> xz[t-k] (wrap)
            shifted = jnp.where(row_ids >= k, shifted, 0.0)
            conv = conv + shifted * conv_w[D_CONV - 1 - k:D_CONV - k, :]
        u = _silu(conv + conv_b)                       # (l, d_inner)

        # ---- fused x_proj + dt_proj (N padded to 128 -> lane-dense) ----
        x_dbl = jnp.dot(u, w_xdt_ref[li], preferred_element_type=jnp.float32)
        delta = _softplus(x_dbl[:, :D_INNER] + b_dt)   # (l, d_inner)
        Bmat = x_dbl[:, D_INNER:D_INNER + D_STATE]     # (l, d_state)
        Cm_t = x_dbl[:, D_INNER + D_STATE:XDT_N].T     # (d_state, l)

        neg_a = neg_a_ref[li]                          # (d_state, d_inner)
        du = delta * u                                 # (l, d_inner)

        # ---- discretization hoisted out of the serial scan ----
        # batched EUP exp; per-step recurrence is only mul + add + reduce
        dA_all = jnp.exp(delta[:, None, :] * neg_a[None, :, :])   # (l, n, d_in)
        dBu_all = Bmat[:, :, None] * du[:, None, :]               # (l, n, d_in)

        # ---- selective scan: state (d_state, d_inner), rows kept in regs ----
        state = jnp.zeros((D_STATE, D_INNER), jnp.float32)
        ys = []
        for t in range(l):                             # l small & static
            state = dA_all[t] * state + dBu_all[t]
            ys.append(jnp.sum(state * Cm_t[:, t:t + 1],
                              axis=0, keepdims=True))  # (1, d_inner)
        y = jnp.concatenate(ys, axis=0)                # (l, d_inner)

        y = (y + u * d_par) * _silu(res)

        # ---- out_proj + residual ----
        h = jnp.dot(y, w_out_ref[li], preferred_element_type=jnp.float32) + h

    # ---- final RMSNorm + blitz_head (lane-dense 384-wide store) ----
    ms = jnp.mean(h * h, axis=-1, keepdims=True)
    hn = h * jax.lax.rsqrt(ms + RMS_EPS) * normf_ref[...]
    out_ref[0] = jnp.dot(hn, w_head_ref[...], preferred_element_type=jnp.float32)


# ------------------------------------------------------------------------
# Wrapper: pack/pre-fold params ONCE, then a single pallas_call per forward.
# ------------------------------------------------------------------------
def pack_params(params):
    """Fold dt_proj into x_proj, precompute -exp(A_log).T, pack row params,
    pad matmul output widths to multiples of 128, stack layers."""
    layers = params["layers"]

    def fold_xdt(p):
        w = jnp.concatenate(
            [p["w_x"][:, :DT_RANK] @ p["w_dt"], p["w_x"][:, DT_RANK:]], axis=1)
        return jnp.pad(w, ((0, 0), (0, XDT_N_PAD - XDT_N)))

    def pack_vecs(p):
        v = jnp.zeros((4, D_INNER), jnp.float32)
        v = v.at[0, :D_MODEL].set(p["rms_w"])
        v = v.at[1].set(p["conv_b"])
        v = v.at[2].set(p["b_dt"])
        v = v.at[3].set(p["D"])
        return v

    return {
        "vecs": jnp.stack([pack_vecs(p) for p in layers]),        # (L,4,d_in)
        "w_in": jnp.stack([p["w_in"] for p in layers]),           # (L,d,2d_in)
        "conv_w": jnp.stack([p["conv_w"] for p in layers]),       # (L,dc,d_in)
        "w_xdt": jnp.stack([fold_xdt(p) for p in layers]),        # (L,d_in,128)
        "neg_a": jnp.stack([-jnp.exp(p["a_log"]).T for p in layers]),  # (L,n,d_in)
        "w_out": jnp.stack([p["w_out"] for p in layers]),         # (L,d_in,d)
        "norm_f_w": params["norm_f_w"].reshape(1, D_MODEL),
        "w_head": jnp.pad(params["w_head"],
                          ((0, 0), (0, HEAD_N_PAD - HEAD_N))),    # (d,384)
    }


def mamba_forward(x, packed):
    b, l, d = x.shape

    def full(a):
        return pl.BlockSpec(a.shape, lambda i: (0,) * a.ndim)

    out = pl.pallas_call(
        mamba_fused_kernel,
        out_shape=jax.ShapeDtypeStruct((b, l, HEAD_N_PAD), jnp.float32),
        grid=(b,),
        in_specs=[
            pl.BlockSpec((1, l, d), lambda i: (i, 0, 0)),      # x
            full(packed["vecs"]),
            full(packed["w_in"]),
            full(packed["conv_w"]),
            full(packed["w_xdt"]),
            full(packed["neg_a"]),
            full(packed["w_out"]),
            full(packed["norm_f_w"]),
            full(packed["w_head"]),
        ],
        out_specs=pl.BlockSpec((1, l, HEAD_N_PAD), lambda i: (i, 0, 0)),
        compiler_params=pltpu.CompilerParams(
            dimension_semantics=("parallel",)),
    )(x, packed["vecs"], packed["w_in"], packed["conv_w"], packed["w_xdt"],
      packed["neg_a"], packed["w_out"], packed["norm_f_w"], packed["w_head"])

    return out[..., :HEAD_N].reshape(b, l, HEAD_SPLIT, VOCAB)


# ------------------------------------------------------------------------
# Pure-JAX reference (mirrors the PyTorch semantics) for verification.
# ------------------------------------------------------------------------
def ref_residual_block(x, p):
    b, l, _ = x.shape
    xn = x * jax.lax.rsqrt(jnp.mean(x * x, -1, keepdims=True) + RMS_EPS) * p["rms_w"]
    xr = xn @ p["w_in"]
    xz, res = xr[..., :D_INNER], xr[..., D_INNER:]
    # depthwise causal conv (NCL semantics, padding=d_conv-1, truncate to l)
    xz_t = jnp.transpose(xz, (0, 2, 1))                     # (b, d_in, l)
    xpad = jnp.pad(xz_t, ((0, 0), (0, 0), (D_CONV - 1, 0)))
    conv = jnp.zeros_like(xz_t)
    for j in range(D_CONV):
        conv = conv + xpad[:, :, j:j + l] * p["conv_w"][j][None, :, None]
    conv = conv + p["conv_b"][None, :, None]
    u = jax.nn.silu(jnp.transpose(conv, (0, 2, 1)))         # (b, l, d_in)

    A = -jnp.exp(p["a_log"])
    x_dbl = u @ p["w_x"]
    dlt = x_dbl[..., :DT_RANK]
    Bm = x_dbl[..., DT_RANK:DT_RANK + D_STATE]
    Cm = x_dbl[..., DT_RANK + D_STATE:]
    delta = jax.nn.softplus(dlt @ p["w_dt"] + p["b_dt"])

    dA = jnp.exp(jnp.einsum("bld,dn->bldn", delta, A))
    dBu = jnp.einsum("bld,bln,bld->bldn", delta, Bm, u)

    def step(state, inp):
        dA_t, dBu_t, C_t = inp
        state = dA_t * state + dBu_t
        return state, jnp.einsum("bdn,bn->bd", state, C_t)

    state0 = jnp.zeros((b, D_INNER, D_STATE), jnp.float32)
    _, ys = jax.lax.scan(step, state0,
                         (jnp.transpose(dA, (1, 0, 2, 3)),
                          jnp.transpose(dBu, (1, 0, 2, 3)),
                          jnp.transpose(Cm, (1, 0, 2))))
    y = jnp.transpose(ys, (1, 0, 2)) + u * p["D"]
    y = y * jax.nn.silu(res)
    return y @ p["w_out"] + x


def ref_forward(x, params):
    b, l, _ = x.shape
    h = x
    for p in params["layers"]:
        h = ref_residual_block(h, p)
    hn = h * jax.lax.rsqrt(jnp.mean(h * h, -1, keepdims=True) + RMS_EPS) * params["norm_f_w"]
    logits = hn @ params["w_head"]
    return logits.reshape(b, l, HEAD_SPLIT, VOCAB)


# ------------------------------------------------------------------------
def init_params(key):
    keys = jax.random.split(key, N_LAYER + 1)
    scale = 0.1
    layers = []
    for li in range(N_LAYER):
        ks = jax.random.split(keys[li], 8)
        layers.append({
            "rms_w": jnp.ones((D_MODEL,), jnp.float32),
            "w_in": scale * jax.random.normal(ks[0], (D_MODEL, 2 * D_INNER), jnp.float32),
            "conv_w": scale * jax.random.normal(ks[1], (D_CONV, D_INNER), jnp.float32),
            "conv_b": scale * jax.random.normal(ks[2], (D_INNER,), jnp.float32),
            "w_x": scale * jax.random.normal(ks[3], (D_INNER, DT_RANK + 2 * D_STATE), jnp.float32),
            "w_dt": scale * jax.random.normal(ks[4], (DT_RANK, D_INNER), jnp.float32),
            "b_dt": scale * jax.random.normal(ks[5], (D_INNER,), jnp.float32),
            "a_log": jnp.log(jnp.broadcast_to(
                jnp.arange(1, D_STATE + 1, dtype=jnp.float32)[None, :],
                (D_INNER, D_STATE))),
            "D": jnp.ones((D_INNER,), jnp.float32),
            "w_out": scale * jax.random.normal(ks[6], (D_INNER, D_MODEL), jnp.float32),
        })
    return {
        "layers": layers,
        "norm_f_w": jnp.ones((D_MODEL,), jnp.float32),
        "w_head": scale * jax.random.normal(
            keys[N_LAYER], (D_MODEL, HEAD_SPLIT * VOCAB), jnp.float32),
    }


if __name__ == "__main__":
    key = jax.random.PRNGKey(0)
    kx, kp = jax.random.split(key)
    x = jax.random.normal(kx, (BATCH, SEQ_LEN, D_MODEL), jnp.float32)
    params = init_params(kp)

    # pack/pre-fold once (hoisted out of the forward path)
    packed = jax.tree_util.tree_map(jax.block_until_ready, pack_params(params))

    out = jax.block_until_ready(mamba_forward(x, packed))
    ref = jax.block_until_ready(ref_forward(x, params))

    assert out.shape == (BATCH, SEQ_LEN, HEAD_SPLIT, VOCAB)
    err = jnp.max(jnp.abs(out - ref))
    assert jnp.allclose(out, ref, rtol=2e-3, atol=2e-3), f"max abs err {err}"

    print("KERNEL_OK")
</pallas_src>

<mosaic_0001>
module attributes {stable_mosaic.version = 11 : i64} {
  func.func @mamba_fused_kernel(%arg0: i32, %arg1: memref<1x8x32xf32, #tpu.memory_space<vmem>>, %arg2: memref<2x4x64xf32, #tpu.memory_space<vmem>>, %arg3: memref<2x32x128xf32, #tpu.memory_space<vmem>>, %arg4: memref<2x4x64xf32, #tpu.memory_space<vmem>>, %arg5: memref<2x64x128xf32, #tpu.memory_space<vmem>>, %arg6: memref<2x16x64xf32, #tpu.memory_space<vmem>>, %arg7: memref<2x64x32xf32, #tpu.memory_space<vmem>>, %arg8: memref<1x32xf32, #tpu.memory_space<vmem>>, %arg9: memref<32x384xf32, #tpu.memory_space<vmem>>, %arg10: memref<1x8x384xf32, #tpu.memory_space<vmem>>) attributes {dimension_semantics = [#tpu.dimension_semantics<parallel>], iteration_bounds = array<i64: 2>, scalar_prefetch = 0 : i64, scratch_operands = 0 : i64, tpu.core_type = #tpu.core_type<tc>, window_params = [{transform_indices = @transform_0, window_bounds = array<i64: 1, 8, 32>}, {pipeline_mode = #tpu.pipeline_mode<synchronous>, transform_indices = @transform_1, window_bounds = array<i64: 2, 4, 64>}, {pipeline_mode = #tpu.pipeline_mode<synchronous>, transform_indices = @transform_2, window_bounds = array<i64: 2, 32, 128>}, {pipeline_mode = #tpu.pipeline_mode<synchronous>, transform_indices = @transform_3, window_bounds = array<i64: 2, 4, 64>}, {pipeline_mode = #tpu.pipeline_mode<synchronous>, transform_indices = @transform_4, window_bounds = array<i64: 2, 64, 128>}, {pipeline_mode = #tpu.pipeline_mode<synchronous>, transform_indices = @transform_5, window_bounds = array<i64: 2, 16, 64>}, {pipeline_mode = #tpu.pipeline_mode<synchronous>, transform_indices = @transform_6, window_bounds = array<i64: 2, 64, 32>}, {pipeline_mode = #tpu.pipeline_mode<synchronous>, transform_indices = @transform_7, window_bounds = array<i64: 1, 32>}, {pipeline_mode = #tpu.pipeline_mode<synchronous>, transform_indices = @transform_8, window_bounds = array<i64: 32, 384>}, {transform_indices = @transform_9, window_bounds = array<i64: 1, 8, 384>}]} {
    %c0 = arith.constant 0 : index
    %c0_0 = arith.constant 0 : index
    %c0_1 = arith.constant 0 : index
    %0 = vector.load %arg1[%c0, %c0_0, %c0_1] : memref<1x8x32xf32, #tpu.memory_space<vmem>>, vector<1x8x32xf32>
    %1 = vector.shape_cast %0 : vector<1x8x32xf32> to vector<8x32xf32>
    %2 = tpu.iota {dimensions = array<i32: 0>} : vector<8x64xi32>
    %c0_2 = arith.constant 0 : index
    %c0_3 = arith.constant 0 : index
    %c0_4 = arith.constant 0 : index
    %3 = vector.load %arg2[%c0_2, %c0_3, %c0_4] : memref<2x4x64xf32, #tpu.memory_space<vmem>>, vector<1x4x64xf32>
    %4 = vector.shape_cast %3 : vector<1x4x64xf32> to vector<4x64xf32>
    %5 = vector.extract_strided_slice %4 {offsets = [0, 0], sizes = [1, 32], strides = [1, 1]} : vector<4x64xf32> to vector<1x32xf32>
    %6 = vector.extract_strided_slice %4 {offsets = [1, 0], sizes = [1, 64], strides = [1, 1]} : vector<4x64xf32> to vector<1x64xf32>
    %7 = vector.extract_strided_slice %4 {offsets = [2, 0], sizes = [1, 64], strides = [1, 1]} : vector<4x64xf32> to vector<1x64xf32>
    %8 = vector.extract_strided_slice %4 {offsets = [3, 0], sizes = [1, 64], strides = [1, 1]} : vector<4x64xf32> to vector<1x64xf32>
    %9 = arith.mulf %1, %1 : vector<8x32xf32>
    %cst = arith.constant dense<0.000000e+00> : vector<8xf32>
    %10 = vector.multi_reduction <add>, %9, %cst [1] : vector<8x32xf32> to vector<8xf32>
    %11 = vector.shape_cast %10 : vector<8xf32> to vector<8x1xf32>
    %cst_5 = arith.constant 3.200000e+01 : f32
    %12 = vector.broadcast %cst_5 : f32 to vector<8x1xf32>
    %13 = arith.divf %11, %12 : vector<8x1xf32>
    %cst_6 = arith.constant 9.99999974E-6 : f32
    %14 = vector.broadcast %cst_6 : f32 to vector<8x1xf32>
    %15 = arith.addf %13, %14 : vector<8x1xf32>
    %16 = math.rsqrt %15 : vector<8x1xf32>
    %17 = vector.broadcast %16 : vector<8x1xf32> to vector<8x32xf32>
    %18 = arith.mulf %1, %17 : vector<8x32xf32>
    %19 = vector.broadcast %5 : vector<1x32xf32> to vector<8x32xf32>
    %20 = arith.mulf %18, %19 : vector<8x32xf32>
    %c0_7 = arith.constant 0 : index
    %c0_8 = arith.constant 0 : index
    %c0_9 = arith.constant 0 : index
    %21 = vector.load %arg3[%c0_7, %c0_8, %c0_9] : memref<2x32x128xf32, #tpu.memory_space<vmem>>, vector<1x32x128xf32>
    %22 = vector.shape_cast %21 : vector<1x32x128xf32> to vector<32x128xf32>
    %cst_10 = arith.constant dense<0.000000e+00> : vector<8x128xf32>
    %23 = tpu.matmul %20, %22, %cst_10 {dimension_numbers = #tpu.dot_dimension_numbers<[1], [0], [0], [1], [0, 0, 1, 1], [], []>} : vector<8x32xf32>, vector<32x128xf32>, vector<8x128xf32> -> vector<8x128xf32>
    %24 = vector.extract_strided_slice %23 {offsets = [0, 0], sizes = [8, 64], strides = [1, 1]} : vector<8x128xf32> to vector<8x64xf32>
    %25 = vector.extract_strided_slice %23 {offsets = [0, 64], sizes = [8, 64], strides = [1, 1]} : vector<8x128xf32> to vector<8x64xf32>
    %c0_11 = arith.constant 0 : index
    %c0_12 = arith.constant 0 : index
    %c0_13 = arith.constant 0 : index
    %26 = vector.load %arg4[%c0_11, %c0_12, %c0_13] : memref<2x4x64xf32, #tpu.memory_space<vmem>>, vector<1x4x64xf32>
    %27 = vector.shape_cast %26 : vector<1x4x64xf32> to vector<4x64xf32>
    %28 = vector.extract_strided_slice %27 {offsets = [3, 0], sizes = [1, 64], strides = [1, 1]} : vector<4x64xf32> to vector<1x64xf32>
    %29 = vector.broadcast %28 : vector<1x64xf32> to vector<8x64xf32>
    %30 = arith.mulf %24, %29 : vector<8x64xf32>
    %c1_i32 = arith.constant 1 : i32
    %31 = tpu.dynamic_rotate %24 by %c1_i32 dim 0 : vector<8x64xf32>, i32 -> vector<8x64xf32>
    %c1_i32_14 = arith.constant 1 : i32
    %32 = vector.broadcast %c1_i32_14 : i32 to vector<8x64xi32>
    %33 = arith.cmpi sge, %2, %32 : vector<8x64xi32>
    %cst_15 = arith.constant 0.000000e+00 : f32
    %34 = vector.broadcast %cst_15 : f32 to vector<8x64xf32>
    %35 = arith.select %33, %31, %34 : vector<8x64xi1>, vector<8x64xf32>
    %36 = vector.extract_strided_slice %27 {offsets = [2, 0], sizes = [1, 64], strides = [1, 1]} : vector<4x64xf32> to vector<1x64xf32>
    %37 = vector.broadcast %36 : vector<1x64xf32> to vector<8x64xf32>
    %38 = arith.mulf %35, %37 : vector<8x64xf32>
    %39 = arith.addf %30, %38 : vector<8x64xf32>
    %c2_i32 = arith.constant 2 : i32
    %40 = tpu.dynamic_rotate %24 by %c2_i32 dim 0 : vector<8x64xf32>, i32 -> vector<8x64xf32>
    %c2_i32_16 = arith.constant 2 : i32
    %41 = vector.broadcast %c2_i32_16 : i32 to vector<8x64xi32>
    %42 = arith.cmpi sge, %2, %41 : vector<8x64xi32>
    %cst_17 = arith.constant 0.000000e+00 : f32
    %43 = vector.broadcast %cst_17 : f32 to vector<8x64xf32>
    %44 = arith.select %42, %40, %43 : vector<8x64xi1>, vector<8x64xf32>
    %45 = vector.extract_strided_slice %27 {offsets = [1, 0], sizes = [1, 64], strides = [1, 1]} : vector<4x64xf32> to vector<1x64xf32>
    %46 = vector.broadcast %45 : vector<1x64xf32> to vector<8x64xf32>
    %47 = arith.mulf %44, %46 : vector<8x64xf32>
    %48 = arith.addf %39, %47 : vector<8x64xf32>
    %c3_i32 = arith.constant 3 : i32
    %49 = tpu.dynamic_rotate %24 by %c3_i32 dim 0 : vector<8x64xf32>, i32 -> vector<8x64xf32>
    %c3_i32_18 = arith.constant 3 : i32
    %50 = vector.broadcast %c3_i32_18 : i32 to vector<8x64xi32>
    %51 = arith.cmpi sge, %2, %50 : vector<8x64xi32>
    %cst_19 = arith.constant 0.000000e+00 : f32
    %52 = vector.broadcast %cst_19 : f32 to vector<8x64xf32>
    %53 = arith.select %51, %49, %52 : vector<8x64xi1>, vector<8x64xf32>
    %54 = vector.extract_strided_slice %27 {offsets = [0, 0], sizes = [1, 64], strides = [1, 1]} : vector<4x64xf32> to vector<1x64xf32>
    %55 = vector.broadcast %54 : vector<1x64xf32> to vector<8x64xf32>
    %56 = arith.mulf %53, %55 : vector<8x64xf32>
    %57 = arith.addf %48, %56 : vector<8x64xf32>
    %58 = vector.broadcast %6 : vector<1x64xf32> to vector<8x64xf32>
    %59 = arith.addf %57, %58 : vector<8x64xf32>
    %60 = math.absf %59 : vector<8x64xf32>
    %cst_20 = arith.constant 0.000000e+00 : f32
    %61 = vector.broadcast %cst_20 : f32 to vector<8x64xf32>
    %62 = arith.subf %61, %60 : vector<8x64xf32>
    %63 = math.exp %62 : vector<8x64xf32>
    %cst_21 = arith.constant 1.000000e+00 : f32
    %64 = vector.broadcast %cst_21 : f32 to vector<8x64xf32>
    %65 = arith.addf %64, %63 : vector<8x64xf32>
    %66 = tpu.reciprocal %65 {approx = true} : vector<8x64xf32> -> vector<8x64xf32>
    %cst_22 = arith.constant 0.000000e+00 : f32
    %67 = vector.broadcast %cst_22 : f32 to vector<8x64xf32>
    %68 = arith.cmpf oge, %59, %67 : vector<8x64xf32>
    %69 = arith.mulf %63, %66 : vector<8x64xf32>
    %70 = arith.select %68, %66, %69 : vector<8x64xi1>, vector<8x64xf32>
    %71 = arith.mulf %59, %70 : vector<8x64xf32>
    %c0_23 = arith.constant 0 : index
    %c0_24 = arith.constant 0 : index
    %c0_25 = arith.constant 0 : index
    %72 = vector.load %arg5[%c0_23, %c0_24, %c0_25] : memref<2x64x128xf32, #tpu.memory_space<vmem>>, vector<1x64x128xf32>
    %73 = vector.shape_cast %72 : vector<1x64x128xf32> to vector<64x128xf32>
    %cst_26 = arith.constant dense<0.000000e+00> : vector<8x128xf32>
    %74 = tpu.matmul %71, %73, %cst_26 {dimension_numbers = #tpu.dot_dimension_numbers<[1], [0], [0], [1], [0, 0, 1, 1], [], []>} : vector<8x64xf32>, vector<64x128xf32>, vector<8x128xf32> -> vector<8x128xf32>
    %75 = vector.extract_strided_slice %74 {offsets = [0, 0], sizes = [8, 64], strides = [1, 1]} : vector<8x128xf32> to vector<8x64xf32>
    %76 = vector.broadcast %7 : vector<1x64xf32> to vector<8x64xf32>
    %77 = arith.addf %75, %76 : vector<8x64xf32>
    %cst_27 = arith.constant 0.000000e+00 : f32
    %78 = vector.broadcast %cst_27 : f32 to vector<8x64xf32>
    %79 = arith.maximumf %77, %78 : vector<8x64xf32>
    %80 = math.absf %77 : vector<8x64xf32>
    %cst_28 = arith.constant 0.000000e+00 : f32
    %81 = vector.broadcast %cst_28 : f32 to vector<8x64xf32>
    %82 = arith.subf %81, %80 : vector<8x64xf32>
    %83 = math.exp %82 : vector<8x64xf32>
    %84 = math.log1p %83 : vector<8x64xf32>
    %85 = arith.addf %79, %84 : vector<8x64xf32>
    %86 = vector.extract_strided_slice %74 {offsets = [0, 64], sizes = [8, 16], strides = [1, 1]} : vector<8x128xf32> to vector<8x16xf32>
    %87 = vector.extract_strided_slice %74 {offsets = [0, 80], sizes = [8, 16], strides = [1, 1]} : vector<8x128xf32> to vector<8x16xf32>
    %88 = tpu.transpose %87, [1, 0] : vector<8x16xf32> -> vector<16x8xf32>
    %c0_29 = arith.constant 0 : index
    %c0_30 = arith.constant 0 : index
    %c0_31 = arith.constant 0 : index
    %89 = vector.load %arg6[%c0_29, %c0_30, %c0_31] : memref<2x16x64xf32, #tpu.memory_space<vmem>>, vector<1x16x64xf32>
    %90 = vector.shape_cast %89 : vector<1x16x64xf32> to vector<16x64xf32>
    %91 = arith.mulf %85, %71 : vector<8x64xf32>
    %92 = vector.shape_cast %85 : vector<8x64xf32> to vector<8x1x64xf32>
    %93 = vector.shape_cast %90 : vector<16x64xf32> to vector<1x16x64xf32>
    %94 = vector.broadcast %92 : vector<8x1x64xf32> to vector<8x16x64xf32>
    %95 = vector.broadcast %93 : vector<1x16x64xf32> to vector<8x16x64xf32>
    %96 = arith.mulf %94, %95 : vector<8x16x64xf32>
    %97 = math.exp %96 : vector<8x16x64xf32>
    %98 = vector.shape_cast %86 : vector<8x16xf32> to vector<8x16x1xf32>
    %99 = vector.shape_cast %91 : vector<8x64xf32> to vector<8x1x64xf32>
    %100 = vector.broadcast %98 : vector<8x16x1xf32> to vector<8x16x64xf32>
    %101 = vector.broadcast %99 : vector<8x1x64xf32> to vector<8x16x64xf32>
    %102 = arith.mulf %100, %101 : vector<8x16x64xf32>
    %cst_32 = arith.constant 0.000000e+00 : f32
    %103 = vector.broadcast %cst_32 : f32 to vector<16x64xf32>
    %104 = vector.extract_strided_slice %97 {offsets = [0, 0, 0], sizes = [1, 16, 64], strides = [1, 1, 1]} : vector<8x16x64xf32> to vector<1x16x64xf32>
    %105 = vector.shape_cast %104 : vector<1x16x64xf32> to vector<16x64xf32>
    %106 = arith.mulf %105, %103 : vector<16x64xf32>
    %107 = vector.extract_strided_slice %102 {offsets = [0, 0, 0], sizes = [1, 16, 64], strides = [1, 1, 1]} : vector<8x16x64xf32> to vector<1x16x64xf32>
    %108 = vector.shape_cast %107 : vector<1x16x64xf32> to vector<16x64xf32>
    %109 = arith.addf %106, %108 : vector<16x64xf32>
    %110 = vector.extract_strided_slice %88 {offsets = [0, 0], sizes = [16, 1], strides = [1, 1]} : vector<16x8xf32> to vector<16x1xf32>
    %111 = vector.broadcast %110 : vector<16x1xf32> to vector<16x64xf32>
    %112 = arith.mulf %109, %111 : vector<16x64xf32>
    %cst_33 = arith.constant dense<0.000000e+00> : vector<64xf32>
    %113 = vector.multi_reduction <add>, %112, %cst_33 [0] : vector<16x64xf32> to vector<64xf32>
    %114 = vector.shape_cast %113 : vector<64xf32> to vector<1x64xf32>
    %115 = vector.extract_strided_slice %97 {offsets = [1, 0, 0], sizes = [1, 16, 64], strides = [1, 1, 1]} : vector<8x16x64xf32> to vector<1x16x64xf32>
    %116 = vector.shape_cast %115 : vector<1x16x64xf32> to vector<16x64xf32>
    %117 = arith.mulf %116, %109 : vector<16x64xf32>
    %118 = vector.extract_strided_slice %102 {offsets = [1, 0, 0], sizes = [1, 16, 64], strides = [1, 1, 1]} : vector<8x16x64xf32> to vector<1x16x64xf32>
    %119 = vector.shape_cast %118 : vector<1x16x64xf32> to vector<16x64xf32>
    %120 = arith.addf %117, %119 : vector<16x64xf32>
    %121 = vector.extract_strided_slice %88 {offsets = [0, 1], sizes = [16, 1], strides = [1, 1]} : vector<16x8xf32> to vector<16x1xf32>
    %122 = vector.broadcast %121 : vector<16x1xf32> to vector<16x64xf32>
    %123 = arith.mulf %120, %122 : vector<16x64xf32>
    %cst_34 = arith.constant dense<0.000000e+00> : vector<64xf32>
    %124 = vector.multi_reduction <add>, %123, %cst_34 [0] : vector<16x64xf32> to vector<64xf32>
    %125 = vector.shape_cast %124 : vector<64xf32> to vector<1x64xf32>
    %126 = vector.extract_strided_slice %97 {offsets = [2, 0, 0], sizes = [1, 16, 64], strides = [1, 1, 1]} : vector<8x16x64xf32> to vector<1x16x64xf32>
    %127 = vector.shape_cast %126 : vector<1x16x64xf32> to vector<16x64xf32>
    %128 = arith.mulf %127, %120 : vector<16x64xf32>
    %129 = vector.extract_strided_slice %102 {offsets = [2, 0, 0], sizes = [1, 16, 64], strides = [1, 1, 1]} : vector<8x16x64xf32> to vector<1x16x64xf32>
    %130 = vector.shape_cast %129 : vector<1x16x64xf32> to vector<16x64xf32>
    %131 = arith.addf %128, %130 : vector<16x64xf32>
    %132 = vector.extract_strided_slice %88 {offsets = [0, 2], sizes = [16, 1], strides = [1, 1]} : vector<16x8xf32> to vector<16x1xf32>
    %133 = vector.broadcast %132 : vector<16x1xf32> to vector<16x64xf32>
    %134 = arith.mulf %131, %133 : vector<16x64xf32>
    %cst_35 = arith.constant dense<0.000000e+00> : vector<64xf32>
    %135 = vector.multi_reduction <add>, %134, %cst_35 [0] : vector<16x64xf32> to vector<64xf32>
    %136 = vector.shape_cast %135 : vector<64xf32> to vector<1x64xf32>
    %137 = vector.extract_strided_slice %97 {offsets = [3, 0, 0], sizes = [1, 16, 64], strides = [1, 1, 1]} : vector<8x16x64xf32> to vector<1x16x64xf32>
    %138 = vector.shape_cast %137 : vector<1x16x64xf32> to vector<16x64xf32>
    %139 = arith.mulf %138, %131 : vector<16x64xf32>
    %140 = vector.extract_strided_slice %102 {offsets = [3, 0, 0], sizes = [1, 16, 64], strides = [1, 1, 1]} : vector<8x16x64xf32> to vector<1x16x64xf32>
    %141 = vector.shape_cast %140 : vector<1x16x64xf32> to vector<16x64xf32>
    %142 = arith.addf %139, %141 : vector<16x64xf32>
    %143 = vector.extract_strided_slice %88 {offsets = [0, 3], sizes = [16, 1], strides = [1, 1]} : vector<16x8xf32> to vector<16x1xf32>
    %144 = vector.broadcast %143 : vector<16x1xf32> to vector<16x64xf32>
    %145 = arith.mulf %142, %144 : vector<16x64xf32>
    %cst_36 = arith.constant dense<0.000000e+00> : vector<64xf32>
    %146 = vector.multi_reduction <add>, %145, %cst_36 [0] : vector<16x64xf32> to vector<64xf32>
    %147 = vector.shape_cast %146 : vector<64xf32> to vector<1x64xf32>
    %148 = vector.extract_strided_slice %97 {offsets = [4, 0, 0], sizes = [1, 16, 64], strides = [1, 1, 1]} : vector<8x16x64xf32> to vector<1x16x64xf32>
    %149 = vector.shape_cast %148 : vector<1x16x64xf32> to vector<16x64xf32>
    %150 = arith.mulf %149, %142 : vector<16x64xf32>
    %151 = vector.extract_strided_slice %102 {offsets = [4, 0, 0], sizes = [1, 16, 64], strides = [1, 1, 1]} : vector<8x16x64xf32> to vector<1x16x64xf32>
    %152 = vector.shape_cast %151 : vector<1x16x64xf32> to vector<16x64xf32>
    %153 = arith.addf %150, %152 : vector<16x64xf32>
    %154 = vector.extract_strided_slice %88 {offsets = [0, 4], sizes = [16, 1], strides = [1, 1]} : vector<16x8xf32> to vector<16x1xf32>
    %155 = vector.broadcast %154 : vector<16x1xf32> to vector<16x64xf32>
    %156 = arith.mulf %153, %155 : vector<16x64xf32>
    %cst_37 = arith.constant dense<0.000000e+00> : vector<64xf32>
    %157 = vector.multi_reduction <add>, %156, %cst_37 [0] : vector<16x64xf32> to vector<64xf32>
    %158 = vector.shape_cast %157 : vector<64xf32> to vector<1x64xf32>
    %159 = vector.extract_strided_slice %97 {offsets = [5, 0, 0], sizes = [1, 16, 64], strides = [1, 1, 1]} : vector<8x16x64xf32> to vector<1x16x64xf32>
    %160 = vector.shape_cast %159 : vector<1x16x64xf32> to vector<16x64xf32>
    %161 = arith.mulf %160, %153 : vector<16x64xf32>
    %162 = vector.extract_strided_slice %102 {offsets = [5, 0, 0], sizes = [1, 16, 64], strides = [1, 1, 1]} : vector<8x16x64xf32> to vector<1x16x64xf32>
    %163 = vector.shape_cast %162 : vector<1x16x64xf32> to vector<16x64xf32>
    %164 = arith.addf %161, %163 : vector<16x64xf32>
    %165 = vector.extract_strided_slice %88 {offsets = [0, 5], sizes = [16, 1], strides = [1, 1]} : vector<16x8xf32> to vector<16x1xf32>
    %166 = vector.broadcast %165 : vector<16x1xf32> to vector<16x64xf32>
    %167 = arith.mulf %164, %166 : vector<16x64xf32>
    %cst_38 = arith.constant dense<0.000000e+00> : vector<64xf32>
    %168 = vector.multi_reduction <add>, %167, %cst_38 [0] : vector<16x64xf32> to vector<64xf32>
    %169 = vector.shape_cast %168 : vector<64xf32> to vector<1x64xf32>
    %170 = vector.extract_strided_slice %97 {offsets = [6, 0, 0], sizes = [1, 16, 64], strides = [1, 1, 1]} : vector<8x16x64xf32> to vector<1x16x64xf32>
    %171 = vector.shape_cast %170 : vector<1x16x64xf32> to vector<16x64xf32>
    %172 = arith.mulf %171, %164 : vector<16x64xf32>
    %173 = vector.extract_strided_slice %102 {offsets = [6, 0, 0], sizes = [1, 16, 64], strides = [1, 1, 1]} : vector<8x16x64xf32> to vector<1x16x64xf32>
    %174 = vector.shape_cast %173 : vector<1x16x64xf32> to vector<16x64xf32>
    %175 = arith.addf %172, %174 : vector<16x64xf32>
    %176 = vector.extract_strided_slice %88 {offsets = [0, 6], sizes = [16, 1], strides = [1, 1]} : vector<16x8xf32> to vector<16x1xf32>
    %177 = vector.broadcast %176 : vector<16x1xf32> to vector<16x64xf32>
    %178 = arith.mulf %175, %177 : vector<16x64xf32>
    %cst_39 = arith.constant dense<0.000000e+00> : vector<64xf32>
    %179 = vector.multi_reduction <add>, %178, %cst_39 [0] : vector<16x64xf32> to vector<64xf32>
    %180 = vector.shape_cast %179 : vector<64xf32> to vector<1x64xf32>
    %181 = vector.extract_strided_slice %97 {offsets = [7, 0, 0], sizes = [1, 16, 64], strides = [1, 1, 1]} : vector<8x16x64xf32> to vector<1x16x64xf32>
    %182 = vector.shape_cast %181 : vector<1x16x64xf32> to vector<16x64xf32>
    %183 = arith.mulf %182, %175 : vector<16x64xf32>
    %184 = vector.extract_strided_slice %102 {offsets = [7, 0, 0], sizes = [1, 16, 64], strides = [1, 1, 1]} : vector<8x16x64xf32> to vector<1x16x64xf32>
    %185 = vector.shape_cast %184 : vector<1x16x64xf32> to vector<16x64xf32>
    %186 = arith.addf %183, %185 : vector<16x64xf32>
    %187 = vector.extract_strided_slice %88 {offsets = [0, 7], sizes = [16, 1], strides = [1, 1]} : vector<16x8xf32> to vector<16x1xf32>
    %188 = vector.broadcast %187 : vector<16x1xf32> to vector<16x64xf32>
    %189 = arith.mulf %186, %188 : vector<16x64xf32>
    %cst_40 = arith.constant dense<0.000000e+00> : vector<64xf32>
    %190 = vector.multi_reduction <add>, %189, %cst_40 [0] : vector<16x64xf32> to vector<64xf32>
    %191 = vector.shape_cast %190 : vector<64xf32> to vector<1x64xf32>
    %192 = tpu.concatenate %114, %125, %136, %147, %158, %169, %180, %191 in 0 : vector<1x64xf32>, vector<1x64xf32>, vector<1x64xf32>, vector<1x64xf32>, vector<1x64xf32>, vector<1x64xf32>, vector<1x64xf32>, vector<1x64xf32> -> vector<8x64xf32>
    %193 = vector.broadcast %8 : vector<1x64xf32> to vector<8x64xf32>
    %194 = arith.mulf %71, %193 : vector<8x64xf32>
    %195 = arith.addf %192, %194 : vector<8x64xf32>
    %196 = math.absf %25 : vector<8x64xf32>
    %cst_41 = arith.constant 0.000000e+00 : f32
    %197 = vector.broadcast %cst_41 : f32 to vector<8x64xf32>
    %198 = arith.subf %197, %196 : vector<8x64xf32>
    %199 = math.exp %198 : vector<8x64xf32>
    %cst_42 = arith.constant 1.000000e+00 : f32
    %200 = vector.broadcast %cst_42 : f32 to vector<8x64xf32>
    %201 = arith.addf %200, %199 : vector<8x64xf32>
    %202 = tpu.reciprocal %201 {approx = true} : vector<8x64xf32> -> vector<8x64xf32>
    %cst_43 = arith.constant 0.000000e+00 : f32
    %203 = vector.broadcast %cst_43 : f32 to vector<8x64xf32>
    %204 = arith.cmpf oge, %25, %203 : vector<8x64xf32>
    %205 = arith.mulf %199, %202 : vector<8x64xf32>
    %206 = arith.select %204, %202, %205 : vector<8x64xi1>, vector<8x64xf32>
    %207 = arith.mulf %25, %206 : vector<8x64xf32>
    %208 = arith.mulf %195, %207 : vector<8x64xf32>
    %c0_44 = arith.constant 0 : index
    %c0_45 = arith.constant 0 : index
    %c0_46 = arith.constant 0 : index
    %209 = vector.load %arg7[%c0_44, %c0_45, %c0_46] : memref<2x64x32xf32, #tpu.memory_space<vmem>>, vector<1x64x32xf32>
    %210 = vector.shape_cast %209 : vector<1x64x32xf32> to vector<64x32xf32>
    %cst_47 = arith.constant dense<0.000000e+00> : vector<8x32xf32>
    %211 = tpu.matmul %208, %210, %cst_47 {dimension_numbers = #tpu.dot_dimension_numbers<[1], [0], [0], [1], [0, 0, 1, 1], [], []>} : vector<8x64xf32>, vector<64x32xf32>, vector<8x32xf32> -> vector<8x32xf32>
    %212 = arith.addf %211, %1 : vector<8x32xf32>
    %c1 = arith.constant 1 : index
    %c0_48 = arith.constant 0 : index
    %c0_49 = arith.constant 0 : index
    %213 = vector.load %arg2[%c1, %c0_48, %c0_49] : memref<2x4x64xf32, #tpu.memory_space<vmem>>, vector<1x4x64xf32>
    %214 = vector.shape_cast %213 : vector<1x4x64xf32> to vector<4x64xf32>
    %215 = vector.extract_strided_slice %214 {offsets = [0, 0], sizes = [1, 32], strides = [1, 1]} : vector<4x64xf32> to vector<1x32xf32>
    %216 = vector.extract_strided_slice %214 {offsets = [1, 0], sizes = [1, 64], strides = [1, 1]} : vector<4x64xf32> to vector<1x64xf32>
    %217 = vector.extract_strided_slice %214 {offsets = [2, 0], sizes = [1, 64], strides = [1, 1]} : vector<4x64xf32> to vector<1x64xf32>
    %218 = vector.extract_strided_slice %214 {offsets = [3, 0], sizes = [1, 64], strides = [1, 1]} : vector<4x64xf32> to vector<1x64xf32>
    %219 = arith.mulf %212, %212 : vector<8x32xf32>
    %cst_50 = arith.constant dense<0.000000e+00> : vector<8xf32>
    %220 = vector.multi_reduction <add>, %219, %cst_50 [1] : vector<8x32xf32> to vector<8xf32>
    %221 = vector.shape_cast %220 : vector<8xf32> to vector<8x1xf32>
    %cst_51 = arith.constant 3.200000e+01 : f32
    %222 = vector.broadcast %cst_51 : f32 to vector<8x1xf32>
    %223 = arith.divf %221, %222 : vector<8x1xf32>
    %cst_52 = arith.constant 9.99999974E-6 : f32
    %224 = vector.broadcast %cst_52 : f32 to vector<8x1xf32>
    %225 = arith.addf %223, %224 : vector<8x1xf32>
    %226 = math.rsqrt %225 : vector<8x1xf32>
    %227 = vector.broadcast %226 : vector<8x1xf32> to vector<8x32xf32>
    %228 = arith.mulf %212, %227 : vector<8x32xf32>
    %229 = vector.broadcast %215 : vector<1x32xf32> to vector<8x32xf32>
    %230 = arith.mulf %228, %229 : vector<8x32xf32>
    %c1_53 = arith.constant 1 : index
    %c0_54 = arith.constant 0 : index
    %c0_55 = arith.constant 0 : index
    %231 = vector.load %arg3[%c1_53, %c0_54, %c0_55] : memref<2x32x128xf32, #tpu.memory_space<vmem>>, vector<1x32x128xf32>
    %232 = vector.shape_cast %231 : vector<1x32x128xf32> to vector<32x128xf32>
    %cst_56 = arith.constant dense<0.000000e+00> : vector<8x128xf32>
    %233 = tpu.matmul %230, %232, %cst_56 {dimension_numbers = #tpu.dot_dimension_numbers<[1], [0], [0], [1], [0, 0, 1, 1], [], []>} : vector<8x32xf32>, vector<32x128xf32>, vector<8x128xf32> -> vector<8x128xf32>
    %234 = vector.extract_strided_slice %233 {offsets = [0, 0], sizes = [8, 64], strides = [1, 1]} : vector<8x128xf32> to vector<8x64xf32>
    %235 = vector.extract_strided_slice %233 {offsets = [0, 64], sizes = [8, 64], strides = [1, 1]} : vector<8x128xf32> to vector<8x64xf32>
    %c1_57 = arith.constant 1 : index
    %c0_58 = arith.constant 0 : index
    %c0_59 = arith.constant 0 : index
    %236 = vector.load %arg4[%c1_57, %c0_58, %c0_59] : memref<2x4x64xf32, #tpu.memory_space<vmem>>, vector<1x4x64xf32>
    %237 = vector.shape_cast %236 : vector<1x4x64xf32> to vector<4x64xf32>
    %238 = vector.extract_strided_slice %237 {offsets = [3, 0], sizes = [1, 64], strides = [1, 1]} : vector<4x64xf32> to vector<1x64xf32>
    %239 = vector.broadcast %238 : vector<1x64xf32> to vector<8x64xf32>
    %240 = arith.mulf %234, %239 : vector<8x64xf32>
    %c1_i32_60 = arith.constant 1 : i32
    %241 = tpu.dynamic_rotate %234 by %c1_i32_60 dim 0 : vector<8x64xf32>, i32 -> vector<8x64xf32>
    %c1_i32_61 = arith.constant 1 : i32
    %242 = vector.broadcast %c1_i32_61 : i32 to vector<8x64xi32>
    %243 = arith.cmpi sge, %2, %242 : vector<8x64xi32>
    %cst_62 = arith.constant 0.000000e+00 : f32
    %244 = vector.broadcast %cst_62 : f32 to vector<8x64xf32>
    %245 = arith.select %243, %241, %244 : vector<8x64xi1>, vector<8x64xf32>
    %246 = vector.extract_strided_slice %237 {offsets = [2, 0], sizes = [1, 64], strides = [1, 1]} : vector<4x64xf32> to vector<1x64xf32>
    %247 = vector.broadcast %246 : vector<1x64xf32> to vector<8x64xf32>
    %248 = arith.mulf %245, %247 : vector<8x64xf32>
    %249 = arith.addf %240, %248 : vector<8x64xf32>
    %c2_i32_63 = arith.constant 2 : i32
    %250 = tpu.dynamic_rotate %234 by %c2_i32_63 dim 0 : vector<8x64xf32>, i32 -> vector<8x64xf32>
    %c2_i32_64 = arith.constant 2 : i32
    %251 = vector.broadcast %c2_i32_64 : i32 to vector<8x64xi32>
    %252 = arith.cmpi sge, %2, %251 : vector<8x64xi32>
    %cst_65 = arith.constant 0.000000e+00 : f32
    %253 = vector.broadcast %cst_65 : f32 to vector<8x64xf32>
    %254 = arith.select %252, %250, %253 : vector<8x64xi1>, vector<8x64xf32>
    %255 = vector.extract_strided_slice %237 {offsets = [1, 0], sizes = [1, 64], strides = [1, 1]} : vector<4x64xf32> to vector<1x64xf32>
    %256 = vector.broadcast %255 : vector<1x64xf32> to vector<8x64xf32>
    %257 = arith.mulf %254, %256 : vector<8x64xf32>
    %258 = arith.addf %249, %257 : vector<8x64xf32>
    %c3_i32_66 = arith.constant 3 : i32
    %259 = tpu.dynamic_rotate %234 by %c3_i32_66 dim 0 : vector<8x64xf32>, i32 -> vector<8x64xf32>
    %c3_i32_67 = arith.constant 3 : i32
    %260 = vector.broadcast %c3_i32_67 : i32 to vector<8x64xi32>
    %261 = arith.cmpi sge, %2, %260 : vector<8x64xi32>
    %cst_68 = arith.constant 0.000000e+00 : f32
    %262 = vector.broadcast %cst_68 : f32 to vector<8x64xf32>
    %263 = arith.select %261, %259, %262 : vector<8x64xi1>, vector<8x64xf32>
    %264 = vector.extract_strided_slice %237 {offsets = [0, 0], sizes = [1, 64], strides = [1, 1]} : vector<4x64xf32> to vector<1x64xf32>
    %265 = vector.broadcast %264 : vector<1x64xf32> to vector<8x64xf32>
    %266 = arith.mulf %263, %265 : vector<8x64xf32>
    %267 = arith.addf %258, %266 : vector<8x64xf32>
    %268 = vector.broadcast %216 : vector<1x64xf32> to vector<8x64xf32>
    %269 = arith.addf %267, %268 : vector<8x64xf32>
    %270 = math.absf %269 : vector<8x64xf32>
    %cst_69 = arith.constant 0.000000e+00 : f32
    %271 = vector.broadcast %cst_69 : f32 to vector<8x64xf32>
    %272 = arith.subf %271, %270 : vector<8x64xf32>
    %273 = math.exp %272 : vector<8x64xf32>
    %cst_70 = arith.constant 1.000000e+00 : f32
    %274 = vector.broadcast %cst_70 : f32 to vector<8x64xf32>
    %275 = arith.addf %274, %273 : vector<8x64xf32>
    %276 = tpu.reciprocal %275 {approx = true} : vector<8x64xf32> -> vector<8x64xf32>
    %cst_71 = arith.constant 0.000000e+00 : f32
    %277 = vector.broadcast %cst_71 : f32 to vector<8x64xf32>
    %278 = arith.cmpf oge, %269, %277 : vector<8x64xf32>
    %279 = arith.mulf %273, %276 : vector<8x64xf32>
    %280 = arith.select %278, %276, %279 : vector<8x64xi1>, vector<8x64xf32>
    %281 = arith.mulf %269, %280 : vector<8x64xf32>
    %c1_72 = arith.constant 1 : index
    %c0_73 = arith.constant 0 : index
    %c0_74 = arith.constant 0 : index
    %282 = vector.load %arg5[%c1_72, %c0_73, %c0_74] : memref<2x64x128xf32, #tpu.memory_space<vmem>>, vector<1x64x128xf32>
    %283 = vector.shape_cast %282 : vector<1x64x128xf32> to vector<64x128xf32>
    %cst_75 = arith.constant dense<0.000000e+00> : vector<8x128xf32>
    %284 = tpu.matmul %281, %283, %cst_75 {dimension_numbers = #tpu.dot_dimension_numbers<[1], [0], [0], [1], [0, 0, 1, 1], [], []>} : vector<8x64xf32>, vector<64x128xf32>, vector<8x128xf32> -> vector<8x128xf32>
    %285 = vector.extract_strided_slice %284 {offsets = [0, 0], sizes = [8, 64], strides = [1, 1]} : vector<8x128xf32> to vector<8x64xf32>
    %286 = vector.broadcast %217 : vector<1x64xf32> to vector<8x64xf32>
    %287 = arith.addf %285, %286 : vector<8x64xf32>
    %cst_76 = arith.constant 0.000000e+00 : f32
    %288 = vector.broadcast %cst_76 : f32 to vector<8x64xf32>
    %289 = arith.maximumf %287, %288 : vector<8x64xf32>
    %290 = math.absf %287 : vector<8x64xf32>
    %cst_77 = arith.constant 0.000000e+00 : f32
    %291 = vector.broadcast %cst_77 : f32 to vector<8x64xf32>
    %292 = arith.subf %291, %290 : vector<8x64xf32>
    %293 = math.exp %292 : vector<8x64xf32>
    %294 = math.log1p %293 : vector<8x64xf32>
    %295 = arith.addf %289, %294 : vector<8x64xf32>
    %296 = vector.extract_strided_slice %284 {offsets = [0, 64], sizes = [8, 16], strides = [1, 1]} : vector<8x128xf32> to vector<8x16xf32>
    %297 = vector.extract_strided_slice %284 {offsets = [0, 80], sizes = [8, 16], strides = [1, 1]} : vector<8x128xf32> to vector<8x16xf32>
    %298 = tpu.transpose %297, [1, 0] : vector<8x16xf32> -> vector<16x8xf32>
    %c1_78 = arith.constant 1 : index
    %c0_79 = arith.constant 0 : index
    %c0_80 = arith.constant 0 : index
    %299 = vector.load %arg6[%c1_78, %c0_79, %c0_80] : memref<2x16x64xf32, #tpu.memory_space<vmem>>, vector<1x16x64xf32>
    %300 = vector.shape_cast %299 : vector<1x16x64xf32> to vector<16x64xf32>
    %301 = arith.mulf %295, %281 : vector<8x64xf32>
    %302 = vector.shape_cast %295 : vector<8x64xf32> to vector<8x1x64xf32>
    %303 = vector.shape_cast %300 : vector<16x64xf32> to vector<1x16x64xf32>
    %304 = vector.broadcast %302 : vector<8x1x64xf32> to vector<8x16x64xf32>
    %305 = vector.broadcast %303 : vector<1x16x64xf32> to vector<8x16x64xf32>
    %306 = arith.mulf %304, %305 : vector<8x16x64xf32>
    %307 = math.exp %306 : vector<8x16x64xf32>
    %308 = vector.shape_cast %296 : vector<8x16xf32> to vector<8x16x1xf32>
    %309 = vector.shape_cast %301 : vector<8x64xf32> to vector<8x1x64xf32>
    %310 = vector.broadcast %308 : vector<8x16x1xf32> to vector<8x16x64xf32>
    %311 = vector.broadcast %309 : vector<8x1x64xf32> to vector<8x16x64xf32>
    %312 = arith.mulf %310, %311 : vector<8x16x64xf32>
    %cst_81 = arith.constant 0.000000e+00 : f32
    %313 = vector.broadcast %cst_81 : f32 to vector<16x64xf32>
    %314 = vector.extract_strided_slice %307 {offsets = [0, 0, 0], sizes = [1, 16, 64], strides = [1, 1, 1]} : vector<8x16x64xf32> to vector<1x16x64xf32>
    %315 = vector.shape_cast %314 : vector<1x16x64xf32> to vector<16x64xf32>
    %316 = arith.mulf %315, %313 : vector<16x64xf32>
    %317 = vector.extract_strided_slice %312 {offsets = [0, 0, 0], sizes = [1, 16, 64], strides = [1, 1, 1]} : vector<8x16x64xf32> to vector<1x16x64xf32>
    %318 = vector.shape_cast %317 : vector<1x16x64xf32> to vector<16x64xf32>
    %319 = arith.addf %316, %318 : vector<16x64xf32>
    %320 = vector.extract_strided_slice %298 {offsets = [0, 0], sizes = [16, 1], strides = [1, 1]} : vector<16x8xf32> to vector<16x1xf32>
    %321 = vector.broadcast %320 : vector<16x1xf32> to vector<16x64xf32>
    %322 = arith.mulf %319, %321 : vector<16x64xf32>
    %cst_82 = arith.constant dense<0.000000e+00> : vector<64xf32>
    %323 = vector.multi_reduction <add>, %322, %cst_82 [0] : vector<16x64xf32> to vector<64xf32>
    %324 = vector.shape_cast %323 : vector<64xf32> to vector<1x64xf32>
    %325 = vector.extract_strided_slice %307 {offsets = [1, 0, 0], sizes = [1, 16, 64], strides = [1, 1, 1]} : vector<8x16x64xf32> to vector<1x16x64xf32>
    %326 = vector.shape_cast %325 : vector<1x16x64xf32> to vector<16x64xf32>
    %327 = arith.mulf %326, %319 : vector<16x64xf32>
    %328 = vector.extract_strided_slice %312 {offsets = [1, 0, 0], sizes = [1, 16, 64], strides = [1, 1, 1]} : vector<8x16x64xf32> to vector<1x16x64xf32>
    %329 = vector.shape_cast %328 : vector<1x16x64xf32> to vector<16x64xf32>
    %330 = arith.addf %327, %329 : vector<16x64xf32>
    %331 = vector.extract_strided_slice %298 {offsets = [0, 1], sizes = [16, 1], strides = [1, 1]} : vector<16x8xf32> to vector<16x1xf32>
    %332 = vector.broadcast %331 : vector<16x1xf32> to vector<16x64xf32>
    %333 = arith.mulf %330, %332 : vector<16x64xf32>
    %cst_83 = arith.constant dense<0.000000e+00> : vector<64xf32>
    %334 = vector.multi_reduction <add>, %333, %cst_83 [0] : vector<16x64xf32> to vector<64xf32>
    %335 = vector.shape_cast %334 : vector<64xf32> to vector<1x64xf32>
    %336 = vector.extract_strided_slice %307 {offsets = [2, 0, 0], sizes = [1, 16, 64], strides = [1, 1, 1]} : vector<8x16x64xf32> to vector<1x16x64xf32>
    %337 = vector.shape_cast %336 : vector<1x16x64xf32> to vector<16x64xf32>
    %338 = arith.mulf %337, %330 : vector<16x64xf32>
    %339 = vector.extract_strided_slice %312 {offsets = [2, 0, 0], sizes = [1, 16, 64], strides = [1, 1, 1]} : vector<8x16x64xf32> to vector<1x16x64xf32>
    %340 = vector.shape_cast %339 : vector<1x16x64xf32> to vector<16x64xf32>
    %341 = arith.addf %338, %340 : vector<16x64xf32>
    %342 = vector.extract_strided_slice %298 {offsets = [0, 2], sizes = [16, 1], strides = [1, 1]} : vector<16x8xf32> to vector<16x1xf32>
    %343 = vector.broadcast %342 : vector<16x1xf32> to vector<16x64xf32>
    %344 = arith.mulf %341, %343 : vector<16x64xf32>
    %cst_84 = arith.constant dense<0.000000e+00> : vector<64xf32>
    %345 = vector.multi_reduction <add>, %344, %cst_84 [0] : vector<16x64xf32> to vector<64xf32>
    %346 = vector.shape_cast %345 : vector<64xf32> to vector<1x64xf32>
    %347 = vector.extract_strided_slice %307 {offsets = [3, 0, 0], sizes = [1, 16, 64], strides = [1, 1, 1]} : vector<8x16x64xf32> to vector<1x16x64xf32>
    %348 = vector.shape_cast %347 : vector<1x16x64xf32> to vector<16x64xf32>
    %349 = arith.mulf %348, %341 : vector<16x64xf32>
    %350 = vector.extract_strided_slice %312 {offsets = [3, 0, 0], sizes = [1, 16, 64], strides = [1, 1, 1]} : vector<8x16x64xf32> to vector<1x16x64xf32>
    %351 = vector.shape_cast %350 : vector<1x16x64xf32> to vector<16x64xf32>
    %352 = arith.addf %349, %351 : vector<16x64xf32>
    %353 = vector.extract_strided_slice %298 {offsets = [0, 3], sizes = [16, 1], strides = [1, 1]} : vector<16x8xf32> to vector<16x1xf32>
    %354 = vector.broadcast %353 : vector<16x1xf32> to vector<16x64xf32>
    %355 = arith.mulf %352, %354 : vector<16x64xf32>
    %cst_85 = arith.constant dense<0.000000e+00> : vector<64xf32>
    %356 = vector.multi_reduction <add>, %355, %cst_85 [0] : vector<16x64xf32> to vector<64xf32>
    %357 = vector.shape_cast %356 : vector<64xf32> to vector<1x64xf32>
    %358 = vector.extract_strided_slice %307 {offsets = [4, 0, 0], sizes = [1, 16, 64], strides = [1, 1, 1]} : vector<8x16x64xf32> to vector<1x16x64xf32>
    %359 = vector.shape_cast %358 : vector<1x16x64xf32> to vector<16x64xf32>
    %360 = arith.mulf %359, %352 : vector<16x64xf32>
    %361 = vector.extract_strided_slice %312 {offsets = [4, 0, 0], sizes = [1, 16, 64], strides = [1, 1, 1]} : vector<8x16x64xf32> to vector<1x16x64xf32>
    %362 = vector.shape_cast %361 : vector<1x16x64xf32> to vector<16x64xf32>
    %363 = arith.addf %360, %362 : vector<16x64xf32>
    %364 = vector.extract_strided_slice %298 {offsets = [0, 4], sizes = [16, 1], strides = [1, 1]} : vector<16x8xf32> to vector<16x1xf32>
    %365 = vector.broadcast %364 : vector<16x1xf32> to vector<16x64xf32>
    %366 = arith.mulf %363, %365 : vector<16x64xf32>
    %cst_86 = arith.constant dense<0.000000e+00> : vector<64xf32>
    %367 = vector.multi_reduction <add>, %366, %cst_86 [0] : vector<16x64xf32> to vector<64xf32>
    %368 = vector.shape_cast %367 : vector<64xf32> to vector<1x64xf32>
    %369 = vector.extract_strided_slice %307 {offsets = [5, 0, 0], sizes = [1, 16, 64], strides = [1, 1, 1]} : vector<8x16x64xf32> to vector<1x16x64xf32>
    %370 = vector.shape_cast %369 : vector<1x16x64xf32> to vector<16x64xf32>
    %371 = arith.mulf %370, %363 : vector<16x64xf32>
    %372 = vector.extract_strided_slice %312 {offsets = [5, 0, 0], sizes = [1, 16, 64], strides = [1, 1, 1]} : vector<8x16x64xf32> to vector<1x16x64xf32>
    %373 = vector.shape_cast %372 : vector<1x16x64xf32> to vector<16x64xf32>
    %374 = arith.addf %371, %373 : vector<16x64xf32>
    %375 = vector.extract_strided_slice %298 {offsets = [0, 5], sizes = [16, 1], strides = [1, 1]} : vector<16x8xf32> to vector<16x1xf32>
    %376 = vector.broadcast %375 : vector<16x1xf32> to vector<16x64xf32>
    %377 = arith.mulf %374, %376 : vector<16x64xf32>
    %cst_87 = arith.constant dense<0.000000e+00> : vector<64xf32>
    %378 = vector.multi_reduction <add>, %377, %cst_87 [0] : vector<16x64xf32> to vector<64xf32>
    %379 = vector.shape_cast %378 : vector<64xf32> to vector<1x64xf32>
    %380 = vector.extract_strided_slice %307 {offsets = [6, 0, 0], sizes = [1, 16, 64], strides = [1, 1, 1]} : vector<8x16x64xf32> to vector<1x16x64xf32>
    %381 = vector.shape_cast %380 : vector<1x16x64xf32> to vector<16x64xf32>
    %382 = arith.mulf %381, %374 : vector<16x64xf32>
    %383 = vector.extract_strided_slice %312 {offsets = [6, 0, 0], sizes = [1, 16, 64], strides = [1, 1, 1]} : vector<8x16x64xf32> to vector<1x16x64xf32>
    %384 = vector.shape_cast %383 : vector<1x16x64xf32> to vector<16x64xf32>
    %385 = arith.addf %382, %384 : vector<16x64xf32>
    %386 = vector.extract_strided_slice %298 {offsets = [0, 6], sizes = [16, 1], strides = [1, 1]} : vector<16x8xf32> to vector<16x1xf32>
    %387 = vector.broadcast %386 : vector<16x1xf32> to vector<16x64xf32>
    %388 = arith.mulf %385, %387 : vector<16x64xf32>
    %cst_88 = arith.constant dense<0.000000e+00> : vector<64xf32>
    %389 = vector.multi_reduction <add>, %388, %cst_88 [0] : vector<16x64xf32> to vector<64xf32>
    %390 = vector.shape_cast %389 : vector<64xf32> to vector<1x64xf32>
    %391 = vector.extract_strided_slice %307 {offsets = [7, 0, 0], sizes = [1, 16, 64], strides = [1, 1, 1]} : vector<8x16x64xf32> to vector<1x16x64xf32>
    %392 = vector.shape_cast %391 : vector<1x16x64xf32> to vector<16x64xf32>
    %393 = arith.mulf %392, %385 : vector<16x64xf32>
    %394 = vector.extract_strided_slice %312 {offsets = [7, 0, 0], sizes = [1, 16, 64], strides = [1, 1, 1]} : vector<8x16x64xf32> to vector<1x16x64xf32>
    %395 = vector.shape_cast %394 : vector<1x16x64xf32> to vector<16x64xf32>
    %396 = arith.addf %393, %395 : vector<16x64xf32>
    %397 = vector.extract_strided_slice %298 {offsets = [0, 7], sizes = [16, 1], strides = [1, 1]} : vector<16x8xf32> to vector<16x1xf32>
    %398 = vector.broadcast %397 : vector<16x1xf32> to vector<16x64xf32>
    %399 = arith.mulf %396, %398 : vector<16x64xf32>
    %cst_89 = arith.constant dense<0.000000e+00> : vector<64xf32>
    %400 = vector.multi_reduction <add>, %399, %cst_89 [0] : vector<16x64xf32> to vector<64xf32>
    %401 = vector.shape_cast %400 : vector<64xf32> to vector<1x64xf32>
    %402 = tpu.concatenate %324, %335, %346, %357, %368, %379, %390, %401 in 0 : vector<1x64xf32>, vector<1x64xf32>, vector<1x64xf32>, vector<1x64xf32>, vector<1x64xf32>, vector<1x64xf32>, vector<1x64xf32>, vector<1x64xf32> -> vector<8x64xf32>
    %403 = vector.broadcast %218 : vector<1x64xf32> to vector<8x64xf32>
    %404 = arith.mulf %281, %403 : vector<8x64xf32>
    %405 = arith.addf %402, %404 : vector<8x64xf32>
    %406 = math.absf %235 : vector<8x64xf32>
    %cst_90 = arith.constant 0.000000e+00 : f32
    %407 = vector.broadcast %cst_90 : f32 to vector<8x64xf32>
    %408 = arith.subf %407, %406 : vector<8x64xf32>
    %409 = math.exp %408 : vector<8x64xf32>
    %cst_91 = arith.constant 1.000000e+00 : f32
    %410 = vector.broadcast %cst_91 : f32 to vector<8x64xf32>
    %411 = arith.addf %410, %409 : vector<8x64xf32>
    %412 = tpu.reciprocal %411 {approx = true} : vector<8x64xf32> -> vector<8x64xf32>
    %cst_92 = arith.constant 0.000000e+00 : f32
    %413 = vector.broadcast %cst_92 : f32 to vector<8x64xf32>
    %414 = arith.cmpf oge, %235, %413 : vector<8x64xf32>
    %415 = arith.mulf %409, %412 : vector<8x64xf32>
    %416 = arith.select %414, %412, %415 : vector<8x64xi1>, vector<8x64xf32>
    %417 = arith.mulf %235, %416 : vector<8x64xf32>
    %418 = arith.mulf %405, %417 : vector<8x64xf32>
    %c1_93 = arith.constant 1 : index
    %c0_94 = arith.constant 0 : index
    %c0_95 = arith.constant 0 : index
    %419 = vector.load %arg7[%c1_93, %c0_94, %c0_95] : memref<2x64x32xf32, #tpu.memory_space<vmem>>, vector<1x64x32xf32>
    %420 = vector.shape_cast %419 : vector<1x64x32xf32> to vector<64x32xf32>
    %cst_96 = arith.constant dense<0.000000e+00> : vector<8x32xf32>
    %421 = tpu.matmul %418, %420, %cst_96 {dimension_numbers = #tpu.dot_dimension_numbers<[1], [0], [0], [1], [0, 0, 1, 1], [], []>} : vector<8x64xf32>, vector<64x32xf32>, vector<8x32xf32> -> vector<8x32xf32>
    %422 = arith.addf %421, %212 : vector<8x32xf32>
    %423 = arith.mulf %422, %422 : vector<8x32xf32>
    %cst_97 = arith.constant dense<0.000000e+00> : vector<8xf32>
    %424 = vector.multi_reduction <add>, %423, %cst_97 [1] : vector<8x32xf32> to vector<8xf32>
    %425 = vector.shape_cast %424 : vector<8xf32> to vector<8x1xf32>
    %cst_98 = arith.constant 3.200000e+01 : f32
    %426 = vector.broadcast %cst_98 : f32 to vector<8x1xf32>
    %427 = arith.divf %425, %426 : vector<8x1xf32>
    %cst_99 = arith.constant 9.99999974E-6 : f32
    %428 = vector.broadcast %cst_99 : f32 to vector<8x1xf32>
    %429 = arith.addf %427, %428 : vector<8x1xf32>
    %430 = math.rsqrt %429 : vector<8x1xf32>
    %431 = vector.broadcast %430 : vector<8x1xf32> to vector<8x32xf32>
    %432 = arith.mulf %422, %431 : vector<8x32xf32>
    %c0_100 = arith.constant 0 : index
    %c0_101 = arith.constant 0 : index
    %433 = vector.load %arg8[%c0_100, %c0_101] : memref<1x32xf32, #tpu.memory_space<vmem>>, vector<1x32xf32>
    %434 = vector.broadcast %433 : vector<1x32xf32> to vector<8x32xf32>
    %435 = arith.mulf %432, %434 : vector<8x32xf32>
    %c0_102 = arith.constant 0 : index
    %c0_103 = arith.constant 0 : index
    %436 = vector.load %arg9[%c0_102, %c0_103] : memref<32x384xf32, #tpu.memory_space<vmem>>, vector<32x384xf32>
    %cst_104 = arith.constant dense<0.000000e+00> : vector<8x384xf32>
    %437 = tpu.matmul %435, %436, %cst_104 {dimension_numbers = #tpu.dot_dimension_numbers<[1], [0], [0], [1], [0, 0, 1, 1], [], []>} : vector<8x32xf32>, vector<32x384xf32>, vector<8x384xf32> -> vector<8x384xf32>
    %c0_105 = arith.constant 0 : index
    %c0_106 = arith.constant 0 : index
    %c0_107 = arith.constant 0 : index
    %438 = vector.load %arg10[%c0_105, %c0_106, %c0_107] : memref<1x8x384xf32, #tpu.memory_space<vmem>>, vector<1x8x384xf32>
    %439 = vector.shape_cast %438 : vector<1x8x384xf32> to vector<8x384xf32>
    %440 = vector.shape_cast %437 : vector<8x384xf32> to vector<1x8x384xf32>
    tpu.vector_store %arg10[%c0_105, %c0_106, %c0_107], %440 {strides = array<i32>} : memref<1x8x384xf32, #tpu.memory_space<vmem>>, vector<1x8x384xf32>,
    return
  }
  func.func @transform_0(%arg0: i32) -> (i32, i32, i32) {
    %c0_i32 = arith.constant 0 : i32
    %c0_i32_0 = arith.constant 0 : i32
    %c0_i32_1 = arith.constant 0 : i32
    return %arg0, %c0_i32, %c0_i32_0 : i32, i32, i32
  }
  func.func @transform_1(%arg0: i32) -> (i32, i32, i32) {
    %c0_i32 = arith.constant 0 : i32
    %c0_i32_0 = arith.constant 0 : i32
    %c0_i32_1 = arith.constant 0 : i32
    %c0_i32_2 = arith.constant 0 : i32
    return %c0_i32, %c0_i32_0, %c0_i32_1 : i32, i32, i32
  }
  func.func @transform_2(%arg0: i32) -> (i32, i32, i32) {
    %c0_i32 = arith.constant 0 : i32
    %c0_i32_0 = arith.constant 0 : i32
    %c0_i32_1 = arith.constant 0 : i32
    %c0_i32_2 = arith.constant 0 : i32
    return %c0_i32, %c0_i32_0, %c0_i32_1 : i32, i32, i32
  }
  func.func @transform_3(%arg0: i32) -> (i32, i32, i32) {
    %c0_i32 = arith.constant 0 : i32
    %c0_i32_0 = arith.constant 0 : i32
    %c0_i32_1 = arith.constant 0 : i32
    %c0_i32_2 = arith.constant 0 : i32
    return %c0_i32, %c0_i32_0, %c0_i32_1 : i32, i32, i32
  }
  func.func @transform_4(%arg0: i32) -> (i32, i32, i32) {
    %c0_i32 = arith.constant 0 : i32
    %c0_i32_0 = arith.constant 0 : i32
    %c0_i32_1 = arith.constant 0 : i32
    %c0_i32_2 = arith.constant 0 : i32
    return %c0_i32, %c0_i32_0, %c0_i32_1 : i32, i32, i32
  }
  func.func @transform_5(%arg0: i32) -> (i32, i32, i32) {
    %c0_i32 = arith.constant 0 : i32
    %c0_i32_0 = arith.constant 0 : i32
    %c0_i32_1 = arith.constant 0 : i32
    %c0_i32_2 = arith.constant 0 : i32
    return %c0_i32, %c0_i32_0, %c0_i32_1 : i32, i32, i32
  }
  func.func @transform_6(%arg0: i32) -> (i32, i32, i32) {
    %c0_i32 = arith.constant 0 : i32
    %c0_i32_0 = arith.constant 0 : i32
    %c0_i32_1 = arith.constant 0 : i32
    %c0_i32_2 = arith.constant 0 : i32
    return %c0_i32, %c0_i32_0, %c0_i32_1 : i32, i32, i32
  }
  func.func @transform_7(%arg0: i32) -> (i32, i32) {
    %c0_i32 = arith.constant 0 : i32
    %c0_i32_0 = arith.constant 0 : i32
    %c0_i32_1 = arith.constant 0 : i32
    return %c0_i32, %c0_i32_0 : i32, i32
  }
  func.func @transform_8(%arg0: i32) -> (i32, i32) {
    %c0_i32 = arith.constant 0 : i32
    %c0_i32_0 = arith.constant 0 : i32
    %c0_i32_1 = arith.constant 0 : i32
    return %c0_i32, %c0_i32_0 : i32, i32
  }
  func.func @transform_9(%arg0: i32) -> (i32, i32, i32) {
    %c0_i32 = arith.constant 0 : i32
    %c0_i32_0 = arith.constant 0 : i32
    %c0_i32_1 = arith.constant 0 : i32
    return %arg0, %c0_i32, %c0_i32_0 : i32, i32, i32
  }
}

</mosaic_0001>

<llo_original>
// kernel: tpu_custom_call.1
$region0: #{tpu_custom_call.1}
  #allocation0 [shape = 'u32[]', space=smem, size = 0x4, offset = 0x4, fixed_abs, tag = 'smem constant byte address 0x4 - core index']
  #allocation1 [shape = 'u32[144,128]{1,0:T(1,128)}', space=vmem, size = 0x12000, scoped, tag = 'internal scratch']
  %s0 = inlined_call_operand.hbm [shape: f32[2,8,32], index: 0, kind: input, shape index: {}]
  %s1 = inlined_call_operand.vmem [shape: f32[2,4,64], index: 1, kind: input, shape index: {}]
  %s2 = inlined_call_operand.vmem [shape: f32[2,32,128], index: 2, kind: input, shape index: {}]
  %s3 = inlined_call_operand.hbm [shape: f32[2,4,64], index: 3, kind: input, shape index: {}]
  %s4 = inlined_call_operand.vmem [shape: f32[2,64,128], index: 4, kind: input, shape index: {}]
  %s5 = inlined_call_operand.hbm [shape: f32[2,16,64], index: 5, kind: input, shape index: {}]
  %s6 = inlined_call_operand.vmem [shape: f32[2,64,32], index: 6, kind: input, shape index: {}]
  %s7 = inlined_call_operand.vmem [shape: f32[1,32], index: 7, kind: input, shape index: {}]
  %s8 = inlined_call_operand.hbm [shape: f32[32,384], index: 8, kind: input, shape index: {}]
  %s9 = inlined_call_operand.hbm [shape: f32[2,8,384], index: 9, kind: output, shape index: {}]
  %s10 = sld [smem:[#allocation0]]
  $region85: #{tpu_custom_call.1} parent=0
    _
  %s12 = ssub.s32 1, %s10
  %s13 = scalar_select 0, %s12, %s10
  $region1: #{tpu_custom_call.1} parent=0
    #allocation2 [shape = 'u8[8192]{0}', space=vmem, size = 0x2000, scoped, tag = 'input window, operand 0']
    #allocation3 [shape = 's32[2]{0}', space=sflag, size = 0x8, scoped, tag = 'scoped memory for tpu_custom_call.1']
    #allocation4 [shape = 's32[2]{0}', space=sflag, size = 0x8, scoped, tag = 'scoped memory for tpu_custom_call.1']
    #allocation5 [shape = 'u8[4096]{0}', space=vmem, size = 0x1000, scoped, tag = 'input window, operand 3, single buffered']
    #allocation6 [shape = 's32[1]{0}', space=sflag, size = 0x4, scoped, tag = 'scoped memory for tpu_custom_call.1']
    #allocation7 [shape = 'u8[16384]{0}', space=vmem, size = 0x4000, scoped, tag = 'input window, operand 5, single buffered']
    #allocation8 [shape = 'u8[49152]{0}', space=vmem, size = 0xc000, scoped, tag = 'input window, operand 8, single buffered']
    #allocation9 [shape = 's32[1]{0}', space=sflag, size = 0x4, scoped, tag = 'scoped memory for tpu_custom_call.1']
    #allocation10 [shape = 'u8[24576]{0}', space=vmem, size = 0x6000, scoped, tag = 'output window, operand 0']
    %14 = vsyncpa [#allocation3], 0
    %s15 = scalar_lea.sflag [#allocation3], 1
    %16 = vsyncpa %s15, 0
    %17 = vsyncpa [#allocation6], 0
    %18 = vsyncpa [#allocation9], 0
    %19 = vsyncpa [#allocation4], 0
    %s20 = scalar_lea.sflag [#allocation4], 1
    %21 = vsyncpa %s20, 0
    loop: start=0, step=1, limit=4
    $region2: #{tpu_custom_call.1} parent=1 // loop_pre_header
      _
    $region3: #{tpu_custom_call.1} parent=1 // loop_header
      %s23 = sphi 0, %s27
      %p24 = scmp.ge.s32.totalorder %s23, 4
      %s33 = sphi 0, %s35
      %s36 = sphi 0, %s33
      %s37 = sphi 0, %s36
      %s53 = sphi 0, %s37
      %s57 = sphi 0, %s57
      %s59 = sphi 0, %s57
      %s60 = sphi 0, %s59
      %s74 = sphi 0, %s60
      %s78 = sphi 0, %s78
      %s80 = sphi 0, %s78
      %s81 = sphi 0, %s80
      %s95 = sphi 0, %s81
      %s99 = sphi 0, %s99
      %s101 = sphi 0, %s99
      %s102 = sphi 0, %s101
      %s116 = sphi 0, %s102
      %s120 = sphi 0, %s120
      %s122 = sphi 0, %s120
      %s123 = sphi 0, %s122
      %s137 = sphi 0, %s123
      %s141 = sphi 0, %s141
      %s143 = sphi 0, %s141
      %s144 = sphi 0, %s143
      %s158 = sphi 0, %s144
      %s162 = sphi 0, %s162
      %s164 = sphi 0, %s162
      %s165 = sphi 0, %s164
      %s179 = sphi 0, %s165
      %s183 = sphi 0, %s183
      %s185 = sphi 0, %s183
      %s186 = sphi 0, %s185
      %s200 = sphi 0, %s186
      %s204 = sphi 0, %s204
      %s206 = sphi 0, %s204
      %s207 = sphi 0, %s206
      %s221 = sphi 0, %s207
      %s227 = sphi 0, %s229
      %s230 = sphi 0, %s227
      %s231 = sphi 0, %s230
      %s247 = sphi 0, %s231
    $region4: #{tpu_custom_call.1} parent=1 // loop_header_branch
      %26 = sbr.rel (%p24) target = $region8
    $region5: #{tpu_custom_call.1} parent=1 // loop_body
      %s28 = ssub.s32 %s23, 1
      %s29 = ssub.s32 %s23, 2
      %s30 = sadd.s32 %s23, 1
      %s31 = ssub.s32 %s23, %s30
      %p32 = scmp.eq.s32.totalorder %s31, 0
      %s34 = sadd.s32 %s33, 1
      %s35 = scalar_select %p32, %s33, %s34
      %p38 = pneg %p32
      %p39 = scmp.eq.s32.totalorder %s23, 1
      %p40 = por %p38, %p39
      %p41 = scmp.ne.s32.totalorder %s33, %s36
      %p42 = scmp.eq.s32.totalorder %s23, 0
      %p43 = por %p41, %p42
      %p44 = scmp.ne.s32.totalorder %s33, %s36
      %p45 = scmp.eq.s32.totalorder %s28, 1
      %p46 = por %p44, %p45
      %p47 = scmp.ne.s32.totalorder %s36, %s37
      %p48 = scmp.eq.s32.totalorder %s28, 0
      %p49 = por %p47, %p48
      %p50 = scmp.ne.s32.totalorder %s36, %s37
      %p51 = scmp.eq.s32.totalorder %s29, 1
      %p52 = por %p50, %p51
      %p54 = scmp.ne.s32.totalorder %s37, %s53
      %p55 = scmp.eq.s32.totalorder %s29, 0
      %p56 = por %p54, %p55
      %s58 = sadd.s32 %s57, 1
      %p61 = scmp.eq.s32.totalorder %s23, 1
      %p62 = scmp.ne.s32.totalorder %s57, %s59
      %p63 = scmp.eq.s32.totalorder %s23, 0
      %p64 = por %p62, %p63
      %p65 = scmp.ne.s32.totalorder %s57, %s59
      %p66 = scmp.eq.s32.totalorder %s28, 1
      %p67 = por %p65, %p66
      %p68 = scmp.ne.s32.totalorder %s59, %s60
      %p69 = scmp.eq.s32.totalorder %s28, 0
      %p70 = por %p68, %p69
      %p71 = scmp.ne.s32.totalorder %s59, %s60
      %p72 = scmp.eq.s32.totalorder %s29, 1
      %p73 = por %p71, %p72
      %p75 = scmp.ne.s32.totalorder %s60, %s74
      %p76 = scmp.eq.s32.totalorder %s29, 0
      %p77 = por %p75, %p76
      %s79 = sadd.s32 %s78, 1
      %p82 = scmp.eq.s32.totalorder %s23, 1
      %p83 = scmp.ne.s32.totalorder %s78, %s80
      %p84 = scmp.eq.s32.totalorder %s23, 0
      %p85 = por %p83, %p84
      %p86 = scmp.ne.s32.totalorder %s78, %s80
      %p87 = scmp.eq.s32.totalorder %s28, 1
      %p88 = por %p86, %p87
      %p89 = scmp.ne.s32.totalorder %s80, %s81
      %p90 = scmp.eq.s32.totalorder %s28, 0
      %p91 = por %p89, %p90
      %p92 = scmp.ne.s32.totalorder %s80, %s81
      %p93 = scmp.eq.s32.totalorder %s29, 1
      %p94 = por %p92, %p93
      %p96 = scmp.ne.s32.totalorder %s81, %s95
      %p97 = scmp.eq.s32.totalorder %s29, 0
      %p98 = por %p96, %p97
      %s100 = sadd.s32 %s99, 1
      %p103 = scmp.eq.s32.totalorder %s23, 1
      %p104 = scmp.ne.s32.totalorder %s99, %s101
      %p105 = scmp.eq.s32.totalorder %s23, 0
      %p106 = por %p104, %p105
      %p107 = scmp.ne.s32.totalorder %s99, %s101
      %p108 = scmp.eq.s32.totalorder %s28, 1
      %p109 = por %p107, %p108
      %p110 = scmp.ne.s32.totalorder %s101, %s102
      %p111 = scmp.eq.s32.totalorder %s28, 0
      %p112 = por %p110, %p111
      %p113 = scmp.ne.s32.totalorder %s101, %s102
      %p114 = scmp.eq.s32.totalorder %s29, 1
      %p115 = por %p113, %p114
      %p117 = scmp.ne.s32.totalorder %s102, %s116
      %p118 = scmp.eq.s32.totalorder %s29, 0
      %p119 = por %p117, %p118
      %s121 = sadd.s32 %s120, 1
      %p124 = scmp.eq.s32.totalorder %s23, 1
      %p125 = scmp.ne.s32.totalorder %s120, %s122
      %p126 = scmp.eq.s32.totalorder %s23, 0
      %p127 = por %p125, %p126
      %p128 = scmp.ne.s32.totalorder %s120, %s122
      %p129 = scmp.eq.s32.totalorder %s28, 1
      %p130 = por %p128, %p129
      %p131 = scmp.ne.s32.totalorder %s122, %s123
      %p132 = scmp.eq.s32.totalorder %s28, 0
      %p133 = por %p131, %p132
      %p134 = scmp.ne.s32.totalorder %s122, %s123
      %p135 = scmp.eq.s32.totalorder %s29, 1
      %p136 = por %p134, %p135
      %p138 = scmp.ne.s32.totalorder %s123, %s137
      %p139 = scmp.eq.s32.totalorder %s29, 0
      %p140 = por %p138, %p139
      %s142 = sadd.s32 %s141, 1
      %p145 = scmp.eq.s32.totalorder %s23, 1
      %p146 = scmp.ne.s32.totalorder %s141, %s143
      %p147 = scmp.eq.s32.totalorder %s23, 0
      %p148 = por %p146, %p147
      %p149 = scmp.ne.s32.totalorder %s141, %s143
      %p150 = scmp.eq.s32.totalorder %s28, 1
      %p151 = por %p149, %p150
      %p152 = scmp.ne.s32.totalorder %s143, %s144
      %p153 = scmp.eq.s32.totalorder %s28, 0
      %p154 = por %p152, %p153
      %p155 = scmp.ne.s32.totalorder %s143, %s144
      %p156 = scmp.eq.s32.totalorder %s29, 1
      %p157 = por %p155, %p156
      %p159 = scmp.ne.s32.totalorder %s144, %s158
      %p160 = scmp.eq.s32.totalorder %s29, 0
      %p161 = por %p159, %p160
      %s163 = sadd.s32 %s162, 1
      %p166 = scmp.eq.s32.totalorder %s23, 1
      %p167 = scmp.ne.s32.totalorder %s162, %s164
      %p168 = scmp.eq.s32.totalorder %s23, 0
      %p169 = por %p167, %p168
      %p170 = scmp.ne.s32.totalorder %s162, %s164
      %p171 = scmp.eq.s32.totalorder %s28, 1
      %p172 = por %p170, %p171
      %p173 = scmp.ne.s32.totalorder %s164, %s165
      %p174 = scmp.eq.s32.totalorder %s28, 0
      %p175 = por %p173, %p174
      %p176 = scmp.ne.s32.totalorder %s164, %s165
      %p177 = scmp.eq.s32.totalorder %s29, 1
      %p178 = por %p176, %p177
      %p180 = scmp.ne.s32.totalorder %s165, %s179
      %p181 = scmp.eq.s32.totalorder %s29, 0
      %p182 = por %p180, %p181
      %s184 = sadd.s32 %s183, 1
      %p187 = scmp.eq.s32.totalorder %s23, 1
      %p188 = scmp.ne.s32.totalorder %s183, %s185
      %p189 = scmp.eq.s32.totalorder %s23, 0
      %p190 = por %p188, %p189
      %p191 = scmp.ne.s32.totalorder %s183, %s185
      %p192 = scmp.eq.s32.totalorder %s28, 1
      %p193 = por %p191, %p192
      %p194 = scmp.ne.s32.totalorder %s185, %s186
      %p195 = scmp.eq.s32.totalorder %s28, 0
      %p196 = por %p194, %p195
      %p197 = scmp.ne.s32.totalorder %s185, %s186
      %p198 = scmp.eq.s32.totalorder %s29, 1
      %p199 = por %p197, %p198
      %p201 = scmp.ne.s32.totalorder %s186, %s200
      %p202 = scmp.eq.s32.totalorder %s29, 0
      %p203 = por %p201, %p202
      %s205 = sadd.s32 %s204, 1
      %p208 = scmp.eq.s32.totalorder %s23, 1
      %p209 = scmp.ne.s32.totalorder %s204, %s206
      %p210 = scmp.eq.s32.totalorder %s23, 0
      %p211 = por %p209, %p210
      %p212 = scmp.ne.s32.totalorder %s204, %s206
      %p213 = scmp.eq.s32.totalorder %s28, 1
      %p214 = por %p212, %p213
      %p215 = scmp.ne.s32.totalorder %s206, %s207
      %p216 = scmp.eq.s32.totalorder %s28, 0
      %p217 = por %p215, %p216
      %p218 = scmp.ne.s32.totalorder %s206, %s207
      %p219 = scmp.eq.s32.totalorder %s29, 1
      %p220 = por %p218, %p219
      %p222 = scmp.ne.s32.totalorder %s207, %s221
      %p223 = scmp.eq.s32.totalorder %s29, 0
      %p224 = por %p222, %p223
      %s225 = ssub.s32 %s23, %s30
      %p226 = scmp.eq.s32.totalorder %s225, 0
      %s228 = sadd.s32 %s227, 1
      %s229 = scalar_select %p226, %s227, %s228
      %p232 = pneg %p226
      %p233 = scmp.eq.s32.totalorder %s23, 1
      %p234 = por %p232, %p233
      %p235 = scmp.ne.s32.totalorder %s227, %s230
      %p236 = scmp.eq.s32.totalorder %s23, 0
      %p237 = por %p235, %p236
      %p238 = scmp.ne.s32.totalorder %s227, %s230
      %p239 = scmp.eq.s32.totalorder %s28, 1
      %p240 = por %p238, %p239
      %p241 = scmp.ne.s32.totalorder %s230, %s231
      %p242 = scmp.eq.s32.totalorder %s28, 0
      %p243 = por %p241, %p242
      %p244 = scmp.ne.s32.totalorder %s230, %s231
      %p245 = scmp.eq.s32.totalorder %s29, 1
      %p246 = por %p244, %p245
      %p248 = scmp.ne.s32.totalorder %s231, %s247
      %p249 = scmp.eq.s32.totalorder %s29, 0
      %p250 = por %p248, %p249
      %p251 = scmp.le.s32.totalorder 1, %s23
      %p252 = scmp.lt.s32.totalorder %s23, 3
      %p253 = pnand %p251, %p252
      %p254 = pneg %p253
      // Predicated region
      $region9: #{tpu_custom_call.1} parent=5 // pred_check
        _
      $region10: #{tpu_custom_call.1} parent=5 // pred_check_branch
        %256 = sbr.rel (%p253) target = $region12
      $region11: #{tpu_custom_call.1} parent=5 // pred_region
        %s257 = ssub.s32 %s23, 1
        // Predicated region
        $region13: #{tpu_custom_call.1} parent=11 // pred_check
          %p258 = pneg %p70
        $region14: #{tpu_custom_call.1} parent=11 // pred_check_branch
          %260 = sbr.rel (%p258) target = $region16
        $region15: #{tpu_custom_call.1} parent=11 // pred_region
          _
        $region16: #{tpu_custom_call.1} parent=11 // pred_fallthru
          _
        // Predicated region
        $region17: #{tpu_custom_call.1} parent=11 // pred_check
          %p261 = pneg %p91
        $region18: #{tpu_custom_call.1} parent=11 // pred_check_branch
          %263 = sbr.rel (%p261) target = $region20
        $region19: #{tpu_custom_call.1} parent=11 // pred_region
          _
        $region20: #{tpu_custom_call.1} parent=11 // pred_fallthru
          _
        // Predicated region
        $region21: #{tpu_custom_call.1} parent=11 // pred_check
          %p264 = pneg %p112
        $region22: #{tpu_custom_call.1} parent=11 // pred_check_branch
          %266 = sbr.rel (%p264) target = $region24
        $region23: #{tpu_custom_call.1} parent=11 // pred_region
          %s268 = ssub.s32 128, 128
          %269 = vsyncadd [#allocation6], %s268
          %s270 = sshll.u32 [#allocation5], 4
          %s271 = int_to_ptr.vmem [resolvable:$true] %s270
          %276 = dma.hbm_to_vmem [thread:$0]  %s3, 128, %s271, [#allocation6], 64, 64, 4
        $region24: #{tpu_custom_call.1} parent=11 // pred_fallthru
          _
        // Predicated region
        $region25: #{tpu_custom_call.1} parent=11 // pred_check
          %p277 = pneg %p133
        $region26: #{tpu_custom_call.1} parent=11 // pred_check_branch
          %279 = sbr.rel (%p277) target = $region28
        $region27: #{tpu_custom_call.1} parent=11 // pred_region
          _
        $region28: #{tpu_custom_call.1} parent=11 // pred_fallthru
          _
        // Predicated region
        $region29: #{tpu_custom_call.1} parent=11 // pred_check
          %p280 = pneg %p154
        $region30: #{tpu_custom_call.1} parent=11 // pred_check_branch
          %282 = sbr.rel (%p280) target = $region32
        $region31: #{tpu_custom_call.1} parent=11 // pred_region
          %s284 = ssub.s32 512, 512
          %285 = vsyncadd [#allocation6], %s284
          %s286 = sshll.u32 [#allocation7], 4
          %s287 = int_to_ptr.vmem [resolvable:$true] %s286
          %292 = dma.hbm_to_vmem [thread:$0]  %s5, 512, %s287, [#allocation6], 128, 128, 8
        $region32: #{tpu_custom_call.1} parent=11 // pred_fallthru
          _
        // Predicated region
        $region33: #{tpu_custom_call.1} parent=11 // pred_check
          %p293 = pneg %p175
        $region34: #{tpu_custom_call.1} parent=11 // pred_check_branch
          %295 = sbr.rel (%p293) target = $region36
        $region35: #{tpu_custom_call.1} parent=11 // pred_region
          _
        $region36: #{tpu_custom_call.1} parent=11 // pred_fallthru
          _
        // Predicated region
        $region37: #{tpu_custom_call.1} parent=11 // pred_check
          %p296 = pneg %p196
        $region38: #{tpu_custom_call.1} parent=11 // pred_check_branch
          %298 = sbr.rel (%p296) target = $region40
        $region39: #{tpu_custom_call.1} parent=11 // pred_region
          _
        $region40: #{tpu_custom_call.1} parent=11 // pred_fallthru
          _
        // Predicated region
        $region41: #{tpu_custom_call.1} parent=11 // pred_check
          %p299 = pneg %p217
        $region42: #{tpu_custom_call.1} parent=11 // pred_check_branch
          %301 = sbr.rel (%p299) target = $region44
        $region43: #{tpu_custom_call.1} parent=11 // pred_region
          %s303 = ssub.s32 1536, 1536
          %304 = vsyncadd [#allocation9], %s303
          %s305 = sshll.u32 [#allocation8], 4
          %s306 = int_to_ptr.vmem [resolvable:$true] %s305
          %311 = dma.hbm_to_vmem [thread:$0]  %s8, 1536, %s306, [#allocation9], 384, 384, 24
        $region44: #{tpu_custom_call.1} parent=11 // pred_fallthru
          _
      $region12: #{tpu_custom_call.1} parent=5 // pred_fallthru
        _
      %p312 = scmp.lt.s32.totalorder %s23, 2
      // Predicated region
      $region45: #{tpu_custom_call.1} parent=5 // pred_check
        %p313 = pneg %p312
      $region46: #{tpu_custom_call.1} parent=5 // pred_check_branch
        %315 = sbr.rel (%p313) target = $region48
      $region47: #{tpu_custom_call.1} parent=5 // pred_region
        // Predicated region
        $region49: #{tpu_custom_call.1} parent=47 // pred_check
          %p316 = pneg %p43
        $region50: #{tpu_custom_call.1} parent=47 // pred_check_branch
          %318 = sbr.rel (%p316) target = $region52
        $region51: #{tpu_custom_call.1} parent=47 // pred_region
          %s319 = sand.u32 %s33, 1
          %s320 = scalar_lea.sflag [#allocation3], %s319
          %s321 = sand.u32 %s33, 1
          %s322 = smul.addr %s321, 8
          %s323 = scalar_lea.vmem [#allocation2], %s322
          %s325 = ssub.s32 128, 128
          %326 = vsyncadd %s320, %s325
          %s327 = smul.addr %s23, 128
          %s328 = scalar_lea.hbm %s0, %s327
          %s330 = sshll.u32 %s323, 4
          %s331 = int_to_ptr.vmem [resolvable:$true] %s330
          %333 = dma.hbm_to_vmem [thread:$0]  %s328, 128, %s331, %s320
        $region52: #{tpu_custom_call.1} parent=47 // pred_fallthru
          _
      $region48: #{tpu_custom_call.1} parent=5 // pred_fallthru
        _
      %p334 = scmp.le.s32.totalorder 1, %s23
      %p335 = scmp.lt.s32.totalorder %s23, 3
      %p336 = pnand %p334, %p335
      %p337 = pneg %p336
      // Predicated region
      $region53: #{tpu_custom_call.1} parent=5 // pred_check
        _
      $region54: #{tpu_custom_call.1} parent=5 // pred_check_branch
        %339 = sbr.rel (%p336) target = $region56
      $region55: #{tpu_custom_call.1} parent=5 // pred_region
        %s340 = ssub.s32 %s23, 1
        %s341 = sand.u32 %s36, 1
        %s342 = scalar_lea.sflag [#allocation3], %s341
        %s343 = sand.u32 %s36, 1
        %s344 = smul.addr %s343, 8
        %s345 = scalar_lea.vmem [#allocation2], %s344
        // Predicated region
        $region57: #{tpu_custom_call.1} parent=55 // pred_check
          %p346 = pneg %p49
        $region58: #{tpu_custom_call.1} parent=55 // pred_check_branch
          %348 = sbr.rel (%p346) target = $region60
        $region59: #{tpu_custom_call.1} parent=55 // pred_region
          %349 = dma.done %s342, 128
        $region60: #{tpu_custom_call.1} parent=55 // pred_fallthru
          _
        // Predicated region
        $region61: #{tpu_custom_call.1} parent=55 // pred_check
          %p350 = pneg %p112
        $region62: #{tpu_custom_call.1} parent=55 // pred_check_branch
          %352 = sbr.rel (%p350) target = $region64
        $region63: #{tpu_custom_call.1} parent=55 // pred_region
          %353 = dma.done [#allocation6], 128
        $region64: #{tpu_custom_call.1} parent=55 // pred_fallthru
          _
        // Predicated region
        $region65: #{tpu_custom_call.1} parent=55 // pred_check
          %p354 = pneg %p154
        $region66: #{tpu_custom_call.1} parent=55 // pred_check_branch
          %356 = sbr.rel (%p354) target = $region68
        $region67: #{tpu_custom_call.1} parent=55 // pred_region
          %357 = dma.done [#allocation6], 512
        $region68: #{tpu_custom_call.1} parent=55 // pred_fallthru
          _
        // Predicated region
        $region69: #{tpu_custom_call.1} parent=55 // pred_check
          %p358 = pneg %p217
        $region70: #{tpu_custom_call.1} parent=55 // pred_check_branch
          %360 = sbr.rel (%p358) target = $region72
        $region71: #{tpu_custom_call.1} parent=55 // pred_region
          %361 = dma.done [#allocation9], 1536
        $region72: #{tpu_custom_call.1} parent=55 // pred_fallthru
          _
        %s362 = sand.u32 %s36, 1
        %s363 = scalar_lea.sflag [#allocation3], %s362
        %s364 = sand.u32 %s36, 1
        %s365 = smul.addr %s364, 8
        %s366 = scalar_lea.vmem [#allocation2], %s365
        %p367 = pneg %p49
        %p368 = pneg %p46
        %p369 = pneg %p70
        %p370 = pneg %p67
        %p371 = pneg %p91
        %p372 = pneg %p88
        %p373 = pneg %p112
        %p374 = pneg %p109
        %p375 = pneg %p133
        %p376 = pneg %p130
        %p377 = pneg %p154
        %p378 = pneg %p151
        %p379 = pneg %p175
        %p380 = pneg %p172
        %p381 = pneg %p196
        %p382 = pneg %p193
        %p383 = pneg %p217
        %p384 = pneg %p214
        %p385 = pneg %p243
        %p386 = pneg %p240
        %s387 = sand.u32 %s230, 1
        %s388 = scalar_lea.sflag [#allocation4], %s387
        %s389 = sand.u32 %s230, 1
        %s390 = smul.addr %s389, 24
        %s391 = scalar_lea.vmem [#allocation10], %s390
        %v392 = vld [vmem:[%s345] sm:$0xff]
        %v393 = vlaneseq
        %v394 = vshrl.u32 %v393, 7
        %v395 = vld [vmem:[%s1] sm:$0xf]
        %v396 = vmul.f32 %v392, %v392
        %vm397 = vcmask 261120
        %v398 = vsel %vm397, %v396, 0.0
        %399 = vadd.xlane.f32.xlu0 %v398
        %v400 = vpop.xlane.xlu0 %399
        %v401 = vrcp.pop 32.0
        %v402 = vmul.f32 %v400, %v401
        %v403 = vadd.f32 %v402, 1e-05
        %v404 = vrsqrt.pop %v403
        %v405 = vmul.f32 %v392, %v404
        %v406 = vlaneseq
        %v407 = vshrl.u32 %v406, 7
        %v408 = vsub.s32 0, %v407
        %v409 = vrot.slane %v395, %v408
        %v410 = vmul.f32 %v405, %v409
        %v411 = vld [vmem:[%s2] sm:$0xff]
        %v412 = vld [vmem:[%s2 + $0x8] sm:$0xff]
        %v413 = vld [vmem:[%s2 + $0x10] sm:$0xff]
        %v414 = vld [vmem:[%s2 + $0x18] sm:$0xff]
        %v416 = vsel %vm397, %v410, 0
        %418 = vmatprep.subr.mxu0 0.0
        %419 = vmatpush1.msra.mxu0 %v411
        %420 = vmatprep.subr.mxu0 0.0
        %421 = vmatpush1.msra.mxu0 %v412
        %422 = vmatprep.subr.mxu0 0.0
        %423 = vmatpush1.msra.mxu0 %v413
        %424 = vmatprep.subr.mxu0 0.0
        %425 = vmatpush1.msra.mxu0 %v414
        %426 = vmatprep.subr.mxu0 0.0
        %427 = vmatpush1.msra.mxu0 0.0
        %428 = vmatprep.subr.mxu0 0.0
        %429 = vmatpush1.msra.mxu0 0.0
        %430 = vmatprep.subr.mxu0 0.0
        %431 = vmatpush1.msra.mxu0 0.0
        %432 = vmatprep.subr.mxu0 0.0
        %433 = vmatpush1.msra.mxu0 0.0
        %434 = vmatprep.subr.mxu0 0.0
        %435 = vmatpush1.msra.mxu0 0.0
        %436 = vmatprep.subr.mxu0 0.0
        %437 = vmatpush1.msra.mxu0 0.0
        %438 = vmatprep.subr.mxu0 0.0
        %439 = vmatpush1.msra.mxu0 0.0
        %440 = vmatprep.subr.mxu0 0.0
        %441 = vmatpush1.msra.mxu0 0.0
        %442 = vmatprep.subr.mxu0 0.0
        %443 = vmatpush1.msra.mxu0 0.0
        %444 = vmatprep.subr.mxu0 0.0
        %445 = vmatpush1.msra.mxu0 0.0
        %446 = vmatprep.subr.mxu0 0.0
        %447 = vmatpush1.msra.mxu0 0.0
        %448 = vmatprep.subr.mxu0 0.0
        %449 = vmatpush1.msra.mxu0 0.0
        %450 = vmatprep.subr.mxu0 0.0
        %451 = vmatpush1.msra.mxu0 0.0
        %452 = vmatprep.subr.mxu0 0.0
        %453 = vmatpush1.msra.mxu0 0.0
        %454 = vmatprep.subr.mxu0 0.0
        %455 = vmatpush1.msra.mxu0 0.0
        %456 = vmatprep.subr.mxu0 0.0
        %457 = vmatpush1.msra.mxu0 0.0
        %458 = vmatprep.subr.mxu0 0.0
        %459 = vmatpush1.msra.mxu0 0.0
        %460 = vmatprep.subr.mxu0 0.0
        %461 = vmatpush1.msra.mxu0 0.0
        %462 = vmatprep.subr.mxu0 0.0
        %463 = vmatpush1.msra.mxu0 0.0
        %464 = vmatprep.subr.mxu0 0.0
        %465 = vmatpush1.msra.mxu0 0.0
        %466 = vmatprep.subr.mxu0 0.0
        %467 = vmatpush1.msra.mxu0 0.0
        %468 = vmatprep.subr.mxu0 0.0
        %469 = vmatpush1.msra.mxu0 0.0
        %470 = vmatprep.subr.mxu0 0.0
        %471 = vmatpush1.msra.mxu0 0.0
        %472 = vmatprep.subr.mxu0 0.0
        %473 = vmatpush1.msra.mxu0 0.0
        %474 = vmatprep.subr.mxu0 0.0
        %475 = vmatpush1.msra.mxu0 0.0
        %476 = vmatprep.subr.mxu0 0.0
        %477 = vmatpush1.msra.mxu0 0.0
        %478 = vmatprep.subr.mxu0 0.0
        %479 = vmatpush1.msra.mxu0 0.0
        %480 = vmatprep.subr.mxu0 0.0
        %481 = vmatpush1.msra.mxu0 0.0
        %482 = vmatprep.mubr.f32.mxu0 0.0
        %483 = vmatmul.mubr.f32.gmra.mrb[0].mxu0 %v416
        %v484 = vpop.f32.mrb[0].mxu0
        %v485 = vadd.f32 0.0, %v484
        %v486 = vpop.f32.mrb[0].mxu0
        %487 = vdwg.mxu0
        %v488 = vld [vmem:[#allocation5] sm:$0xf]
        %v489 = vlaneseq
        %v490 = vshrl.u32 %v489, 7
        %v491 = vsub.s32 3, %v490
        %v492 = vrot.slane %v488, %v491
        %v493 = vmul.f32 %v485, %v492
        %v494 = vrot.slane %v485, 7
        %vm495 = vcmp.ge.s32.totalorder %v394, 1
        %v496 = vsel %vm495, %v494, 0.0
        %v497 = vlaneseq
        %v498 = vshrl.u32 %v497, 7
        %v499 = vsub.s32 2, %v498
        %v500 = vrot.slane %v488, %v499
        %v501 = vmul.f32 %v496, %v500
        %v502 = vadd.f32 %v493, %v501
        %v503 = vrot.slane %v485, 6
        %vm504 = vcmp.ge.s32.totalorder %v394, 2
        %v505 = vsel %vm504, %v503, 0.0
        %v506 = vlaneseq
        %v507 = vshrl.u32 %v506, 7
        %v508 = vsub.s32 1, %v507
        %v509 = vrot.slane %v488, %v508
        %v510 = vmul.f32 %v505, %v509
        %v511 = vadd.f32 %v502, %v510
        %v512 = vrot.slane %v485, 5
        %vm513 = vcmp.ge.s32.totalorder %v394, 3
        %v514 = vsel %vm513, %v512, 0.0
        %v515 = vlaneseq
        %v516 = vshrl.u32 %v515, 7
        %v517 = vsub.s32 0, %v516
        %v518 = vrot.slane %v488, %v517
        %v519 = vmul.f32 %v514, %v518
        %v520 = vadd.f32 %v511, %v519
        %v521 = vlaneseq
        %v522 = vshrl.u32 %v521, 7
        %v523 = vsub.s32 1, %v522
        %v524 = vrot.slane %v395, %v523
        %v525 = vadd.f32 %v520, %v524
        %v526 = vand.u32 2147483647, %v525
        %v527 = vsub.f32 0.0, %v526
        %v528 = vmul.f32 %v527, 1.442695
        %v529 = vpow.pop %v528
        %v530 = vadd.f32 %v529, 1.0
        %v531 = vrcp.pop %v530
        %vm532 = vcmp.ge.f32.partialorder %v525, 0.0
        %v533 = vmul.f32 %v529, %v531
        %v534 = vsel %vm532, %v531, %v533
        %v535 = vmul.f32 %v525, %v534
        %v536 = vld [vmem:[%s4] sm:$0xff]
        %v537 = vld [vmem:[%s4 + $0x8] sm:$0xff]
        %v538 = vld [vmem:[%s4 + $0x10] sm:$0xff]
        %v539 = vld [vmem:[%s4 + $0x18] sm:$0xff]
        %v540 = vld [vmem:[%s4 + $0x20] sm:$0xff]
        %v541 = vld [vmem:[%s4 + $0x28] sm:$0xff]
        %v542 = vld [vmem:[%s4 + $0x30] sm:$0xff]
        %v543 = vld [vmem:[%s4 + $0x38] sm:$0xff]
        %vm544 = vcmask 523264
        %v546 = vsel %vm544, %v535, 0
        %548 = vmatprep.subr.mxu0 0.0
        %549 = vmatpush1.msra.mxu0 %v536
        %550 = vmatprep.subr.mxu0 0.0
        %551 = vmatpush1.msra.mxu0 %v537
        %552 = vmatprep.subr.mxu0 0.0
        %553 = vmatpush1.msra.mxu0 %v538
        %554 = vmatprep.subr.mxu0 0.0
        %555 = vmatpush1.msra.mxu0 %v539
        %556 = vmatprep.subr.mxu0 0.0
        %557 = vmatpush1.msra.mxu0 %v540
        %558 = vmatprep.subr.mxu0 0.0
        %559 = vmatpush1.msra.mxu0 %v541
        %560 = vmatprep.subr.mxu0 0.0
        %561 = vmatpush1.msra.mxu0 %v542
        %562 = vmatprep.subr.mxu0 0.0
        %563 = vmatpush1.msra.mxu0 %v543
        %564 = vmatprep.subr.mxu0 0.0
        %565 = vmatpush1.msra.mxu0 0.0
        %566 = vmatprep.subr.mxu0 0.0
        %567 = vmatpush1.msra.mxu0 0.0
        %568 = vmatprep.subr.mxu0 0.0
        %569 = vmatpush1.msra.mxu0 0.0
        %570 = vmatprep.subr.mxu0 0.0
        %571 = vmatpush1.msra.mxu0 0.0
        %572 = vmatprep.subr.mxu0 0.0
        %573 = vmatpush1.msra.mxu0 0.0
        %574 = vmatprep.subr.mxu0 0.0
        %575 = vmatpush1.msra.mxu0 0.0
        %576 = vmatprep.subr.mxu0 0.0
        %577 = vmatpush1.msra.mxu0 0.0
        %578 = vmatprep.subr.mxu0 0.0
        %579 = vmatpush1.msra.mxu0 0.0
        %580 = vmatprep.subr.mxu0 0.0
        %581 = vmatpush1.msra.mxu0 0.0
        %582 = vmatprep.subr.mxu0 0.0
        %583 = vmatpush1.msra.mxu0 0.0
        %584 = vmatprep.subr.mxu0 0.0
        %585 = vmatpush1.msra.mxu0 0.0
        %586 = vmatprep.subr.mxu0 0.0
        %587 = vmatpush1.msra.mxu0 0.0
        %588 = vmatprep.subr.mxu0 0.0
        %589 = vmatpush1.msra.mxu0 0.0
        %590 = vmatprep.subr.mxu0 0.0
        %591 = vmatpush1.msra.mxu0 0.0
        %592 = vmatprep.subr.mxu0 0.0
        %593 = vmatpush1.msra.mxu0 0.0
        %594 = vmatprep.subr.mxu0 0.0
        %595 = vmatpush1.msra.mxu0 0.0
        %596 = vmatprep.subr.mxu0 0.0
        %597 = vmatpush1.msra.mxu0 0.0
        %598 = vmatprep.subr.mxu0 0.0
        %599 = vmatpush1.msra.mxu0 0.0
        %600 = vmatprep.subr.mxu0 0.0
        %601 = vmatpush1.msra.mxu0 0.0
        %602 = vmatprep.subr.mxu0 0.0
        %603 = vmatpush1.msra.mxu0 0.0
        %604 = vmatprep.subr.mxu0 0.0
        %605 = vmatpush1.msra.mxu0 0.0
        %606 = vmatprep.subr.mxu0 0.0
        %607 = vmatpush1.msra.mxu0 0.0
        %608 = vmatprep.subr.mxu0 0.0
        %609 = vmatpush1.msra.mxu0 0.0
        %610 = vmatprep.subr.mxu0 0.0
        %611 = vmatpush1.msra.mxu0 0.0
        %612 = vmatprep.mubr.f32.mxu0 0.0
        %613 = vmatmul.mubr.f32.gmra.mrb[0].mxu0 %v546
        %v614 = vpop.f32.mrb[0].mxu0
        %v615 = vadd.f32 0.0, %v614
        %v616 = vpop.f32.mrb[0].mxu0
        %617 = vdwg.mxu0
        %v618 = vlaneseq
        %v619 = vshrl.u32 %v618, 7
        %v620 = vsub.s32 2, %v619
        %v621 = vrot.slane %v395, %v620
        %v622 = vadd.f32 %v615, %v621
        %v623 = vmax.f32 %v622, 0.0
        %v624 = vand.u32 2147483647, %v622
        %v625 = vsub.f32 0.0, %v624
        %v626 = vmul.f32 %v625, 1.442695
        %v627 = vpow.pop %v626
        %v628 = vadd.f32 %v627, 1.0
        %v629 = vlog2.pop %v628
        %v630 = vmul.f32 %v629, 0.6931472
        %v631 = vmul.f32 -0.5, %v627
        %v632 = vadd.f32 %v631, 1.0
        %v633 = vmul.f32 %v632, %v627
        %v634 = vand.u32 2147483647, %v627
        %vm635 = vcmp.lt.f32.partialorder %v634, 0.0004427343
        %v636 = vsel %vm635, %v633, %v630
        %v637 = vadd.f32 %v623, %v636
        %639 = vrot.lane.b32.xlu0 %v615, 48
        %v640 = vpop.permute.xlu0 %639
        %642 = vxpose.xlu0.b32.start [1/16] %v640, 128
        %643 = vxpose.xlu0.b32.cont [2/16] 0.0, 128
        %644 = vxpose.xlu0.b32.cont [3/16] 0.0, 128
        %645 = vxpose.xlu0.b32.cont [4/16] 0.0, 128
        %646 = vxpose.xlu0.b32.cont [5/16] 0.0, 128
        %647 = vxpose.xlu0.b32.cont [6/16] 0.0, 128
        %648 = vxpose.xlu0.b32.cont [7/16] 0.0, 128
        %649 = vxpose.xlu0.b32.cont [8/16] 0.0, 128
        %650 = vxpose.xlu0.b32.cont [9/16] 0.0, 128
        %651 = vxpose.xlu0.b32.cont [10/16] 0.0, 128
        %652 = vxpose.xlu0.b32.cont [11/16] 0.0, 128
        %653 = vxpose.xlu0.b32.cont [12/16] 0.0, 128
        %654 = vxpose.xlu0.b32.cont [13/16] 0.0, 128
        %655 = vxpose.xlu0.b32.cont [14/16] 0.0, 128
        %656 = vxpose.xlu0.b32.cont [15/16] 0.0, 128
        %657 = vxpose.xlu0.b32.end [16/16] 0.0, 128
        %v658 = vpop.trf.xlu0
        %v659 = vpop.trf.xlu0
        %v660 = vpop.trf.xlu0
        %v661 = vpop.trf.xlu0
        %v662 = vpop.trf.xlu0
        %v663 = vpop.trf.xlu0
        %v664 = vpop.trf.xlu0
        %v665 = vpop.trf.xlu0
        %v666 = vpop.trf.xlu0
        %v667 = vpop.trf.xlu0
        %v668 = vpop.trf.xlu0
        %v669 = vpop.trf.xlu0
        %v670 = vpop.trf.xlu0
        %v671 = vpop.trf.xlu0
        %v672 = vpop.trf.xlu0
        %v673 = vpop.trf.xlu0
        %v674 = vld [vmem:[#allocation7] sm:$0xff]
        %v675 = vld [vmem:[#allocation7 + $0x8] sm:$0xff]
        %v676 = vmul.f32 %v637, %v535
        %v678 = vcombine.high %v637, %v637
        %v680 = vunpack.c.l.s4 1966171168
        %v681 = vunpack.c.0.s8 %v680
        %v682 = vlaneseq
        %v683 = vshrl.u32 %v682, 7
        %v684 = vsub.s32 %v681, %v683
        %v685 = vrot.slane %v637, %v684
        %v687 = vunpack.c.l.s4 1966171168
        %v688 = vunpack.c.0.s8 %v687
        %v689 = vlaneseq
        %v690 = vshrl.u32 %v689, 7
        %v691 = vsub.s32 %v688, %v690
        %v692 = vrot.slane %v678, %v691
        %v693 = vcombine.high %v685, %v685
        %v694 = vcombine.high %v692, %v692
        %v696 = vunpack.c.l.s4 1966171168
        %v697 = vunpack.c.0.s8 %v696
        %v698 = vlaneseq
        %v699 = vshrl.u32 %v698, 7
        %v700 = vsub.s32 %v697, %v699
        %v701 = vrot.slane %v685, %v700
        %v703 = vunpack.c.l.s4 1966171168
        %v704 = vunpack.c.0.s8 %v703
        %v705 = vlaneseq
        %v706 = vshrl.u32 %v705, 7
        %v707 = vsub.s32 %v704, %v706
        %v708 = vrot.slane %v692, %v707
        %v710 = vunpack.c.l.s4 1966171168
        %v711 = vunpack.c.0.s8 %v710
        %v712 = vlaneseq
        %v713 = vshrl.u32 %v712, 7
        %v714 = vsub.s32 %v711, %v713
        %v715 = vrot.slane %v693, %v714
        %v717 = vunpack.c.l.s4 1966171168
        %v718 = vunpack.c.0.s8 %v717
        %v719 = vlaneseq
        %v720 = vshrl.u32 %v719, 7
        %v721 = vsub.s32 %v718, %v720
        %v722 = vrot.slane %v694, %v721
        %v723 = vcombine.high %v701, %v701
        %v724 = vcombine.high %v708, %v708
        %v725 = vcombine.high %v715, %v715
        %v726 = vcombine.high %v722, %v722
        %v727 = vlaneseq
        %v728 = vshrl.u32 %v727, 7
        %v729 = vsub.s32 0, %v728
        %v730 = vrot.slane %v701, %v729
        %v731 = vlaneseq
        %v732 = vshrl.u32 %v731, 7
        %v733 = vsub.s32 0, %v732
        %v734 = vrot.slane %v715, %v733
        %v735 = vlaneseq
        %v736 = vshrl.u32 %v735, 7
        %v737 = vsub.s32 0, %v736
        %v738 = vrot.slane %v723, %v737
        %v739 = vlaneseq
        %v740 = vshrl.u32 %v739, 7
        %v741 = vsub.s32 0, %v740
        %v742 = vrot.slane %v725, %v741
        %v743 = vlaneseq
        %v744 = vshrl.u32 %v743, 7
        %v745 = vsub.s32 0, %v744
        %v746 = vrot.slane %v708, %v745
        %v747 = vlaneseq
        %v748 = vshrl.u32 %v747, 7
        %v749 = vsub.s32 0, %v748
        %v750 = vrot.slane %v722, %v749
        %v751 = vlaneseq
        %v752 = vshrl.u32 %v751, 7
        %v753 = vsub.s32 0, %v752
        %v754 = vrot.slane %v724, %v753
        %v755 = vlaneseq
        %v756 = vshrl.u32 %v755, 7
        %v757 = vsub.s32 0, %v756
        %v758 = vrot.slane %v726, %v757
        %v767 = vmul.f32 %v730, %v674
        %v768 = vmul.f32 %v730, %v675
        %v769 = vmul.f32 %v734, %v674
        %v770 = vmul.f32 %v734, %v675
        %v771 = vmul.f32 %v738, %v674
        %v772 = vmul.f32 %v738, %v675
        %v773 = vmul.f32 %v742, %v674
        %v774 = vmul.f32 %v742, %v675
        %v775 = vmul.f32 %v746, %v674
        %v776 = vmul.f32 %v746, %v675
        %v777 = vmul.f32 %v750, %v674
        %v778 = vmul.f32 %v750, %v675
        %v779 = vmul.f32 %v754, %v674
        %v780 = vmul.f32 %v754, %v675
        %v781 = vmul.f32 %v758, %v674
        %v782 = vmul.f32 %v758, %v675
        %v783 = vmul.f32 %v767, 1.442695
        %v784 = vpow.pop %v783
        %v785 = vmul.f32 %v768, 1.442695
        %v786 = vpow.pop %v785
        %v787 = vmul.f32 %v769, 1.442695
        %v788 = vpow.pop %v787
        %v789 = vmul.f32 %v770, 1.442695
        %v790 = vpow.pop %v789
        %v791 = vmul.f32 %v771, 1.442695
        %v792 = vpow.pop %v791
        %v793 = vmul.f32 %v772, 1.442695
        %v794 = vpow.pop %v793
        %v795 = vmul.f32 %v773, 1.442695
        %v796 = vpow.pop %v795
        %v797 = vmul.f32 %v774, 1.442695
        %v798 = vpow.pop %v797
        %v799 = vmul.f32 %v775, 1.442695
        %v800 = vpow.pop %v799
        %v801 = vmul.f32 %v776, 1.442695
        %v802 = vpow.pop %v801
        %v803 = vmul.f32 %v777, 1.442695
        %v804 = vpow.pop %v803
        %v805 = vmul.f32 %v778, 1.442695
        %v806 = vpow.pop %v805
        %v807 = vmul.f32 %v779, 1.442695
        %v808 = vpow.pop %v807
        %v809 = vmul.f32 %v780, 1.442695
        %v810 = vpow.pop %v809
        %v811 = vmul.f32 %v781, 1.442695
        %v812 = vpow.pop %v811
        %v813 = vmul.f32 %v782, 1.442695
        %v814 = vpow.pop %v813
        %v815 = vlaneseq
        %v816 = vshrl.u32 %v815, 7
        %v817 = vsub.s32 0, %v816
        %v818 = vrot.slane %v615, %v817
        %s820 = sor.u32 256, 64
        %821 = vbcast.lane.b32.xlu0 %v818, %s820
        %v822 = vpop.permute.xlu0 %821
        %s824 = sor.u32 256, 72
        %825 = vbcast.lane.b32.xlu0 %v818, %s824
        %v826 = vpop.permute.xlu0 %825
        %v827 = vlaneseq
        %v828 = vshrl.u32 %v827, 7
        %v829 = vsub.s32 1, %v828
        %v830 = vrot.slane %v615, %v829
        %s832 = sor.u32 256, 64
        %833 = vbcast.lane.b32.xlu0 %v830, %s832
        %v834 = vpop.permute.xlu0 %833
        %s836 = sor.u32 256, 72
        %837 = vbcast.lane.b32.xlu0 %v830, %s836
        %v838 = vpop.permute.xlu0 %837
        %v839 = vlaneseq
        %v840 = vshrl.u32 %v839, 7
        %v841 = vsub.s32 2, %v840
        %v842 = vrot.slane %v615, %v841
        %s844 = sor.u32 256, 64
        %845 = vbcast.lane.b32.xlu0 %v842, %s844
        %v846 = vpop.permute.xlu0 %845
        %s848 = sor.u32 256, 72
        %849 = vbcast.lane.b32.xlu0 %v842, %s848
        %v850 = vpop.permute.xlu0 %849
        %v851 = vlaneseq
        %v852 = vshrl.u32 %v851, 7
        %v853 = vsub.s32 3, %v852
        %v854 = vrot.slane %v615, %v853
        %s856 = sor.u32 256, 64
        %857 = vbcast.lane.b32.xlu0 %v854, %s856
        %v858 = vpop.permute.xlu0 %857
        %s860 = sor.u32 256, 72
        %861 = vbcast.lane.b32.xlu0 %v854, %s860
        %v862 = vpop.permute.xlu0 %861
        %v863 = vlaneseq
        %v864 = vshrl.u32 %v863, 7
        %v865 = vsub.s32 4, %v864
        %v866 = vrot.slane %v615, %v865
        %s868 = sor.u32 256, 64
        %869 = vbcast.lane.b32.xlu0 %v866, %s868
        %v870 = vpop.permute.xlu0 %869
        %s872 = sor.u32 256, 72
        %873 = vbcast.lane.b32.xlu0 %v866, %s872
        %v874 = vpop.permute.xlu0 %873
        %v875 = vlaneseq
        %v876 = vshrl.u32 %v875, 7
        %v877 = vsub.s32 5, %v876
        %v878 = vrot.slane %v615, %v877
        %s880 = sor.u32 256, 64
        %881 = vbcast.lane.b32.xlu0 %v878, %s880
        %v882 = vpop.permute.xlu0 %881
        %s884 = sor.u32 256, 72
        %885 = vbcast.lane.b32.xlu0 %v878, %s884
        %v886 = vpop.permute.xlu0 %885
        %v887 = vlaneseq
        %v888 = vshrl.u32 %v887, 7
        %v889 = vsub.s32 6, %v888
        %v890 = vrot.slane %v615, %v889
        %s892 = sor.u32 256, 64
        %893 = vbcast.lane.b32.xlu0 %v890, %s892
        %v894 = vpop.permute.xlu0 %893
        %s896 = sor.u32 256, 72
        %897 = vbcast.lane.b32.xlu0 %v890, %s896
        %v898 = vpop.permute.xlu0 %897
        %v899 = vlaneseq
        %v900 = vshrl.u32 %v899, 7
        %v901 = vsub.s32 7, %v900
        %v902 = vrot.slane %v615, %v901
        %s904 = sor.u32 256, 64
        %905 = vbcast.lane.b32.xlu0 %v902, %s904
        %v906 = vpop.permute.xlu0 %905
        %s908 = sor.u32 256, 72
        %909 = vbcast.lane.b32.xlu0 %v902, %s908
        %v910 = vpop.permute.xlu0 %909
        %v912 = vcombine.high %v676, %v676
        %v914 = vunpack.c.l.s4 1966171168
        %v915 = vunpack.c.0.s8 %v914
        %v916 = vlaneseq
        %v917 = vshrl.u32 %v916, 7
        %v918 = vsub.s32 %v915, %v917
        %v919 = vrot.slane %v676, %v918
        %v921 = vunpack.c.l.s4 1966171168
        %v922 = vunpack.c.0.s8 %v921
        %v923 = vlaneseq
        %v924 = vshrl.u32 %v923, 7
        %v925 = vsub.s32 %v922, %v924
        %v926 = vrot.slane %v912, %v925
        %v927 = vcombine.high %v919, %v919
        %v928 = vcombine.high %v926, %v926
        %v930 = vunpack.c.l.s4 1966171168
        %v931 = vunpack.c.0.s8 %v930
        %v932 = vlaneseq
        %v933 = vshrl.u32 %v932, 7
        %v934 = vsub.s32 %v931, %v933
        %v935 = vrot.slane %v919, %v934
        %v937 = vunpack.c.l.s4 1966171168
        %v938 = vunpack.c.0.s8 %v937
        %v939 = vlaneseq
        %v940 = vshrl.u32 %v939, 7
        %v941 = vsub.s32 %v938, %v940
        %v942 = vrot.slane %v926, %v941
        %v944 = vunpack.c.l.s4 1966171168
        %v945 = vunpack.c.0.s8 %v944
        %v946 = vlaneseq
        %v947 = vshrl.u32 %v946, 7
        %v948 = vsub.s32 %v945, %v947
        %v949 = vrot.slane %v927, %v948
        %v951 = vunpack.c.l.s4 1966171168
        %v952 = vunpack.c.0.s8 %v951
        %v953 = vlaneseq
        %v954 = vshrl.u32 %v953, 7
        %v955 = vsub.s32 %v952, %v954
        %v956 = vrot.slane %v928, %v955
        %v957 = vcombine.high %v935, %v935
        %v958 = vcombine.high %v942, %v942
        %v959 = vcombine.high %v949, %v949
        %v960 = vcombine.high %v956, %v956
        %v961 = vlaneseq
        %v962 = vshrl.u32 %v961, 7
        %v963 = vsub.s32 0, %v962
        %v964 = vrot.slane %v935, %v963
        %v965 = vlaneseq
        %v966 = vshrl.u32 %v965, 7
        %v967 = vsub.s32 0, %v966
        %v968 = vrot.slane %v949, %v967
        %v969 = vlaneseq
        %v970 = vshrl.u32 %v969, 7
        %v971 = vsub.s32 0, %v970
        %v972 = vrot.slane %v957, %v971
        %v973 = vlaneseq
        %v974 = vshrl.u32 %v973, 7
        %v975 = vsub.s32 0, %v974
        %v976 = vrot.slane %v959, %v975
        %v977 = vlaneseq
        %v978 = vshrl.u32 %v977, 7
        %v979 = vsub.s32 0, %v978
        %v980 = vrot.slane %v942, %v979
        %v981 = vlaneseq
        %v982 = vshrl.u32 %v981, 7
        %v983 = vsub.s32 0, %v982
        %v984 = vrot.slane %v956, %v983
        %v985 = vlaneseq
        %v986 = vshrl.u32 %v985, 7
        %v987 = vsub.s32 0, %v986
        %v988 = vrot.slane %v958, %v987
        %v989 = vlaneseq
        %v990 = vshrl.u32 %v989, 7
        %v991 = vsub.s32 0, %v990
        %v992 = vrot.slane %v960, %v991
        %v1001 = vmul.f32 %v822, %v964
        %v1002 = vmul.f32 %v826, %v964
        %v1003 = vmul.f32 %v834, %v968
        %v1004 = vmul.f32 %v838, %v968
        %v1005 = vmul.f32 %v846, %v972
        %v1006 = vmul.f32 %v850, %v972
        %v1007 = vmul.f32 %v858, %v976
        %v1008 = vmul.f32 %v862, %v976
        %v1009 = vmul.f32 %v870, %v980
        %v1010 = vmul.f32 %v874, %v980
        %v1011 = vmul.f32 %v882, %v984
        %v1012 = vmul.f32 %v886, %v984
        %v1013 = vmul.f32 %v894, %v988
        %v1014 = vmul.f32 %v898, %v988
        %v1015 = vmul.f32 %v906, %v992
        %v1016 = vmul.f32 %v910, %v992
        %v1017 = vmul.f32 %v784, 0.0
        %v1018 = vmul.f32 %v786, 0.0
        %v1019 = vadd.f32 %v1017, %v1001
        %v1020 = vadd.f32 %v1018, %v1002
        %1022 = vset.pattern.permute.xlu0 0
        %1023 = vperm.xlu0 %1022, %v658
        %v1024 = vpop.permute.xlu0 %1023
        %1027 = vset.pattern.permute.xlu0 0
        %1028 = vperm.xlu0 %1027, %v659
        %v1029 = vpop.permute.xlu0 %1028
        %v1031 = vmul.f32 %v1019, %v1024
        %v1032 = vmul.f32 %v1020, %v1029
        %v1033 = vsel %vm544, %v1031, 0.0
        %v1034 = vsel %vm544, %v1032, 0.0
        %v1035 = vadd.f32 %v1033, %v1034
        %v1036 = vrot.slane %v1035, 4
        %v1037 = vadd.f32 %v1035, %v1036
        %v1038 = vrot.slane %v1037, 2
        %v1039 = vadd.f32 %v1037, %v1038
        %v1040 = vrot.slane %v1039, 1
        %v1041 = vadd.f32 %v1039, %v1040
        %v1042 = vmul.f32 %v788, %v1019
        %v1043 = vmul.f32 %v790, %v1020
        %v1044 = vadd.f32 %v1042, %v1003
        %v1045 = vadd.f32 %v1043, %v1004
        %1046 = vset.pattern.permute.xlu0 1
        %1047 = vperm.xlu0 %1046, %v658
        %v1048 = vpop.permute.xlu0 %1047
        %1050 = vset.pattern.permute.xlu0 1
        %1051 = vperm.xlu0 %1050, %v659
        %v1052 = vpop.permute.xlu0 %1051
        %v1054 = vmul.f32 %v1044, %v1048
        %v1055 = vmul.f32 %v1045, %v1052
        %v1056 = vsel %vm544, %v1054, 0.0
        %v1057 = vsel %vm544, %v1055, 0.0
        %v1058 = vadd.f32 %v1056, %v1057
        %v1059 = vrot.slane %v1058, 4
        %v1060 = vadd.f32 %v1058, %v1059
        %v1061 = vrot.slane %v1060, 2
        %v1062 = vadd.f32 %v1060, %v1061
        %v1063 = vrot.slane %v1062, 1
        %v1064 = vadd.f32 %v1062, %v1063
        %v1065 = vmul.f32 %v792, %v1044
        %v1066 = vmul.f32 %v794, %v1045
        %v1067 = vadd.f32 %v1065, %v1005
        %v1068 = vadd.f32 %v1066, %v1006
        %1069 = vset.pattern.permute.xlu0 2
        %1070 = vperm.xlu0 %1069, %v658
        %v1071 = vpop.permute.xlu0 %1070
        %1073 = vset.pattern.permute.xlu0 2
        %1074 = vperm.xlu0 %1073, %v659
        %v1075 = vpop.permute.xlu0 %1074
        %v1077 = vmul.f32 %v1067, %v1071
        %v1078 = vmul.f32 %v1068, %v1075
        %v1079 = vsel %vm544, %v1077, 0.0
        %v1080 = vsel %vm544, %v1078, 0.0
        %v1081 = vadd.f32 %v1079, %v1080
        %v1082 = vrot.slane %v1081, 4
        %v1083 = vadd.f32 %v1081, %v1082
        %v1084 = vrot.slane %v1083, 2
        %v1085 = vadd.f32 %v1083, %v1084
        %v1086 = vrot.slane %v1085, 1
        %v1087 = vadd.f32 %v1085, %v1086
        %v1088 = vmul.f32 %v796, %v1067
        %v1089 = vmul.f32 %v798, %v1068
        %v1090 = vadd.f32 %v1088, %v1007
        %v1091 = vadd.f32 %v1089, %v1008
        %1092 = vset.pattern.permute.xlu0 3
        %1093 = vperm.xlu0 %1092, %v658
        %v1094 = vpop.permute.xlu0 %1093
        %1096 = vset.pattern.permute.xlu0 3
        %1097 = vperm.xlu0 %1096, %v659
        %v1098 = vpop.permute.xlu0 %1097
        %v1100 = vmul.f32 %v1090, %v1094
        %v1101 = vmul.f32 %v1091, %v1098
        %v1102 = vsel %vm544, %v1100, 0.0
        %v1103 = vsel %vm544, %v1101, 0.0
        %v1104 = vadd.f32 %v1102, %v1103
        %v1105 = vrot.slane %v1104, 4
        %v1106 = vadd.f32 %v1104, %v1105
        %v1107 = vrot.slane %v1106, 2
        %v1108 = vadd.f32 %v1106, %v1107
        %v1109 = vrot.slane %v1108, 1
        %v1110 = vadd.f32 %v1108, %v1109
        %v1111 = vmul.f32 %v800, %v1090
        %v1112 = vmul.f32 %v802, %v1091
        %v1113 = vadd.f32 %v1111, %v1009
        %v1114 = vadd.f32 %v1112, %v1010
        %1115 = vset.pattern.permute.xlu0 4
        %1116 = vperm.xlu0 %1115, %v658
        %v1117 = vpop.permute.xlu0 %1116
        %1119 = vset.pattern.permute.xlu0 4
        %1120 = vperm.xlu0 %1119, %v659
        %v1121 = vpop.permute.xlu0 %1120
        %v1123 = vmul.f32 %v1113, %v1117
        %v1124 = vmul.f32 %v1114, %v1121
        %v1125 = vsel %vm544, %v1123, 0.0
        %v1126 = vsel %vm544, %v1124, 0.0
        %v1127 = vadd.f32 %v1125, %v1126
        %v1128 = vrot.slane %v1127, 4
        %v1129 = vadd.f32 %v1127, %v1128
        %v1130 = vrot.slane %v1129, 2
        %v1131 = vadd.f32 %v1129, %v1130
        %v1132 = vrot.slane %v1131, 1
        %v1133 = vadd.f32 %v1131, %v1132
        %v1134 = vmul.f32 %v804, %v1113
        %v1135 = vmul.f32 %v806, %v1114
        %v1136 = vadd.f32 %v1134, %v1011
        %v1137 = vadd.f32 %v1135, %v1012
        %1138 = vset.pattern.permute.xlu0 5
        %1139 = vperm.xlu0 %1138, %v658
        %v1140 = vpop.permute.xlu0 %1139
        %1142 = vset.pattern.permute.xlu0 5
        %1143 = vperm.xlu0 %1142, %v659
        %v1144 = vpop.permute.xlu0 %1143
        %v1146 = vmul.f32 %v1136, %v1140
        %v1147 = vmul.f32 %v1137, %v1144
        %v1148 = vsel %vm544, %v1146, 0.0
        %v1149 = vsel %vm544, %v1147, 0.0
        %v1150 = vadd.f32 %v1148, %v1149
        %v1151 = vrot.slane %v1150, 4
        %v1152 = vadd.f32 %v1150, %v1151
        %v1153 = vrot.slane %v1152, 2
        %v1154 = vadd.f32 %v1152, %v1153
        %v1155 = vrot.slane %v1154, 1
        %v1156 = vadd.f32 %v1154, %v1155
        %v1157 = vmul.f32 %v808, %v1136
        %v1158 = vmul.f32 %v810, %v1137
        %v1159 = vadd.f32 %v1157, %v1013
        %v1160 = vadd.f32 %v1158, %v1014
        %1161 = vset.pattern.permute.xlu0 6
        %1162 = vperm.xlu0 %1161, %v658
        %v1163 = vpop.permute.xlu0 %1162
        %1165 = vset.pattern.permute.xlu0 6
        %1166 = vperm.xlu0 %1165, %v659
        %v1167 = vpop.permute.xlu0 %1166
        %v1169 = vmul.f32 %v1159, %v1163
        %v1170 = vmul.f32 %v1160, %v1167
        %v1171 = vsel %vm544, %v1169, 0.0
        %v1172 = vsel %vm544, %v1170, 0.0
        %v1173 = vadd.f32 %v1171, %v1172
        %v1174 = vrot.slane %v1173, 4
        %v1175 = vadd.f32 %v1173, %v1174
        %v1176 = vrot.slane %v1175, 2
        %v1177 = vadd.f32 %v1175, %v1176
        %v1178 = vrot.slane %v1177, 1
        %v1179 = vadd.f32 %v1177, %v1178
        %v1180 = vmul.f32 %v812, %v1159
        %v1181 = vmul.f32 %v814, %v1160
        %v1182 = vadd.f32 %v1180, %v1015
        %v1183 = vadd.f32 %v1181, %v1016
        %1184 = vset.pattern.permute.xlu0 7
        %1185 = vperm.xlu0 %1184, %v658
        %v1186 = vpop.permute.xlu0 %1185
        %1188 = vset.pattern.permute.xlu0 7
        %1189 = vperm.xlu0 %1188, %v659
        %v1190 = vpop.permute.xlu0 %1189
        %v1192 = vmul.f32 %v1182, %v1186
        %v1193 = vmul.f32 %v1183, %v1190
        %v1194 = vsel %vm544, %v1192, 0.0
        %v1195 = vsel %vm544, %v1193, 0.0
        %v1196 = vadd.f32 %v1194, %v1195
        %v1197 = vrot.slane %v1196, 4
        %v1198 = vadd.f32 %v1196, %v1197
        %v1199 = vrot.slane %v1198, 2
        %v1200 = vadd.f32 %v1198, %v1199
        %v1201 = vrot.slane %v1200, 1
        %v1202 = vadd.f32 %v1200, %v1201
        %vm1203 = vcmask 1040384
        %v1204 = vsel %vm1203, %v1041, %v1064
        %vm1205 = vcmask 1041408
        %v1206 = vsel %vm1205, %v1204, %v1087
        %vm1207 = vcmask 1042432
        %v1208 = vsel %vm1207, %v1206, %v1110
        %vm1209 = vcmask 1043456
        %v1210 = vsel %vm1209, %v1208, %v1133
        %vm1211 = vcmask 1044480
        %v1212 = vsel %vm1211, %v1210, %v1156
        %vm1213 = vcmask 1045504
        %v1214 = vsel %vm1213, %v1212, %v1179
        %vm1215 = vcmask 1046528
        %v1216 = vsel %vm1215, %v1214, %v1202
        %v1217 = vlaneseq
        %v1218 = vshrl.u32 %v1217, 7
        %v1219 = vsub.s32 3, %v1218
        %v1220 = vrot.slane %v395, %v1219
        %v1221 = vmul.f32 %v535, %v1220
        %v1222 = vadd.f32 %v1216, %v1221
        %v1223 = vand.u32 2147483647, %v485
        %v1224 = vsub.f32 0.0, %v1223
        %v1225 = vmul.f32 %v1224, 1.442695
        %v1226 = vpow.pop %v1225
        %v1227 = vadd.f32 %v1226, 1.0
        %v1228 = vrcp.pop %v1227
        %vm1229 = vcmp.ge.f32.partialorder %v485, 0.0
        %v1230 = vmul.f32 %v1226, %v1228
        %v1231 = vsel %vm1229, %v1228, %v1230
        %v1232 = vmul.f32 %v485, %v1231
        %1234 = vrot.lane.b32.xlu0 %v1232, 64
        %v1235 = vpop.permute.xlu0 %1234
        %v1237 = vmul.f32 %v1222, %v1235
        %v1238 = vld [vmem:[%s6] sm:$0xff]
        %v1239 = vld [vmem:[%s6 + $0x8] sm:$0xff]
        %v1240 = vld [vmem:[%s6 + $0x10] sm:$0xff]
        %v1241 = vld [vmem:[%s6 + $0x18] sm:$0xff]
        %v1242 = vld [vmem:[%s6 + $0x20] sm:$0xff]
        %v1243 = vld [vmem:[%s6 + $0x28] sm:$0xff]
        %v1244 = vld [vmem:[%s6 + $0x30] sm:$0xff]
        %v1245 = vld [vmem:[%s6 + $0x38] sm:$0xff]
        %v1247 = vsel %vm544, %v1237, 0
        %1249 = vmatprep.subr.mxu0 0.0
        %1250 = vmatpush1.msra.mxu0 %v1238
        %1251 = vmatprep.subr.mxu0 0.0
        %1252 = vmatpush1.msra.mxu0 %v1239
        %1253 = vmatprep.subr.mxu0 0.0
        %1254 = vmatpush1.msra.mxu0 %v1240
        %1255 = vmatprep.subr.mxu0 0.0
        %1256 = vmatpush1.msra.mxu0 %v1241
        %1257 = vmatprep.subr.mxu0 0.0
        %1258 = vmatpush1.msra.mxu0 %v1242
        %1259 = vmatprep.subr.mxu0 0.0
        %1260 = vmatpush1.msra.mxu0 %v1243
        %1261 = vmatprep.subr.mxu0 0.0
        %1262 = vmatpush1.msra.mxu0 %v1244
        %1263 = vmatprep.subr.mxu0 0.0
        %1264 = vmatpush1.msra.mxu0 %v1245
        %1265 = vmatprep.subr.mxu0 0.0
        %1266 = vmatpush1.msra.mxu0 0.0
        %1267 = vmatprep.subr.mxu0 0.0
        %1268 = vmatpush1.msra.mxu0 0.0
        %1269 = vmatprep.subr.mxu0 0.0
        %1270 = vmatpush1.msra.mxu0 0.0
        %1271 = vmatprep.subr.mxu0 0.0
        %1272 = vmatpush1.msra.mxu0 0.0
        %1273 = vmatprep.subr.mxu0 0.0
        %1274 = vmatpush1.msra.mxu0 0.0
        %1275 = vmatprep.subr.mxu0 0.0
        %1276 = vmatpush1.msra.mxu0 0.0
        %1277 = vmatprep.subr.mxu0 0.0
        %1278 = vmatpush1.msra.mxu0 0.0
        %1279 = vmatprep.subr.mxu0 0.0
        %1280 = vmatpush1.msra.mxu0 0.0
        %1281 = vmatprep.subr.mxu0 0.0
        %1282 = vmatpush1.msra.mxu0 0.0
        %1283 = vmatprep.subr.mxu0 0.0
        %1284 = vmatpush1.msra.mxu0 0.0
        %1285 = vmatprep.subr.mxu0 0.0
        %1286 = vmatpush1.msra.mxu0 0.0
        %1287 = vmatprep.subr.mxu0 0.0
        %1288 = vmatpush1.msra.mxu0 0.0
        %1289 = vmatprep.subr.mxu0 0.0
        %1290 = vmatpush1.msra.mxu0 0.0
        %1291 = vmatprep.subr.mxu0 0.0
        %1292 = vmatpush1.msra.mxu0 0.0
        %1293 = vmatprep.subr.mxu0 0.0
        %1294 = vmatpush1.msra.mxu0 0.0
        %1295 = vmatprep.subr.mxu0 0.0
        %1296 = vmatpush1.msra.mxu0 0.0
        %1297 = vmatprep.subr.mxu0 0.0
        %1298 = vmatpush1.msra.mxu0 0.0
        %1299 = vmatprep.subr.mxu0 0.0
        %1300 = vmatpush1.msra.mxu0 0.0
        %1301 = vmatprep.subr.mxu0 0.0
        %1302 = vmatpush1.msra.mxu0 0.0
        %1303 = vmatprep.subr.mxu0 0.0
        %1304 = vmatpush1.msra.mxu0 0.0
        %1305 = vmatprep.subr.mxu0 0.0
        %1306 = vmatpush1.msra.mxu0 0.0
        %1307 = vmatprep.subr.mxu0 0.0
        %1308 = vmatpush1.msra.mxu0 0.0
        %1309 = vmatprep.subr.mxu0 0.0
        %1310 = vmatpush1.msra.mxu0 0.0
        %1311 = vmatprep.subr.mxu0 0.0
        %1312 = vmatpush1.msra.mxu0 0.0
        %1313 = vmatprep.mubr.f32.mxu0 0.0
        %1314 = vmatmul.mubr.f32.gmra.mrb[0].mxu0 %v1247
        %v1315 = vpop.f32.mrb[0].mxu0
        %v1316 = vadd.f32 %v392, %v1315
        %v1317 = vpop.f32.mrb[0].mxu0
        %1318 = vdwg.mxu0
        %s1319 = scalar_lea.vmem %s1, 4
        %v1320 = vld [vmem:[%s1319] sm:$0xf]
        %v1321 = vmul.f32 %v1316, %v1316
        %v1322 = vsel %vm397, %v1321, 0.0
        %1323 = vadd.xlane.f32.xlu0 %v1322
        %v1324 = vpop.xlane.xlu0 %1323
        %v1325 = vmul.f32 %v1324, %v401
        %v1326 = vadd.f32 %v1325, 1e-05
        %v1327 = vrsqrt.pop %v1326
        %v1328 = vmul.f32 %v1316, %v1327
        %v1329 = vlaneseq
        %v1330 = vshrl.u32 %v1329, 7
        %v1331 = vsub.s32 0, %v1330
        %v1332 = vrot.slane %v1320, %v1331
        %v1333 = vmul.f32 %v1328, %v1332
        %s1334 = scalar_lea.vmem %s2, 32
        %v1335 = vld [vmem:[%s1334] sm:$0xff]
        %v1336 = vld [vmem:[%s1334 + $0x8] sm:$0xff]
        %v1337 = vld [vmem:[%s1334 + $0x10] sm:$0xff]
        %v1338 = vld [vmem:[%s1334 + $0x18] sm:$0xff]
        %v1340 = vsel %vm397, %v1333, 0
        %1342 = vmatprep.subr.mxu0 0.0
        %1343 = vmatpush1.msra.mxu0 %v1335
        %1344 = vmatprep.subr.mxu0 0.0
        %1345 = vmatpush1.msra.mxu0 %v1336
        %1346 = vmatprep.subr.mxu0 0.0
        %1347 = vmatpush1.msra.mxu0 %v1337
        %1348 = vmatprep.subr.mxu0 0.0
        %1349 = vmatpush1.msra.mxu0 %v1338
        %1350 = vmatprep.subr.mxu0 0.0
        %1351 = vmatpush1.msra.mxu0 0.0
        %1352 = vmatprep.subr.mxu0 0.0
        %1353 = vmatpush1.msra.mxu0 0.0
        %1354 = vmatprep.subr.mxu0 0.0
        %1355 = vmatpush1.msra.mxu0 0.0
        %1356 = vmatprep.subr.mxu0 0.0
        %1357 = vmatpush1.msra.mxu0 0.0
        %1358 = vmatprep.subr.mxu0 0.0
        %1359 = vmatpush1.msra.mxu0 0.0
        %1360 = vmatprep.subr.mxu0 0.0
        %1361 = vmatpush1.msra.mxu0 0.0
        %1362 = vmatprep.subr.mxu0 0.0
        %1363 = vmatpush1.msra.mxu0 0.0
        %1364 = vmatprep.subr.mxu0 0.0
        %1365 = vmatpush1.msra.mxu0 0.0
        %1366 = vmatprep.subr.mxu0 0.0
        %1367 = vmatpush1.msra.mxu0 0.0
        %1368 = vmatprep.subr.mxu0 0.0
        %1369 = vmatpush1.msra.mxu0 0.0
        %1370 = vmatprep.subr.mxu0 0.0
        %1371 = vmatpush1.msra.mxu0 0.0
        %1372 = vmatprep.subr.mxu0 0.0
        %1373 = vmatpush1.msra.mxu0 0.0
        %1374 = vmatprep.subr.mxu0 0.0
        %1375 = vmatpush1.msra.mxu0 0.0
        %1376 = vmatprep.subr.mxu0 0.0
        %1377 = vmatpush1.msra.mxu0 0.0
        %1378 = vmatprep.subr.mxu0 0.0
        %1379 = vmatpush1.msra.mxu0 0.0
        %1380 = vmatprep.subr.mxu0 0.0
        %1381 = vmatpush1.msra.mxu0 0.0
        %1382 = vmatprep.subr.mxu0 0.0
        %1383 = vmatpush1.msra.mxu0 0.0
        %1384 = vmatprep.subr.mxu0 0.0
        %1385 = vmatpush1.msra.mxu0 0.0
        %1386 = vmatprep.subr.mxu0 0.0
        %1387 = vmatpush1.msra.mxu0 0.0
        %1388 = vmatprep.subr.mxu0 0.0
        %1389 = vmatpush1.msra.mxu0 0.0
        %1390 = vmatprep.subr.mxu0 0.0
        %1391 = vmatpush1.msra.mxu0 0.0
        %1392 = vmatprep.subr.mxu0 0.0
        %1393 = vmatpush1.msra.mxu0 0.0
        %1394 = vmatprep.subr.mxu0 0.0
        %1395 = vmatpush1.msra.mxu0 0.0
        %1396 = vmatprep.subr.mxu0 0.0
        %1397 = vmatpush1.msra.mxu0 0.0
        %1398 = vmatprep.subr.mxu0 0.0
        %1399 = vmatpush1.msra.mxu0 0.0
        %1400 = vmatprep.subr.mxu0 0.0
        %1401 = vmatpush1.msra.mxu0 0.0
        %1402 = vmatprep.subr.mxu0 0.0
        %1403 = vmatpush1.msra.mxu0 0.0
        %1404 = vmatprep.subr.mxu0 0.0
        %1405 = vmatpush1.msra.mxu0 0.0
        %1406 = vmatprep.mubr.f32.mxu0 0.0
        %1407 = vmatmul.mubr.f32.gmra.mrb[0].mxu0 %v1340
        %v1408 = vpop.f32.mrb[0].mxu0
        %v1409 = vadd.f32 0.0, %v1408
        %v1410 = vpop.f32.mrb[0].mxu0
        %1411 = vdwg.mxu0
        %s1412 = scalar_lea.vmem [#allocation5], 4
        %v1413 = vld [vmem:[%s1412] sm:$0xf]
        %v1414 = vlaneseq
        %v1415 = vshrl.u32 %v1414, 7
        %v1416 = vsub.s32 3, %v1415
        %v1417 = vrot.slane %v1413, %v1416
        %v1418 = vmul.f32 %v1409, %v1417
        %v1419 = vrot.slane %v1409, 7
        %v1420 = vsel %vm495, %v1419, 0.0
        %v1421 = vlaneseq
        %v1422 = vshrl.u32 %v1421, 7
        %v1423 = vsub.s32 2, %v1422
        %v1424 = vrot.slane %v1413, %v1423
        %v1425 = vmul.f32 %v1420, %v1424
        %v1426 = vadd.f32 %v1418, %v1425
        %v1427 = vrot.slane %v1409, 6
        %v1428 = vsel %vm504, %v1427, 0.0
        %v1429 = vlaneseq
        %v1430 = vshrl.u32 %v1429, 7
        %v1431 = vsub.s32 1, %v1430
        %v1432 = vrot.slane %v1413, %v1431
        %v1433 = vmul.f32 %v1428, %v1432
        %v1434 = vadd.f32 %v1426, %v1433
        %v1435 = vrot.slane %v1409, 5
        %v1436 = vsel %vm513, %v1435, 0.0
        %v1437 = vlaneseq
        %v1438 = vshrl.u32 %v1437, 7
        %v1439 = vsub.s32 0, %v1438
        %v1440 = vrot.slane %v1413, %v1439
        %v1441 = vmul.f32 %v1436, %v1440
        %v1442 = vadd.f32 %v1434, %v1441
        %v1443 = vlaneseq
        %v1444 = vshrl.u32 %v1443, 7
        %v1445 = vsub.s32 1, %v1444
        %v1446 = vrot.slane %v1320, %v1445
        %v1447 = vadd.f32 %v1442, %v1446
        %v1448 = vand.u32 2147483647, %v1447
        %v1449 = vsub.f32 0.0, %v1448
        %v1450 = vmul.f32 %v1449, 1.442695
        %v1451 = vpow.pop %v1450
        %v1452 = vadd.f32 %v1451, 1.0
        %v1453 = vrcp.pop %v1452
        %vm1454 = vcmp.ge.f32.partialorder %v1447, 0.0
        %v1455 = vmul.f32 %v1451, %v1453
        %v1456 = vsel %vm1454, %v1453, %v1455
        %v1457 = vmul.f32 %v1447, %v1456
        %s1458 = scalar_lea.vmem %s4, 64
        %v1459 = vld [vmem:[%s1458] sm:$0xff]
        %v1460 = vld [vmem:[%s1458 + $0x8] sm:$0xff]
        %v1461 = vld [vmem:[%s1458 + $0x10] sm:$0xff]
        %v1462 = vld [vmem:[%s1458 + $0x18] sm:$0xff]
        %v1463 = vld [vmem:[%s1458 + $0x20] sm:$0xff]
        %v1464 = vld [vmem:[%s1458 + $0x28] sm:$0xff]
        %v1465 = vld [vmem:[%s1458 + $0x30] sm:$0xff]
        %v1466 = vld [vmem:[%s1458 + $0x38] sm:$0xff]
        %v1468 = vsel %vm544, %v1457, 0
        %1470 = vmatprep.subr.mxu0 0.0
        %1471 = vmatpush1.msra.mxu0 %v1459
        %1472 = vmatprep.subr.mxu0 0.0
        %1473 = vmatpush1.msra.mxu0 %v1460
        %1474 = vmatprep.subr.mxu0 0.0
        %1475 = vmatpush1.msra.mxu0 %v1461
        %1476 = vmatprep.subr.mxu0 0.0
        %1477 = vmatpush1.msra.mxu0 %v1462
        %1478 = vmatprep.subr.mxu0 0.0
        %1479 = vmatpush1.msra.mxu0 %v1463
        %1480 = vmatprep.subr.mxu0 0.0
        %1481 = vmatpush1.msra.mxu0 %v1464
        %1482 = vmatprep.subr.mxu0 0.0
        %1483 = vmatpush1.msra.mxu0 %v1465
        %1484 = vmatprep.subr.mxu0 0.0
        %1485 = vmatpush1.msra.mxu0 %v1466
        %1486 = vmatprep.subr.mxu0 0.0
        %1487 = vmatpush1.msra.mxu0 0.0
        %1488 = vmatprep.subr.mxu0 0.0
        %1489 = vmatpush1.msra.mxu0 0.0
        %1490 = vmatprep.subr.mxu0 0.0
        %1491 = vmatpush1.msra.mxu0 0.0
        %1492 = vmatprep.subr.mxu0 0.0
        %1493 = vmatpush1.msra.mxu0 0.0
        %1494 = vmatprep.subr.mxu0 0.0
        %1495 = vmatpush1.msra.mxu0 0.0
        %1496 = vmatprep.subr.mxu0 0.0
        %1497 = vmatpush1.msra.mxu0 0.0
        %1498 = vmatprep.subr.mxu0 0.0
        %1499 = vmatpush1.msra.mxu0 0.0
        %1500 = vmatprep.subr.mxu0 0.0
        %1501 = vmatpush1.msra.mxu0 0.0
        %1502 = vmatprep.subr.mxu0 0.0
        %1503 = vmatpush1.msra.mxu0 0.0
        %1504 = vmatprep.subr.mxu0 0.0
        %1505 = vmatpush1.msra.mxu0 0.0
        %1506 = vmatprep.subr.mxu0 0.0
        %1507 = vmatpush1.msra.mxu0 0.0
        %1508 = vmatprep.subr.mxu0 0.0
        %1509 = vmatpush1.msra.mxu0 0.0
        %1510 = vmatprep.subr.mxu0 0.0
        %1511 = vmatpush1.msra.mxu0 0.0
        %1512 = vmatprep.subr.mxu0 0.0
        %1513 = vmatpush1.msra.mxu0 0.0
        %1514 = vmatprep.subr.mxu0 0.0
        %1515 = vmatpush1.msra.mxu0 0.0
        %1516 = vmatprep.subr.mxu0 0.0
        %1517 = vmatpush1.msra.mxu0 0.0
        %1518 = vmatprep.subr.mxu0 0.0
        %1519 = vmatpush1.msra.mxu0 0.0
        %1520 = vmatprep.subr.mxu0 0.0
        %1521 = vmatpush1.msra.mxu0 0.0
        %1522 = vmatprep.subr.mxu0 0.0
        %1523 = vmatpush1.msra.mxu0 0.0
        %1524 = vmatprep.subr.mxu0 0.0
        %1525 = vmatpush1.msra.mxu0 0.0
        %1526 = vmatprep.subr.mxu0 0.0
        %1527 = vmatpush1.msra.mxu0 0.0
        %1528 = vmatprep.subr.mxu0 0.0
        %1529 = vmatpush1.msra.mxu0 0.0
        %1530 = vmatprep.subr.mxu0 0.0
        %1531 = vmatpush1.msra.mxu0 0.0
        %1532 = vmatprep.subr.mxu0 0.0
        %1533 = vmatpush1.msra.mxu0 0.0
        %1534 = vmatprep.mubr.f32.mxu0 0.0
        %1535 = vmatmul.mubr.f32.gmra.mrb[0].mxu0 %v1468
        %v1536 = vpop.f32.mrb[0].mxu0
        %v1537 = vadd.f32 0.0, %v1536
        %v1538 = vpop.f32.mrb[0].mxu0
        %1539 = vdwg.mxu0
        %v1540 = vlaneseq
        %v1541 = vshrl.u32 %v1540, 7
        %v1542 = vsub.s32 2, %v1541
        %v1543 = vrot.slane %v1320, %v1542
        %v1544 = vadd.f32 %v1537, %v1543
        %v1545 = vmax.f32 %v1544, 0.0
        %v1546 = vand.u32 2147483647, %v1544
        %v1547 = vsub.f32 0.0, %v1546
        %v1548 = vmul.f32 %v1547, 1.442695
        %v1549 = vpow.pop %v1548
        %v1550 = vadd.f32 %v1549, 1.0
        %v1551 = vlog2.pop %v1550
        %v1552 = vmul.f32 %v1551, 0.6931472
        %v1553 = vmul.f32 -0.5, %v1549
        %v1554 = vadd.f32 %v1553, 1.0
        %v1555 = vmul.f32 %v1554, %v1549
        %v1556 = vand.u32 2147483647, %v1549
        %vm1557 = vcmp.lt.f32.partialorder %v1556, 0.0004427343
        %v1558 = vsel %vm1557, %v1555, %v1552
        %v1559 = vadd.f32 %v1545, %v1558
        %1561 = vrot.lane.b32.xlu0 %v1537, 48
        %v1562 = vpop.permute.xlu0 %1561
        %1564 = vxpose.xlu0.b32.start [1/16] %v1562, 128
        %1565 = vxpose.xlu0.b32.cont [2/16] 0.0, 128
        %1566 = vxpose.xlu0.b32.cont [3/16] 0.0, 128
        %1567 = vxpose.xlu0.b32.cont [4/16] 0.0, 128
        %1568 = vxpose.xlu0.b32.cont [5/16] 0.0, 128
        %1569 = vxpose.xlu0.b32.cont [6/16] 0.0, 128
        %1570 = vxpose.xlu0.b32.cont [7/16] 0.0, 128
        %1571 = vxpose.xlu0.b32.cont [8/16] 0.0, 128
        %1572 = vxpose.xlu0.b32.cont [9/16] 0.0, 128
        %1573 = vxpose.xlu0.b32.cont [10/16] 0.0, 128
        %1574 = vxpose.xlu0.b32.cont [11/16] 0.0, 128
        %1575 = vxpose.xlu0.b32.cont [12/16] 0.0, 128
        %1576 = vxpose.xlu0.b32.cont [13/16] 0.0, 128
        %1577 = vxpose.xlu0.b32.cont [14/16] 0.0, 128
        %1578 = vxpose.xlu0.b32.cont [15/16] 0.0, 128
        %1579 = vxpose.xlu0.b32.end [16/16] 0.0, 128
        %v1580 = vpop.trf.xlu0
        %v1581 = vpop.trf.xlu0
        %v1582 = vpop.trf.xlu0
        %v1583 = vpop.trf.xlu0
        %v1584 = vpop.trf.xlu0
        %v1585 = vpop.trf.xlu0
        %v1586 = vpop.trf.xlu0
        %v1587 = vpop.trf.xlu0
        %v1588 = vpop.trf.xlu0
        %v1589 = vpop.trf.xlu0
        %v1590 = vpop.trf.xlu0
        %v1591 = vpop.trf.xlu0
        %v1592 = vpop.trf.xlu0
        %v1593 = vpop.trf.xlu0
        %v1594 = vpop.trf.xlu0
        %v1595 = vpop.trf.xlu0
        %s1596 = scalar_lea.vmem [#allocation7], 16
        %v1597 = vld [vmem:[%s1596] sm:$0xff]
        %v1598 = vld [vmem:[%s1596 + $0x8] sm:$0xff]
        %v1599 = vmul.f32 %v1559, %v1457
        %v1601 = vcombine.high %v1559, %v1559
        %v1603 = vunpack.c.l.s4 1966171168
        %v1604 = vunpack.c.0.s8 %v1603
        %v1605 = vlaneseq
        %v1606 = vshrl.u32 %v1605, 7
        %v1607 = vsub.s32 %v1604, %v1606
        %v1608 = vrot.slane %v1559, %v1607
        %v1610 = vunpack.c.l.s4 1966171168
        %v1611 = vunpack.c.0.s8 %v1610
        %v1612 = vlaneseq
        %v1613 = vshrl.u32 %v1612, 7
        %v1614 = vsub.s32 %v1611, %v1613
        %v1615 = vrot.slane %v1601, %v1614
        %v1616 = vcombine.high %v1608, %v1608
        %v1617 = vcombine.high %v1615, %v1615
        %v1619 = vunpack.c.l.s4 1966171168
        %v1620 = vunpack.c.0.s8 %v1619
        %v1621 = vlaneseq
        %v1622 = vshrl.u32 %v1621, 7
        %v1623 = vsub.s32 %v1620, %v1622
        %v1624 = vrot.slane %v1608, %v1623
        %v1626 = vunpack.c.l.s4 1966171168
        %v1627 = vunpack.c.0.s8 %v1626
        %v1628 = vlaneseq
        %v1629 = vshrl.u32 %v1628, 7
        %v1630 = vsub.s32 %v1627, %v1629
        %v1631 = vrot.slane %v1615, %v1630
        %v1633 = vunpack.c.l.s4 1966171168
        %v1634 = vunpack.c.0.s8 %v1633
        %v1635 = vlaneseq
        %v1636 = vshrl.u32 %v1635, 7
        %v1637 = vsub.s32 %v1634, %v1636
        %v1638 = vrot.slane %v1616, %v1637
        %v1640 = vunpack.c.l.s4 1966171168
        %v1641 = vunpack.c.0.s8 %v1640
        %v1642 = vlaneseq
        %v1643 = vshrl.u32 %v1642, 7
        %v1644 = vsub.s32 %v1641, %v1643
        %v1645 = vrot.slane %v1617, %v1644
        %v1646 = vcombine.high %v1624, %v1624
        %v1647 = vcombine.high %v1631, %v1631
        %v1648 = vcombine.high %v1638, %v1638
        %v1649 = vcombine.high %v1645, %v1645
        %v1650 = vlaneseq
        %v1651 = vshrl.u32 %v1650, 7
        %v1652 = vsub.s32 0, %v1651
        %v1653 = vrot.slane %v1624, %v1652
        %v1654 = vlaneseq
        %v1655 = vshrl.u32 %v1654, 7
        %v1656 = vsub.s32 0, %v1655
        %v1657 = vrot.slane %v1638, %v1656
        %v1658 = vlaneseq
        %v1659 = vshrl.u32 %v1658, 7
        %v1660 = vsub.s32 0, %v1659
        %v1661 = vrot.slane %v1646, %v1660
        %v1662 = vlaneseq
        %v1663 = vshrl.u32 %v1662, 7
        %v1664 = vsub.s32 0, %v1663
        %v1665 = vrot.slane %v1648, %v1664
        %v1666 = vlaneseq
        %v1667 = vshrl.u32 %v1666, 7
        %v1668 = vsub.s32 0, %v1667
        %v1669 = vrot.slane %v1631, %v1668
        %v1670 = vlaneseq
        %v1671 = vshrl.u32 %v1670, 7
        %v1672 = vsub.s32 0, %v1671
        %v1673 = vrot.slane %v1645, %v1672
        %v1674 = vlaneseq
        %v1675 = vshrl.u32 %v1674, 7
        %v1676 = vsub.s32 0, %v1675
        %v1677 = vrot.slane %v1647, %v1676
        %v1678 = vlaneseq
        %v1679 = vshrl.u32 %v1678, 7
        %v1680 = vsub.s32 0, %v1679
        %v1681 = vrot.slane %v1649, %v1680
        %v1690 = vmul.f32 %v1653, %v1597
        %v1691 = vmul.f32 %v1653, %v1598
        %v1692 = vmul.f32 %v1657, %v1597
        %v1693 = vmul.f32 %v1657, %v1598
        %v1694 = vmul.f32 %v1661, %v1597
        %v1695 = vmul.f32 %v1661, %v1598
        %v1696 = vmul.f32 %v1665, %v1597
        %v1697 = vmul.f32 %v1665, %v1598
        %v1698 = vmul.f32 %v1669, %v1597
        %v1699 = vmul.f32 %v1669, %v1598
        %v1700 = vmul.f32 %v1673, %v1597
        %v1701 = vmul.f32 %v1673, %v1598
        %v1702 = vmul.f32 %v1677, %v1597
        %v1703 = vmul.f32 %v1677, %v1598
        %v1704 = vmul.f32 %v1681, %v1597
        %v1705 = vmul.f32 %v1681, %v1598
        %v1706 = vmul.f32 %v1690, 1.442695
        %v1707 = vpow.pop %v1706
        %v1708 = vmul.f32 %v1691, 1.442695
        %v1709 = vpow.pop %v1708
        %v1710 = vmul.f32 %v1692, 1.442695
        %v1711 = vpow.pop %v1710
        %v1712 = vmul.f32 %v1693, 1.442695
        %v1713 = vpow.pop %v1712
        %v1714 = vmul.f32 %v1694, 1.442695
        %v1715 = vpow.pop %v1714
        %v1716 = vmul.f32 %v1695, 1.442695
        %v1717 = vpow.pop %v1716
        %v1718 = vmul.f32 %v1696, 1.442695
        %v1719 = vpow.pop %v1718
        %v1720 = vmul.f32 %v1697, 1.442695
        %v1721 = vpow.pop %v1720
        %v1722 = vmul.f32 %v1698, 1.442695
        %v1723 = vpow.pop %v1722
        %v1724 = vmul.f32 %v1699, 1.442695
        %v1725 = vpow.pop %v1724
        %v1726 = vmul.f32 %v1700, 1.442695
        %v1727 = vpow.pop %v1726
        %v1728 = vmul.f32 %v1701, 1.442695
        %v1729 = vpow.pop %v1728
        %v1730 = vmul.f32 %v1702, 1.442695
        %v1731 = vpow.pop %v1730
        %v1732 = vmul.f32 %v1703, 1.442695
        %v1733 = vpow.pop %v1732
        %v1734 = vmul.f32 %v1704, 1.442695
        %v1735 = vpow.pop %v1734
        %v1736 = vmul.f32 %v1705, 1.442695
        %v1737 = vpow.pop %v1736
        %v1738 = vlaneseq
        %v1739 = vshrl.u32 %v1738, 7
        %v1740 = vsub.s32 0, %v1739
        %v1741 = vrot.slane %v1537, %v1740
        %s1743 = sor.u32 256, 64
        %1744 = vbcast.lane.b32.xlu0 %v1741, %s1743
        %v1745 = vpop.permute.xlu0 %1744
        %s1747 = sor.u32 256, 72
        %1748 = vbcast.lane.b32.xlu0 %v1741, %s1747
        %v1749 = vpop.permute.xlu0 %1748
        %v1750 = vlaneseq
        %v1751 = vshrl.u32 %v1750, 7
        %v1752 = vsub.s32 1, %v1751
        %v1753 = vrot.slane %v1537, %v1752
        %s1755 = sor.u32 256, 64
        %1756 = vbcast.lane.b32.xlu0 %v1753, %s1755
        %v1757 = vpop.permute.xlu0 %1756
        %s1759 = sor.u32 256, 72
        %1760 = vbcast.lane.b32.xlu0 %v1753, %s1759
        %v1761 = vpop.permute.xlu0 %1760
        %v1762 = vlaneseq
        %v1763 = vshrl.u32 %v1762, 7
        %v1764 = vsub.s32 2, %v1763
        %v1765 = vrot.slane %v1537, %v1764
        %s1767 = sor.u32 256, 64
        %1768 = vbcast.lane.b32.xlu0 %v1765, %s1767
        %v1769 = vpop.permute.xlu0 %1768
        %s1771 = sor.u32 256, 72
        %1772 = vbcast.lane.b32.xlu0 %v1765, %s1771
        %v1773 = vpop.permute.xlu0 %1772
        %v1774 = vlaneseq
        %v1775 = vshrl.u32 %v1774, 7
        %v1776 = vsub.s32 3, %v1775
        %v1777 = vrot.slane %v1537, %v1776
        %s1779 = sor.u32 256, 64
        %1780 = vbcast.lane.b32.xlu0 %v1777, %s1779
        %v1781 = vpop.permute.xlu0 %1780
        %s1783 = sor.u32 256, 72
        %1784 = vbcast.lane.b32.xlu0 %v1777, %s1783
        %v1785 = vpop.permute.xlu0 %1784
        %v1786 = vlaneseq
        %v1787 = vshrl.u32 %v1786, 7
        %v1788 = vsub.s32 4, %v1787
        %v1789 = vrot.slane %v1537, %v1788
        %s1791 = sor.u32 256, 64
        %1792 = vbcast.lane.b32.xlu0 %v1789, %s1791
        %v1793 = vpop.permute.xlu0 %1792
        %s1795 = sor.u32 256, 72
        %1796 = vbcast.lane.b32.xlu0 %v1789, %s1795
        %v1797 = vpop.permute.xlu0 %1796
        %v1798 = vlaneseq
        %v1799 = vshrl.u32 %v1798, 7
        %v1800 = vsub.s32 5, %v1799
        %v1801 = vrot.slane %v1537, %v1800
        %s1803 = sor.u32 256, 64
        %1804 = vbcast.lane.b32.xlu0 %v1801, %s1803
        %v1805 = vpop.permute.xlu0 %1804
        %s1807 = sor.u32 256, 72
        %1808 = vbcast.lane.b32.xlu0 %v1801, %s1807
        %v1809 = vpop.permute.xlu0 %1808
        %v1810 = vlaneseq
        %v1811 = vshrl.u32 %v1810, 7
        %v1812 = vsub.s32 6, %v1811
        %v1813 = vrot.slane %v1537, %v1812
        %s1815 = sor.u32 256, 64
        %1816 = vbcast.lane.b32.xlu0 %v1813, %s1815
        %v1817 = vpop.permute.xlu0 %1816
        %s1819 = sor.u32 256, 72
        %1820 = vbcast.lane.b32.xlu0 %v1813, %s1819
        %v1821 = vpop.permute.xlu0 %1820
        %v1822 = vlaneseq
        %v1823 = vshrl.u32 %v1822, 7
        %v1824 = vsub.s32 7, %v1823
        %v1825 = vrot.slane %v1537, %v1824
        %s1827 = sor.u32 256, 64
        %1828 = vbcast.lane.b32.xlu0 %v1825, %s1827
        %v1829 = vpop.permute.xlu0 %1828
        %s1831 = sor.u32 256, 72
        %1832 = vbcast.lane.b32.xlu0 %v1825, %s1831
        %v1833 = vpop.permute.xlu0 %1832
        %v1835 = vcombine.high %v1599, %v1599
        %v1837 = vunpack.c.l.s4 1966171168
        %v1838 = vunpack.c.0.s8 %v1837
        %v1839 = vlaneseq
        %v1840 = vshrl.u32 %v1839, 7
        %v1841 = vsub.s32 %v1838, %v1840
        %v1842 = vrot.slane %v1599, %v1841
        %v1844 = vunpack.c.l.s4 1966171168
        %v1845 = vunpack.c.0.s8 %v1844
        %v1846 = vlaneseq
        %v1847 = vshrl.u32 %v1846, 7
        %v1848 = vsub.s32 %v1845, %v1847
        %v1849 = vrot.slane %v1835, %v1848
        %v1850 = vcombine.high %v1842, %v1842
        %v1851 = vcombine.high %v1849, %v1849
        %v1853 = vunpack.c.l.s4 1966171168
        %v1854 = vunpack.c.0.s8 %v1853
        %v1855 = vlaneseq
        %v1856 = vshrl.u32 %v1855, 7
        %v1857 = vsub.s32 %v1854, %v1856
        %v1858 = vrot.slane %v1842, %v1857
        %v1860 = vunpack.c.l.s4 1966171168
        %v1861 = vunpack.c.0.s8 %v1860
        %v1862 = vlaneseq
        %v1863 = vshrl.u32 %v1862, 7
        %v1864 = vsub.s32 %v1861, %v1863
        %v1865 = vrot.slane %v1849, %v1864
        %v1867 = vunpack.c.l.s4 1966171168
        %v1868 = vunpack.c.0.s8 %v1867
        %v1869 = vlaneseq
        %v1870 = vshrl.u32 %v1869, 7
        %v1871 = vsub.s32 %v1868, %v1870
        %v1872 = vrot.slane %v1850, %v1871
        %v1874 = vunpack.c.l.s4 1966171168
        %v1875 = vunpack.c.0.s8 %v1874
        %v1876 = vlaneseq
        %v1877 = vshrl.u32 %v1876, 7
        %v1878 = vsub.s32 %v1875, %v1877
        %v1879 = vrot.slane %v1851, %v1878
        %v1880 = vcombine.high %v1858, %v1858
        %v1881 = vcombine.high %v1865, %v1865
        %v1882 = vcombine.high %v1872, %v1872
        %v1883 = vcombine.high %v1879, %v1879
        %v1884 = vlaneseq
        %v1885 = vshrl.u32 %v1884, 7
        %v1886 = vsub.s32 0, %v1885
        %v1887 = vrot.slane %v1858, %v1886
        %v1888 = vlaneseq
        %v1889 = vshrl.u32 %v1888, 7
        %v1890 = vsub.s32 0, %v1889
        %v1891 = vrot.slane %v1872, %v1890
        %v1892 = vlaneseq
        %v1893 = vshrl.u32 %v1892, 7
        %v1894 = vsub.s32 0, %v1893
        %v1895 = vrot.slane %v1880, %v1894
        %v1896 = vlaneseq
        %v1897 = vshrl.u32 %v1896, 7
        %v1898 = vsub.s32 0, %v1897
        %v1899 = vrot.slane %v1882, %v1898
        %v1900 = vlaneseq
        %v1901 = vshrl.u32 %v1900, 7
        %v1902 = vsub.s32 0, %v1901
        %v1903 = vrot.slane %v1865, %v1902
        %v1904 = vlaneseq
        %v1905 = vshrl.u32 %v1904, 7
        %v1906 = vsub.s32 0, %v1905
        %v1907 = vrot.slane %v1879, %v1906
        %v1908 = vlaneseq
        %v1909 = vshrl.u32 %v1908, 7
        %v1910 = vsub.s32 0, %v1909
        %v1911 = vrot.slane %v1881, %v1910
        %v1912 = vlaneseq
        %v1913 = vshrl.u32 %v1912, 7
        %v1914 = vsub.s32 0, %v1913
        %v1915 = vrot.slane %v1883, %v1914
        %v1924 = vmul.f32 %v1745, %v1887
        %v1925 = vmul.f32 %v1749, %v1887
        %v1926 = vmul.f32 %v1757, %v1891
        %v1927 = vmul.f32 %v1761, %v1891
        %v1928 = vmul.f32 %v1769, %v1895
        %v1929 = vmul.f32 %v1773, %v1895
        %v1930 = vmul.f32 %v1781, %v1899
        %v1931 = vmul.f32 %v1785, %v1899
        %v1932 = vmul.f32 %v1793, %v1903
        %v1933 = vmul.f32 %v1797, %v1903
        %v1934 = vmul.f32 %v1805, %v1907
        %v1935 = vmul.f32 %v1809, %v1907
        %v1936 = vmul.f32 %v1817, %v1911
        %v1937 = vmul.f32 %v1821, %v1911
        %v1938 = vmul.f32 %v1829, %v1915
        %v1939 = vmul.f32 %v1833, %v1915
        %v1940 = vmul.f32 %v1707, 0.0
        %v1941 = vmul.f32 %v1709, 0.0
        %v1942 = vadd.f32 %v1940, %v1924
        %v1943 = vadd.f32 %v1941, %v1925
        %1945 = vset.pattern.permute.xlu0 0
        %1946 = vperm.xlu0 %1945, %v1580
        %v1947 = vpop.permute.xlu0 %1946
        %1950 = vset.pattern.permute.xlu0 0
        %1951 = vperm.xlu0 %1950, %v1581
        %v1952 = vpop.permute.xlu0 %1951
        %v1954 = vmul.f32 %v1942, %v1947
        %v1955 = vmul.f32 %v1943, %v1952
        %v1956 = vsel %vm544, %v1954, 0.0
        %v1957 = vsel %vm544, %v1955, 0.0
        %v1958 = vadd.f32 %v1956, %v1957
        %v1959 = vrot.slane %v1958, 4
        %v1960 = vadd.f32 %v1958, %v1959
        %v1961 = vrot.slane %v1960, 2
        %v1962 = vadd.f32 %v1960, %v1961
        %v1963 = vrot.slane %v1962, 1
        %v1964 = vadd.f32 %v1962, %v1963
        %v1965 = vmul.f32 %v1711, %v1942
        %v1966 = vmul.f32 %v1713, %v1943
        %v1967 = vadd.f32 %v1965, %v1926
        %v1968 = vadd.f32 %v1966, %v1927
        %1969 = vset.pattern.permute.xlu0 1
        %1970 = vperm.xlu0 %1969, %v1580
        %v1971 = vpop.permute.xlu0 %1970
        %1973 = vset.pattern.permute.xlu0 1
        %1974 = vperm.xlu0 %1973, %v1581
        %v1975 = vpop.permute.xlu0 %1974
        %v1977 = vmul.f32 %v1967, %v1971
        %v1978 = vmul.f32 %v1968, %v1975
        %v1979 = vsel %vm544, %v1977, 0.0
        %v1980 = vsel %vm544, %v1978, 0.0
        %v1981 = vadd.f32 %v1979, %v1980
        %v1982 = vrot.slane %v1981, 4
        %v1983 = vadd.f32 %v1981, %v1982
        %v1984 = vrot.slane %v1983, 2
        %v1985 = vadd.f32 %v1983, %v1984
        %v1986 = vrot.slane %v1985, 1
        %v1987 = vadd.f32 %v1985, %v1986
        %v1988 = vmul.f32 %v1715, %v1967
        %v1989 = vmul.f32 %v1717, %v1968
        %v1990 = vadd.f32 %v1988, %v1928
        %v1991 = vadd.f32 %v1989, %v1929
        %1992 = vset.pattern.permute.xlu0 2
        %1993 = vperm.xlu0 %1992, %v1580
        %v1994 = vpop.permute.xlu0 %1993
        %1996 = vset.pattern.permute.xlu0 2
        %1997 = vperm.xlu0 %1996, %v1581
        %v1998 = vpop.permute.xlu0 %1997
        %v2000 = vmul.f32 %v1990, %v1994
        %v2001 = vmul.f32 %v1991, %v1998
        %v2002 = vsel %vm544, %v2000, 0.0
        %v2003 = vsel %vm544, %v2001, 0.0
        %v2004 = vadd.f32 %v2002, %v2003
        %v2005 = vrot.slane %v2004, 4
        %v2006 = vadd.f32 %v2004, %v2005
        %v2007 = vrot.slane %v2006, 2
        %v2008 = vadd.f32 %v2006, %v2007
        %v2009 = vrot.slane %v2008, 1
        %v2010 = vadd.f32 %v2008, %v2009
        %v2011 = vmul.f32 %v1719, %v1990
        %v2012 = vmul.f32 %v1721, %v1991
        %v2013 = vadd.f32 %v2011, %v1930
        %v2014 = vadd.f32 %v2012, %v1931
        %2015 = vset.pattern.permute.xlu0 3
        %2016 = vperm.xlu0 %2015, %v1580
        %v2017 = vpop.permute.xlu0 %2016
        %2019 = vset.pattern.permute.xlu0 3
        %2020 = vperm.xlu0 %2019, %v1581
        %v2021 = vpop.permute.xlu0 %2020
        %v2023 = vmul.f32 %v2013, %v2017
        %v2024 = vmul.f32 %v2014, %v2021
        %v2025 = vsel %vm544, %v2023, 0.0
        %v2026 = vsel %vm544, %v2024, 0.0
        %v2027 = vadd.f32 %v2025, %v2026
        %v2028 = vrot.slane %v2027, 4
        %v2029 = vadd.f32 %v2027, %v2028
        %v2030 = vrot.slane %v2029, 2
        %v2031 = vadd.f32 %v2029, %v2030
        %v2032 = vrot.slane %v2031, 1
        %v2033 = vadd.f32 %v2031, %v2032
        %v2034 = vmul.f32 %v1723, %v2013
        %v2035 = vmul.f32 %v1725, %v2014
        %v2036 = vadd.f32 %v2034, %v1932
        %v2037 = vadd.f32 %v2035, %v1933
        %2038 = vset.pattern.permute.xlu0 4
        %2039 = vperm.xlu0 %2038, %v1580
        %v2040 = vpop.permute.xlu0 %2039
        %2042 = vset.pattern.permute.xlu0 4
        %2043 = vperm.xlu0 %2042, %v1581
        %v2044 = vpop.permute.xlu0 %2043
        %v2046 = vmul.f32 %v2036, %v2040
        %v2047 = vmul.f32 %v2037, %v2044
        %v2048 = vsel %vm544, %v2046, 0.0
        %v2049 = vsel %vm544, %v2047, 0.0
        %v2050 = vadd.f32 %v2048, %v2049
        %v2051 = vrot.slane %v2050, 4
        %v2052 = vadd.f32 %v2050, %v2051
        %v2053 = vrot.slane %v2052, 2
        %v2054 = vadd.f32 %v2052, %v2053
        %v2055 = vrot.slane %v2054, 1
        %v2056 = vadd.f32 %v2054, %v2055
        %v2057 = vmul.f32 %v1727, %v2036
        %v2058 = vmul.f32 %v1729, %v2037
        %v2059 = vadd.f32 %v2057, %v1934
        %v2060 = vadd.f32 %v2058, %v1935
        %2061 = vset.pattern.permute.xlu0 5
        %2062 = vperm.xlu0 %2061, %v1580
        %v2063 = vpop.permute.xlu0 %2062
        %2065 = vset.pattern.permute.xlu0 5
        %2066 = vperm.xlu0 %2065, %v1581
        %v2067 = vpop.permute.xlu0 %2066
        %v2069 = vmul.f32 %v2059, %v2063
        %v2070 = vmul.f32 %v2060, %v2067
        %v2071 = vsel %vm544, %v2069, 0.0
        %v2072 = vsel %vm544, %v2070, 0.0
        %v2073 = vadd.f32 %v2071, %v2072
        %v2074 = vrot.slane %v2073, 4
        %v2075 = vadd.f32 %v2073, %v2074
        %v2076 = vrot.slane %v2075, 2
        %v2077 = vadd.f32 %v2075, %v2076
        %v2078 = vrot.slane %v2077, 1
        %v2079 = vadd.f32 %v2077, %v2078
        %v2080 = vmul.f32 %v1731, %v2059
        %v2081 = vmul.f32 %v1733, %v2060
        %v2082 = vadd.f32 %v2080, %v1936
        %v2083 = vadd.f32 %v2081, %v1937
        %2084 = vset.pattern.permute.xlu0 6
        %2085 = vperm.xlu0 %2084, %v1580
        %v2086 = vpop.permute.xlu0 %2085
        %2088 = vset.pattern.permute.xlu0 6
        %2089 = vperm.xlu0 %2088, %v1581
        %v2090 = vpop.permute.xlu0 %2089
        %v2092 = vmul.f32 %v2082, %v2086
        %v2093 = vmul.f32 %v2083, %v2090
        %v2094 = vsel %vm544, %v2092, 0.0
        %v2095 = vsel %vm544, %v2093, 0.0
        %v2096 = vadd.f32 %v2094, %v2095
        %v2097 = vrot.slane %v2096, 4
        %v2098 = vadd.f32 %v2096, %v2097
        %v2099 = vrot.slane %v2098, 2
        %v2100 = vadd.f32 %v2098, %v2099
        %v2101 = vrot.slane %v2100, 1
        %v2102 = vadd.f32 %v2100, %v2101
        %v2103 = vmul.f32 %v1735, %v2082
        %v2104 = vmul.f32 %v1737, %v2083
        %v2105 = vadd.f32 %v2103, %v1938
        %v2106 = vadd.f32 %v2104, %v1939
        %2107 = vset.pattern.permute.xlu0 7
        %2108 = vperm.xlu0 %2107, %v1580
        %v2109 = vpop.permute.xlu0 %2108
        %2111 = vset.pattern.permute.xlu0 7
        %2112 = vperm.xlu0 %2111, %v1581
        %v2113 = vpop.permute.xlu0 %2112
        %v2115 = vmul.f32 %v2105, %v2109
        %v2116 = vmul.f32 %v2106, %v2113
        %v2117 = vsel %vm544, %v2115, 0.0
        %v2118 = vsel %vm544, %v2116, 0.0
        %v2119 = vadd.f32 %v2117, %v2118
        %v2120 = vrot.slane %v2119, 4
        %v2121 = vadd.f32 %v2119, %v2120
        %v2122 = vrot.slane %v2121, 2
        %v2123 = vadd.f32 %v2121, %v2122
        %v2124 = vrot.slane %v2123, 1
        %v2125 = vadd.f32 %v2123, %v2124
        %v2126 = vsel %vm1203, %v1964, %v1987
        %v2127 = vsel %vm1205, %v2126, %v2010
        %v2128 = vsel %vm1207, %v2127, %v2033
        %v2129 = vsel %vm1209, %v2128, %v2056
        %v2130 = vsel %vm1211, %v2129, %v2079
        %v2131 = vsel %vm1213, %v2130, %v2102
        %v2132 = vsel %vm1215, %v2131, %v2125
        %v2133 = vlaneseq
        %v2134 = vshrl.u32 %v2133, 7
        %v2135 = vsub.s32 3, %v2134
        %v2136 = vrot.slane %v1320, %v2135
        %v2137 = vmul.f32 %v1457, %v2136
        %v2138 = vadd.f32 %v2132, %v2137
        %v2139 = vand.u32 2147483647, %v1409
        %v2140 = vsub.f32 0.0, %v2139
        %v2141 = vmul.f32 %v2140, 1.442695
        %v2142 = vpow.pop %v2141
        %v2143 = vadd.f32 %v2142, 1.0
        %v2144 = vrcp.pop %v2143
        %vm2145 = vcmp.ge.f32.partialorder %v1409, 0.0
        %v2146 = vmul.f32 %v2142, %v2144
        %v2147 = vsel %vm2145, %v2144, %v2146
        %v2148 = vmul.f32 %v1409, %v2147
        %2150 = vrot.lane.b32.xlu0 %v2148, 64
        %v2151 = vpop.permute.xlu0 %2150
        %v2153 = vmul.f32 %v2138, %v2151
        %s2154 = scalar_lea.vmem %s6, 64
        %v2155 = vld [vmem:[%s2154] sm:$0xff]
        %v2156 = vld [vmem:[%s2154 + $0x8] sm:$0xff]
        %v2157 = vld [vmem:[%s2154 + $0x10] sm:$0xff]
        %v2158 = vld [vmem:[%s2154 + $0x18] sm:$0xff]
        %v2159 = vld [vmem:[%s2154 + $0x20] sm:$0xff]
        %v2160 = vld [vmem:[%s2154 + $0x28] sm:$0xff]
        %v2161 = vld [vmem:[%s2154 + $0x30] sm:$0xff]
        %v2162 = vld [vmem:[%s2154 + $0x38] sm:$0xff]
        %v2164 = vsel %vm544, %v2153, 0
        %2166 = vmatprep.subr.mxu0 0.0
        %2167 = vmatpush1.msra.mxu0 %v2155
        %2168 = vmatprep.subr.mxu0 0.0
        %2169 = vmatpush1.msra.mxu0 %v2156
        %2170 = vmatprep.subr.mxu0 0.0
        %2171 = vmatpush1.msra.mxu0 %v2157
        %2172 = vmatprep.subr.mxu0 0.0
        %2173 = vmatpush1.msra.mxu0 %v2158
        %2174 = vmatprep.subr.mxu0 0.0
        %2175 = vmatpush1.msra.mxu0 %v2159
        %2176 = vmatprep.subr.mxu0 0.0
        %2177 = vmatpush1.msra.mxu0 %v2160
        %2178 = vmatprep.subr.mxu0 0.0
        %2179 = vmatpush1.msra.mxu0 %v2161
        %2180 = vmatprep.subr.mxu0 0.0
        %2181 = vmatpush1.msra.mxu0 %v2162
        %2182 = vmatprep.subr.mxu0 0.0
        %2183 = vmatpush1.msra.mxu0 0.0
        %2184 = vmatprep.subr.mxu0 0.0
        %2185 = vmatpush1.msra.mxu0 0.0
        %2186 = vmatprep.subr.mxu0 0.0
        %2187 = vmatpush1.msra.mxu0 0.0
        %2188 = vmatprep.subr.mxu0 0.0
        %2189 = vmatpush1.msra.mxu0 0.0
        %2190 = vmatprep.subr.mxu0 0.0
        %2191 = vmatpush1.msra.mxu0 0.0
        %2192 = vmatprep.subr.mxu0 0.0
        %2193 = vmatpush1.msra.mxu0 0.0
        %2194 = vmatprep.subr.mxu0 0.0
        %2195 = vmatpush1.msra.mxu0 0.0
        %2196 = vmatprep.subr.mxu0 0.0
        %2197 = vmatpush1.msra.mxu0 0.0
        %2198 = vmatprep.subr.mxu0 0.0
        %2199 = vmatpush1.msra.mxu0 0.0
        %2200 = vmatprep.subr.mxu0 0.0
        %2201 = vmatpush1.msra.mxu0 0.0
        %2202 = vmatprep.subr.mxu0 0.0
        %2203 = vmatpush1.msra.mxu0 0.0
        %2204 = vmatprep.subr.mxu0 0.0
        %2205 = vmatpush1.msra.mxu0 0.0
        %2206 = vmatprep.subr.mxu0 0.0
        %2207 = vmatpush1.msra.mxu0 0.0
        %2208 = vmatprep.subr.mxu0 0.0
        %2209 = vmatpush1.msra.mxu0 0.0
        %2210 = vmatprep.subr.mxu0 0.0
        %2211 = vmatpush1.msra.mxu0 0.0
        %2212 = vmatprep.subr.mxu0 0.0
        %2213 = vmatpush1.msra.mxu0 0.0
        %2214 = vmatprep.subr.mxu0 0.0
        %2215 = vmatpush1.msra.mxu0 0.0
        %2216 = vmatprep.subr.mxu0 0.0
        %2217 = vmatpush1.msra.mxu0 0.0
        %2218 = vmatprep.subr.mxu0 0.0
        %2219 = vmatpush1.msra.mxu0 0.0
        %2220 = vmatprep.subr.mxu0 0.0
        %2221 = vmatpush1.msra.mxu0 0.0
        %2222 = vmatprep.subr.mxu0 0.0
        %2223 = vmatpush1.msra.mxu0 0.0
        %2224 = vmatprep.subr.mxu0 0.0
        %2225 = vmatpush1.msra.mxu0 0.0
        %2226 = vmatprep.subr.mxu0 0.0
        %2227 = vmatpush1.msra.mxu0 0.0
        %2228 = vmatprep.subr.mxu0 0.0
        %2229 = vmatpush1.msra.mxu0 0.0
        %2230 = vmatprep.mubr.f32.mxu0 0.0
        %2231 = vmatmul.mubr.f32.gmra.mrb[0].mxu0 %v2164
        %v2232 = vpop.f32.mrb[0].mxu0
        %v2233 = vadd.f32 %v1316, %v2232
        %v2234 = vpop.f32.mrb[0].mxu0
        %2235 = vdwg.mxu0
        %v2236 = vmul.f32 %v2233, %v2233
        %v2237 = vsel %vm397, %v2236, 0.0
        %2238 = vadd.xlane.f32.xlu0 %v2237
        %v2239 = vpop.xlane.xlu0 %2238
        %v2240 = vmul.f32 %v2239, %v401
        %v2241 = vadd.f32 %v2240, 1e-05
        %v2242 = vrsqrt.pop %v2241
        %v2243 = vmul.f32 %v2233, %v2242
        %v2244 = vld [vmem:[%s7] sm:$0x1]
        %v2246 = vlaneseq
        %v2247 = vshrl.u32 %v2246, 7
        %v2248 = vsub.s32 0, %v2247
        %v2249 = vrot.slane %v2244, %v2248
        %v2251 = vmul.f32 %v2243, %v2249
        %v2252 = vld [vmem:[#allocation8] sm:$0xff]
        %v2253 = vld [vmem:[#allocation8 + $0x8] sm:$0xff]
        %v2254 = vld [vmem:[#allocation8 + $0x10] sm:$0xff]
        %v2255 = vld [vmem:[#allocation8 + $0x18] sm:$0xff]
        %v2256 = vld [vmem:[#allocation8 + $0x20] sm:$0xff]
        %v2257 = vld [vmem:[#allocation8 + $0x28] sm:$0xff]
        %v2258 = vld [vmem:[#allocation8 + $0x30] sm:$0xff]
        %v2259 = vld [vmem:[#allocation8 + $0x38] sm:$0xff]
        %v2260 = vld [vmem:[#allocation8 + $0x40] sm:$0xff]
        %v2261 = vld [vmem:[#allocation8 + $0x48] sm:$0xff]
        %v2262 = vld [vmem:[#allocation8 + $0x50] sm:$0xff]
        %v2263 = vld [vmem:[#allocation8 + $0x58] sm:$0xff]
        %v2265 = vsel %vm397, %v2251, 0
        %2267 = vmatprep.subr.mxu0 %v2253
        %2268 = vmatpush1.msra.mxu0 %v2252
        %2269 = vmatprep.subr.mxu0 %v2256
        %2270 = vmatpush1.msra.mxu0 %v2255
        %2271 = vmatprep.subr.mxu0 %v2259
        %2272 = vmatpush1.msra.mxu0 %v2258
        %2273 = vmatprep.subr.mxu0 %v2262
        %2274 = vmatpush1.msra.mxu0 %v2261
        %2275 = vmatprep.subr.mxu0 0.0
        %2276 = vmatpush1.msra.mxu0 0.0
        %2277 = vmatprep.subr.mxu0 0.0
        %2278 = vmatpush1.msra.mxu0 0.0
        %2279 = vmatprep.subr.mxu0 0.0
        %2280 = vmatpush1.msra.mxu0 0.0
        %2281 = vmatprep.subr.mxu0 0.0
        %2282 = vmatpush1.msra.mxu0 0.0
        %2283 = vmatprep.subr.mxu0 0.0
        %2284 = vmatpush1.msra.mxu0 0.0
        %2285 = vmatprep.subr.mxu0 0.0
        %2286 = vmatpush1.msra.mxu0 0.0
        %2287 = vmatprep.subr.mxu0 0.0
        %2288 = vmatpush1.msra.mxu0 0.0
        %2289 = vmatprep.subr.mxu0 0.0
        %2290 = vmatpush1.msra.mxu0 0.0
        %2291 = vmatprep.subr.mxu0 0.0
        %2292 = vmatpush1.msra.mxu0 0.0
        %2293 = vmatprep.subr.mxu0 0.0
        %2294 = vmatpush1.msra.mxu0 0.0
        %2295 = vmatprep.subr.mxu0 0.0
        %2296 = vmatpush1.msra.mxu0 0.0
        %2297 = vmatprep.subr.mxu0 0.0
        %2298 = vmatpush1.msra.mxu0 0.0
        %2299 = vmatprep.subr.mxu0 0.0
        %2300 = vmatpush1.msra.mxu0 0.0
        %2301 = vmatprep.subr.mxu0 0.0
        %2302 = vmatpush1.msra.mxu0 0.0
        %2303 = vmatprep.subr.mxu0 0.0
        %2304 = vmatpush1.msra.mxu0 0.0
        %2305 = vmatprep.subr.mxu0 0.0
        %2306 = vmatpush1.msra.mxu0 0.0
        %2307 = vmatprep.subr.mxu0 0.0
        %2308 = vmatpush1.msra.mxu0 0.0
        %2309 = vmatprep.subr.mxu0 0.0
        %2310 = vmatpush1.msra.mxu0 0.0
        %2311 = vmatprep.subr.mxu0 0.0
        %2312 = vmatpush1.msra.mxu0 0.0
        %2313 = vmatprep.subr.mxu0 0.0
        %2314 = vmatpush1.msra.mxu0 0.0
        %2315 = vmatprep.subr.mxu0 0.0
        %2316 = vmatpush1.msra.mxu0 0.0
        %2317 = vmatprep.subr.mxu0 0.0
        %2318 = vmatpush1.msra.mxu0 0.0
        %2319 = vmatprep.subr.mxu0 0.0
        %2320 = vmatpush1.msra.mxu0 0.0
        %2321 = vmatprep.subr.mxu0 0.0
        %2322 = vmatpush1.msra.mxu0 0.0
        %2323 = vmatprep.subr.mxu0 0.0
        %2324 = vmatpush1.msra.mxu0 0.0
        %2325 = vmatprep.subr.mxu0 0.0
        %2326 = vmatpush1.msra.mxu0 0.0
        %2327 = vmatprep.subr.mxu0 0.0
        %2328 = vmatpush1.msra.mxu0 0.0
        %2329 = vmatprep.subr.mxu0 0.0
        %2330 = vmatpush1.msra.mxu0 0.0
        %2331 = vmatprep.mubr.f32.mxu0 0.0
        %2332 = vmatmul.mubr.f32.gmra.mrb[0].mxu0 %v2265
        %v2333 = vpop.f32.mrb[0].mxu0
        %v2334 = vadd.f32 0.0, %v2333
        %v2335 = vpop.f32.mrb[0].mxu0
        %v2336 = vadd.f32 0.0, %v2335
        %2337 = vdwg.mxu0
        %2338 = vmatprep.subr.mxu0 0.0
        %2339 = vmatpush1.msra.mxu0 %v2254
        %2340 = vmatprep.subr.mxu0 0.0
        %2341 = vmatpush1.msra.mxu0 %v2257
        %2342 = vmatprep.subr.mxu0 0.0
        %2343 = vmatpush1.msra.mxu0 %v2260
        %2344 = vmatprep.subr.mxu0 0.0
        %2345 = vmatpush1.msra.mxu0 %v2263
        %2346 = vmatprep.subr.mxu0 0.0
        %2347 = vmatpush1.msra.mxu0 0.0
        %2348 = vmatprep.subr.mxu0 0.0
        %2349 = vmatpush1.msra.mxu0 0.0
        %2350 = vmatprep.subr.mxu0 0.0
        %2351 = vmatpush1.msra.mxu0 0.0
        %2352 = vmatprep.subr.mxu0 0.0
        %2353 = vmatpush1.msra.mxu0 0.0
        %2354 = vmatprep.subr.mxu0 0.0
        %2355 = vmatpush1.msra.mxu0 0.0
        %2356 = vmatprep.subr.mxu0 0.0
        %2357 = vmatpush1.msra.mxu0 0.0
        %2358 = vmatprep.subr.mxu0 0.0
        %2359 = vmatpush1.msra.mxu0 0.0
        %2360 = vmatprep.subr.mxu0 0.0
        %2361 = vmatpush1.msra.mxu0 0.0
        %2362 = vmatprep.subr.mxu0 0.0
        %2363 = vmatpush1.msra.mxu0 0.0
        %2364 = vmatprep.subr.mxu0 0.0
        %2365 = vmatpush1.msra.mxu0 0.0
        %2366 = vmatprep.subr.mxu0 0.0
        %2367 = vmatpush1.msra.mxu0 0.0
        %2368 = vmatprep.subr.mxu0 0.0
        %2369 = vmatpush1.msra.mxu0 0.0
        %2370 = vmatprep.subr.mxu0 0.0
        %2371 = vmatpush1.msra.mxu0 0.0
        %2372 = vmatprep.subr.mxu0 0.0
        %2373 = vmatpush1.msra.mxu0 0.0
        %2374 = vmatprep.subr.mxu0 0.0
        %2375 = vmatpush1.msra.mxu0 0.0
        %2376 = vmatprep.subr.mxu0 0.0
        %2377 = vmatpush1.msra.mxu0 0.0
        %2378 = vmatprep.subr.mxu0 0.0
        %2379 = vmatpush1.msra.mxu0 0.0
        %2380 = vmatprep.subr.mxu0 0.0
        %2381 = vmatpush1.msra.mxu0 0.0
        %2382 = vmatprep.subr.mxu0 0.0
        %2383 = vmatpush1.msra.mxu0 0.0
        %2384 = vmatprep.subr.mxu0 0.0
        %2385 = vmatpush1.msra.mxu0 0.0
        %2386 = vmatprep.subr.mxu0 0.0
        %2387 = vmatpush1.msra.mxu0 0.0
        %2388 = vmatprep.subr.mxu0 0.0
        %2389 = vmatpush1.msra.mxu0 0.0
        %2390 = vmatprep.subr.mxu0 0.0
        %2391 = vmatpush1.msra.mxu0 0.0
        %2392 = vmatprep.subr.mxu0 0.0
        %2393 = vmatpush1.msra.mxu0 0.0
        %2394 = vmatprep.subr.mxu0 0.0
        %2395 = vmatpush1.msra.mxu0 0.0
        %2396 = vmatprep.subr.mxu0 0.0
        %2397 = vmatpush1.msra.mxu0 0.0
        %2398 = vmatprep.subr.mxu0 0.0
        %2399 = vmatpush1.msra.mxu0 0.0
        %2400 = vmatprep.subr.mxu0 0.0
        %2401 = vmatpush1.msra.mxu0 0.0
        %2402 = vmatprep.mubr.f32.mxu0 0.0
        %2403 = vmatmul.mubr.f32.gmra.mrb[0].mxu0 %v2265
        %v2404 = vpop.f32.mrb[0].mxu0
        %v2405 = vadd.f32 0.0, %v2404
        %v2406 = vpop.f32.mrb[0].mxu0
        %2407 = vdwg.mxu0
        %2408 = vst [vmem:[%s391] sm:$0xff] %v2334
        %2409 = vst [vmem:[%s391 + $0x8] sm:$0xff] %v2336
        %2410 = vst [vmem:[%s391 + $0x10] sm:$0xff] %v2405
        %s2411 = sand.u32 %s230, 1
        %s2412 = scalar_lea.sflag [#allocation4], %s2411
        %s2413 = sand.u32 %s230, 1
        %s2414 = smul.addr %s2413, 24
        %s2415 = scalar_lea.vmem [#allocation10], %s2414
        // Predicated region
        $region73: #{tpu_custom_call.1} parent=55 // pred_check
          %p2416 = pneg %p240
        $region74: #{tpu_custom_call.1} parent=55 // pred_check_branch
          %2418 = sbr.rel (%p2416) target = $region76
        $region75: #{tpu_custom_call.1} parent=55 // pred_region
          %s2420 = ssub.s32 384, 384
          %2421 = vsyncadd %s2412, %s2420
          %s2422 = smul.addr %s28, 3
          %s2423 = smul.addr %s2422, 128
          %s2424 = scalar_lea.hbm %s9, %s2423
          %s2426 = sshll.u32 %s2415, 4
          %s2427 = int_to_ptr.vmem [resolvable:$true] %s2426
          %2429 = dma.vmem_to_hbm [thread:$0]  %s2427, 384, %s2424, %s2412
        $region76: #{tpu_custom_call.1} parent=55 // pred_fallthru
          _
      $region56: #{tpu_custom_call.1} parent=5 // pred_fallthru
        _
      %p2430 = scmp.le.s32.totalorder 2, %s23
      // Predicated region
      $region77: #{tpu_custom_call.1} parent=5 // pred_check
        %p2431 = pneg %p2430
      $region78: #{tpu_custom_call.1} parent=5 // pred_check_branch
        %2433 = sbr.rel (%p2431) target = $region80
      $region79: #{tpu_custom_call.1} parent=5 // pred_region
        %s2434 = ssub.s32 %s23, 2
        // Predicated region
        $region81: #{tpu_custom_call.1} parent=79 // pred_check
          %p2435 = pneg %p246
        $region82: #{tpu_custom_call.1} parent=79 // pred_check_branch
          %2437 = sbr.rel (%p2435) target = $region84
        $region83: #{tpu_custom_call.1} parent=79 // pred_region
          %s2438 = sand.u32 %s231, 1
          %s2439 = scalar_lea.sflag [#allocation4], %s2438
          %s2440 = sand.u32 %s231, 1
          %s2441 = smul.addr %s2440, 24
          %s2442 = scalar_lea.vmem [#allocation10], %s2441
          %2443 = dma.done %s2439, 384
        $region84: #{tpu_custom_call.1} parent=79 // pred_fallthru
          _
      $region80: #{tpu_custom_call.1} parent=5 // pred_fallthru
        _
    $region6: #{tpu_custom_call.1} parent=1 // loop_footer
      %s27 = sadd.s32 1, %s23
    $region7: #{tpu_custom_call.1} parent=1 // loop_footer_branch
      %22 = sbr.rel target = $region3
    $region8: #{tpu_custom_call.1} parent=1 // loop_exit
      _
    %2444 = vsyncpa [#allocation3], 1
    %s2445 = scalar_lea.sflag [#allocation3], 1
    %2446 = vsyncpa %s2445, 1
    %2447 = vsyncpa [#allocation6], 1
    %2448 = vsyncpa [#allocation9], 1
    %2449 = vsyncpa [#allocation4], 1
    %s2450 = scalar_lea.sflag [#allocation4], 1
    %2451 = vsyncpa %s2450, 1

</llo_original>
